<compile_context>
chip_gen: v7x
topology: tpu7x:2x2x1
jax: 0.10.0
libtpu: 0.0.40
codegen_flags: <defaults>
</compile_context>

<pallas_src>
import math

import numpy as np
import jax
import jax.numpy as jnp
from jax.experimental import pallas as pl
from jax.experimental.pallas import tpu as pltpu

_K_EMB = 896  # 888 zero-padded to 7*128 for lane alignment


# ----------------------------------------------------------------------------
# Tiling plan
# ----------------------------------------------------------------------------
def _round_up(x, m):
    return (x + m - 1) // m * m


def _plan(batch, hw):
    """Choose (TB, TK, HW_pad): TK multiple of 128, HW_pad multiple of TK."""
    # Split the batch only when it is large enough to keep the MXU M-dim full
    # (per-matmul M should stay >= 128-256; below that splitting only hurts).
    tb = batch
    if batch > 256 and batch % 8 == 0:
        for cand in (256, 128, 64, 32, 16, 8):
            if batch % cand == 0:
                tb = cand
                break
    # Revolving (double-buffered) tiles: x (f32) + wemb (bf16) + seg (f32).
    # ~24 MiB keeps the whole kernel well under v7x's 64 MiB physical VMEM.
    budget = 24 * 1024 * 1024
    per_col = 2 * (4 * tb + 2 * _K_EMB + 4 * 14 * tb)   # bytes per HW column
    tk = max(128, min(budget // per_col, 4096) // 128 * 128)
    tk = min(tk, _round_up(hw, 128))
    hw_pad = _round_up(hw, tk)
    return tb, tk, hw_pad


# ----------------------------------------------------------------------------
# Fused Pallas kernel
# ----------------------------------------------------------------------------
def _mtlnet_kernel(
    x_ref,      # [TB, TK]      f32   flattened 1-channel image tile
    wseg_ref,   # [1, 14, 1]    f32   surrogate unet 1x1 conv weight
    bseg_ref,   # [1, 14, 1]    f32   surrogate unet 1x1 conv bias
    wemb_ref,   # [TK, 896]     bf16  surrogate unet emb projection tile (888 padded)
    w0_ref,     # [896, 512]    f32   shared_mlp Linear (BN scale folded)
    b0_ref,     # [1, 512]      f32   shared_mlp BN bias
    w1_ref,     # [512, 512]    f32   [concept L1 | cls L1]          (BN folded)
    b1_ref,     # [1, 512]      f32
    w2_ref,     # [512, 256]    f32   block-diag [concept L2, cls L2] (BN folded)
    b2_ref,     # [1, 256]      f32
    w3_ref,     # [256, 128]    f32   block-diag [concept L3 (27) | cls L3 (8)]
    b3_ref,     # [1, 128]      f32
    seg_ref,    # [TB, 14, TK]  f32   out: lane-dense seg logits tile
    head_ref,   # [TB, 128]     f32   out: [:, :27]=concept, [:, 27:35]=cls
    emb_acc,    # [TB, 896]     f32   scratch: seg_emb accumulator
):
    k = pl.program_id(1)

    x = x_ref[...]                                            # [TB, TK] f32

    # --- seg head: Cin=1 1x1 conv == per-channel broadcast MAC on the VPU,
    #     lane-dense output; co-issues with / hides under the MXU + DMA work.
    seg_ref[...] = x[:, None, :] * wseg_ref[...] + bseg_ref[...]

    # --- surrogate RegUNet embedding: accumulate [TB, TK] @ [TK, 896] on the MXU
    #     (bf16 inputs, f32 accumulation across HW tiles).
    partial = jnp.dot(x.astype(jnp.bfloat16), wemb_ref[...],
                      preferred_element_type=jnp.float32)

    @pl.when(k == 0)
    def _():
        emb_acc[...] = jnp.zeros_like(emb_acc)

    emb_acc[...] += partial

    # --- on the last HW tile: shared_mlp + both heads (fused, BN folded), f32 MXU.
    @pl.when(k == pl.num_programs(1) - 1)
    def _():
        def lrelu(v):                       # nn.LeakyReLU default slope 0.01
            return jnp.where(v >= 0, v, 0.01 * v)

        def mm(a, w_ref):
            return jnp.dot(a, w_ref[...], preferred_element_type=jnp.float32)

        feat = lrelu(mm(emb_acc[...], w0_ref) + b0_ref[...])   # shared_mlp
        h1 = lrelu(mm(feat, w1_ref) + b1_ref[...])              # heads level 1
        h2 = lrelu(mm(h1, w2_ref) + b2_ref[...])                 # heads level 2
        head_ref[...] = mm(h2, w3_ref) + b3_ref[...]             # heads level 3


# ----------------------------------------------------------------------------
# Wrapper
# ----------------------------------------------------------------------------
@jax.jit
def mtlnet_forward(x_img, params):
    """x_img: [B, 1, H, W] (NCHW). params: packed dict from pack_params(raw, batch=B)."""
    B, C, H, W = x_img.shape
    HW = C * H * W
    TB, TK, HW_pad = _plan(B, HW)
    nb, nk = B // TB, HW_pad // TK

    assert params["wemb"].shape[0] == HW_pad, "pack_params batch/hw must match the call"

    x_flat = jnp.pad(x_img.reshape(B, HW), ((0, 0), (0, HW_pad - HW)))

    order = ["wseg", "bseg", "wemb", "w0", "b0", "w1", "b1", "w2", "b2", "w3", "b3"]
    args = [x_flat] + [params[k] for k in order]

    def const(shape):  # resident weight: constant block index -> DMAed once
        return pl.BlockSpec(shape, lambda b, k: (0,) * len(shape))

    in_specs = [
        pl.BlockSpec((TB, TK), lambda b, k: (b, k)),            # x tile
        const((1, 14, 1)),                                      # wseg
        const((1, 14, 1)),                                      # bseg
        pl.BlockSpec((TK, _K_EMB), lambda b, k: (k, 0)),        # wemb tile (revolves)
        const((_K_EMB, 512)), const((1, 512)),                  # w0, b0
        const((512, 512)),    const((1, 512)),                  # w1, b1
        const((512, 256)),    const((1, 256)),                  # w2, b2
        const((256, 128)),    const((1, 128)),                  # w3, b3
    ]
    out_specs = [
        pl.BlockSpec((TB, 14, TK), lambda b, k: (b, 0, k)),     # seg (lane-dense)
        pl.BlockSpec((TB, 128), lambda b, k: (b, 0)),           # head (resident over k)
    ]
    out_shape = [
        jax.ShapeDtypeStruct((B, 14, HW_pad), jnp.float32),
        jax.ShapeDtypeStruct((B, 128), jnp.float32),
    ]

    flops = (2 * B * HW_pad * _K_EMB                            # emb projection
             + 2 * B * 14 * HW_pad                              # seg broadcast MAC
             + 2 * B * (_K_EMB * 512 + 512 * 512 + 512 * 256 + 256 * 128))
    bytes_accessed = int(
        sum(math.prod(a.shape) * np.dtype(a.dtype).itemsize for a in args)
        + sum(math.prod(s.shape) * np.dtype(s.dtype).itemsize for s in out_shape))

    seg3, head = pl.pallas_call(
        _mtlnet_kernel,
        grid=(nb, nk),
        in_specs=in_specs,
        out_specs=out_specs,
        out_shape=out_shape,
        scratch_shapes=[pltpu.VMEM((TB, _K_EMB), jnp.float32)],
        compiler_params=pltpu.CompilerParams(
            dimension_semantics=("parallel", "arbitrary"),
            vmem_limit_bytes=48 * 1024 * 1024,   # safe headroom under v7x's 64 MiB
        ),
        cost_estimate=pl.CostEstimate(
            flops=int(flops), transcendentals=0, bytes_accessed=bytes_accessed),
    )(*args)

    seg_logit = seg3[:, :, :HW].reshape(B, 14, H, W)   # reshape only, no transpose
    return {"seg_logit": seg_logit,
            "concept_logit": head[:, :27],
            "logit": head[:, 27:35]}


# ----------------------------------------------------------------------------
# Parameters: raw (original module structure, f32) and packed (kernel layout)
# ----------------------------------------------------------------------------
def _bn_scale_bias(key, dim, eps=1e-5):
    k1, k2, k3, k4 = jax.random.split(key, 4)
    gamma = jax.random.uniform(k1, (1, dim), jnp.float32, 0.5, 1.5)
    beta = 0.1 * jax.random.normal(k2, (1, dim), jnp.float32)
    rmean = 0.1 * jax.random.normal(k3, (1, dim), jnp.float32)
    rvar = jax.random.uniform(k4, (1, dim), jnp.float32, 0.5, 1.5)
    scale = gamma / jnp.sqrt(rvar + eps)
    bias = beta - rmean * scale
    return scale, bias


def make_raw_params(key, hw):
    keys = jax.random.split(key, 16)

    def lin(k, fan_in, fan_out):
        return 0.05 * jax.random.normal(k, (fan_in, fan_out), jnp.float32)

    p = {}
    # surrogate unet (seg head + emb projection)
    p["wseg"] = 0.5 * jax.random.normal(keys[0], (14,), jnp.float32)
    p["bseg"] = 0.05 * jax.random.normal(keys[1], (14,), jnp.float32)
    p["wemb"] = lin(keys[2], hw, 888)
    # shared_mlp
    p["w0"] = lin(keys[3], 888, 512)
    p["s0"], p["b0"] = _bn_scale_bias(keys[4], 512)
    # concept_head
    p["wc1"] = lin(keys[5], 512, 256)
    p["sc1"], p["bc1"] = _bn_scale_bias(keys[6], 256)
    p["wc2"] = lin(keys[7], 256, 128)
    p["sc2"], p["bc2"] = _bn_scale_bias(keys[8], 128)
    p["wc3"] = lin(keys[9], 128, 27)
    p["bc3"] = 0.05 * jax.random.normal(keys[10], (1, 27), jnp.float32)
    # cls_head
    p["wk1"] = lin(keys[11], 512, 256)
    p["sk1"], p["bk1"] = _bn_scale_bias(keys[12], 256)
    p["wk2"] = lin(keys[13], 256, 128)
    p["sk2"], p["bk2"] = _bn_scale_bias(keys[14], 128)
    p["wk3"] = lin(keys[15], 128, 8)
    p["bk3"] = jnp.zeros((1, 8), jnp.float32)
    return p


def pack_params(p, batch):
    """Fold BN, concat/block-diag heads, pad 888->896 and HW->HW_pad, wemb -> bf16."""
    f32 = jnp.float32
    hw = p["wemb"].shape[0]
    _, _, hw_pad = _plan(batch, hw)

    q = {}
    q["wseg"] = p["wseg"].reshape(1, 14, 1).astype(f32)
    q["bseg"] = p["bseg"].reshape(1, 14, 1).astype(f32)

    q["wemb"] = jnp.pad(p["wemb"],
                        ((0, hw_pad - hw), (0, _K_EMB - 888))).astype(jnp.bfloat16)

    q["w0"] = jnp.pad(p["w0"] * p["s0"], ((0, _K_EMB - 888), (0, 0))).astype(f32)
    q["b0"] = p["b0"].astype(f32)

    q["w1"] = jnp.concatenate([p["wc1"] * p["sc1"], p["wk1"] * p["sk1"]], axis=1).astype(f32)
    q["b1"] = jnp.concatenate([p["bc1"], p["bk1"]], axis=1).astype(f32)

    w2 = jnp.zeros((512, 256), f32)
    w2 = w2.at[:256, :128].set(p["wc2"] * p["sc2"])
    w2 = w2.at[256:, 128:].set(p["wk2"] * p["sk2"])
    q["w2"] = w2
    q["b2"] = jnp.concatenate([p["bc2"], p["bk2"]], axis=1).astype(f32)

    w3 = jnp.zeros((256, 128), f32)
    w3 = w3.at[:128, :27].set(p["wc3"])
    w3 = w3.at[128:, 27:35].set(p["wk3"])
    q["w3"] = w3
    b3 = jnp.zeros((1, 128), f32)
    b3 = b3.at[:, :27].set(p["bc3"])
    b3 = b3.at[:, 27:35].set(p["bk3"])
    q["b3"] = b3
    return q


# ----------------------------------------------------------------------------
# Pure-JAX references (sanity checks)
# ----------------------------------------------------------------------------
def reference_raw(x_img, p):
    """Original module structure: f32, HIGHEST precision, unfolded BN, separate heads."""
    B, C, H, W = x_img.shape
    hp = jax.lax.Precision.HIGHEST
    mm = lambda a, b: jnp.dot(a, b, precision=hp)
    lrelu = lambda v: jnp.where(v >= 0, v, 0.01 * v)

    seg = x_img[:, 0:1, :, :] * p["wseg"].reshape(1, 14, 1, 1) + p["bseg"].reshape(1, 14, 1, 1)

    xf = x_img.reshape(B, C * H * W)
    emb = mm(xf, p["wemb"])
    feat = lrelu(mm(emb, p["w0"]) * p["s0"] + p["b0"])
    h = lrelu(mm(feat, p["wc1"]) * p["sc1"] + p["bc1"])
    h = lrelu(mm(h, p["wc2"]) * p["sc2"] + p["bc2"])
    concept = mm(h, p["wc3"]) + p["bc3"]
    g = lrelu(mm(feat, p["wk1"]) * p["sk1"] + p["bk1"])
    g = lrelu(mm(g, p["wk2"]) * p["sk2"] + p["bk2"])
    cls = mm(g, p["wk3"]) + p["bk3"]
    return {"seg_logit": seg, "concept_logit": concept, "logit": cls}


def reference_packed(x_img, q):
    """Mirrors the kernel math (folded/concat weights, bf16 emb matmul, f32 MLP)."""
    B, C, H, W = x_img.shape
    hw = C * H * W
    hw_pad = q["wemb"].shape[0]
    hp = jax.lax.Precision.HIGHEST
    f32 = jnp.float32
    lrelu = lambda v: jnp.where(v >= 0, v, 0.01 * v)
    mm = lambda a, b: jnp.dot(a, b, precision=hp, preferred_element_type=f32)

    x = jnp.pad(x_img.reshape(B, hw), ((0, 0), (0, hw_pad - hw)))
    seg = (x[:, None, :hw] * q["wseg"] + q["bseg"]).reshape(B, 14, H, W)
    emb = mm(x.astype(jnp.bfloat16), q["wemb"]).astype(f32)
    feat = lrelu(mm(emb, q["w0"]) + q["b0"])
    h1 = lrelu(mm(feat, q["w1"]) + q["b1"])
    h2 = lrelu(mm(h1, q["w2"]) + q["b2"])
    head = mm(h2, q["w3"]) + q["b3"]
    return {"seg_logit": seg, "concept_logit": head[:, :27], "logit": head[:, 27:35]}


# ----------------------------------------------------------------------------
if __name__ == "__main__":
    key = jax.random.PRNGKey(0)
    k_x, k_p = jax.random.split(key)

    # NOTE: for real throughput use B >= 128-256 so every MXU pass sees a full M-dim;
    # B=8 kept here as the small deterministic test shape.
    B, C, H, W = 8, 1, 16, 16
    x = jax.random.normal(k_x, (B, C, H, W), jnp.float32)

    raw_params = make_raw_params(k_p, C * H * W)
    packed_params = pack_params(raw_params, batch=B)

    out = mtlnet_forward(x, packed_params)
    jax.block_until_ready(out)

    ref_exact = reference_packed(x, packed_params)   # same math as the kernel
    ref_sem = reference_raw(x, raw_params)           # original f32 module semantics

    for name in ("seg_logit", "concept_logit", "logit"):
        assert out[name].shape == ref_sem[name].shape, name
        # kernel faithfully implements the packed (folded/concat, bf16-emb) math
        assert jnp.allclose(out[name], ref_exact[name], rtol=2e-2, atol=2e-2), name
        # packed pipeline stays close to the original f32 module semantics
        assert jnp.allclose(out[name], ref_sem[name], rtol=5e-2, atol=5e-2), name

    print("KERNEL_OK")
</pallas_src>

<mosaic_0001>
module attributes {stable_mosaic.version = 11 : i64} {
  func.func @_mtlnet_kernel(%arg0: i32, %arg1: i32, %arg2: memref<8x256xf32, #tpu.memory_space<vmem>>, %arg3: memref<1x14x1xf32, #tpu.memory_space<vmem>>, %arg4: memref<1x14x1xf32, #tpu.memory_space<vmem>>, %arg5: memref<256x896xbf16, #tpu.memory_space<vmem>>, %arg6: memref<896x512xf32, #tpu.memory_space<vmem>>, %arg7: memref<1x512xf32, #tpu.memory_space<vmem>>, %arg8: memref<512x512xf32, #tpu.memory_space<vmem>>, %arg9: memref<1x512xf32, #tpu.memory_space<vmem>>, %arg10: memref<512x256xf32, #tpu.memory_space<vmem>>, %arg11: memref<1x256xf32, #tpu.memory_space<vmem>>, %arg12: memref<256x128xf32, #tpu.memory_space<vmem>>, %arg13: memref<1x128xf32, #tpu.memory_space<vmem>>, %arg14: memref<8x14x256xf32, #tpu.memory_space<vmem>>, %arg15: memref<8x128xf32, #tpu.memory_space<vmem>>, %arg16: memref<8x896xf32, #tpu.memory_space<vmem>>) attributes {dimension_semantics = [#tpu.dimension_semantics<parallel>, #tpu.dimension_semantics<arbitrary>], iteration_bounds = array<i64: 1, 1>, scalar_prefetch = 0 : i64, scratch_operands = 1 : i64, tpu.core_type = #tpu.core_type<tc>, window_params = [{transform_indices = @transform_0, window_bounds = array<i64: 8, 256>}, {pipeline_mode = #tpu.pipeline_mode<synchronous>, transform_indices = @transform_1, window_bounds = array<i64: 1, 14, 1>}, {pipeline_mode = #tpu.pipeline_mode<synchronous>, transform_indices = @transform_2, window_bounds = array<i64: 1, 14, 1>}, {transform_indices = @transform_3, window_bounds = array<i64: 256, 896>}, {pipeline_mode = #tpu.pipeline_mode<synchronous>, transform_indices = @transform_4, window_bounds = array<i64: 896, 512>}, {pipeline_mode = #tpu.pipeline_mode<synchronous>, transform_indices = @transform_5, window_bounds = array<i64: 1, 512>}, {pipeline_mode = #tpu.pipeline_mode<synchronous>, transform_indices = @transform_6, window_bounds = array<i64: 512, 512>}, {pipeline_mode = #tpu.pipeline_mode<synchronous>, transform_indices = @transform_7, window_bounds = array<i64: 1, 512>}, {pipeline_mode = #tpu.pipeline_mode<synchronous>, transform_indices = @transform_8, window_bounds = array<i64: 512, 256>}, {pipeline_mode = #tpu.pipeline_mode<synchronous>, transform_indices = @transform_9, window_bounds = array<i64: 1, 256>}, {pipeline_mode = #tpu.pipeline_mode<synchronous>, transform_indices = @transform_10, window_bounds = array<i64: 256, 128>}, {pipeline_mode = #tpu.pipeline_mode<synchronous>, transform_indices = @transform_11, window_bounds = array<i64: 1, 128>}, {transform_indices = @transform_12, window_bounds = array<i64: 8, 14, 256>}, {transform_indices = @transform_13, window_bounds = array<i64: 8, 128>}]} {
    %c0 = arith.constant 0 : index
    %c0_0 = arith.constant 0 : index
    %0 = vector.load %arg2[%c0, %c0_0] : memref<8x256xf32, #tpu.memory_space<vmem>>, vector<8x256xf32>
    %1 = vector.shape_cast %0 : vector<8x256xf32> to vector<8x1x256xf32>
    %c0_1 = arith.constant 0 : index
    %c0_2 = arith.constant 0 : index
    %c0_3 = arith.constant 0 : index
    %2 = vector.load %arg3[%c0_1, %c0_2, %c0_3] : memref<1x14x1xf32, #tpu.memory_space<vmem>>, vector<1x14x1xf32>
    %3 = vector.broadcast %1 : vector<8x1x256xf32> to vector<8x14x256xf32>
    %4 = vector.broadcast %2 : vector<1x14x1xf32> to vector<8x14x256xf32>
    %5 = arith.mulf %3, %4 : vector<8x14x256xf32>
    %c0_4 = arith.constant 0 : index
    %c0_5 = arith.constant 0 : index
    %c0_6 = arith.constant 0 : index
    %6 = vector.load %arg4[%c0_4, %c0_5, %c0_6] : memref<1x14x1xf32, #tpu.memory_space<vmem>>, vector<1x14x1xf32>
    %7 = vector.broadcast %6 : vector<1x14x1xf32> to vector<8x14x256xf32>
    %8 = arith.addf %5, %7 : vector<8x14x256xf32>
    %c0_7 = arith.constant 0 : index
    %c0_8 = arith.constant 0 : index
    %c0_9 = arith.constant 0 : index
    %9 = vector.load %arg14[%c0_7, %c0_8, %c0_9] : memref<8x14x256xf32, #tpu.memory_space<vmem>>, vector<8x14x256xf32>
    tpu.vector_store %arg14[%c0_7, %c0_8, %c0_9], %8 {strides = array<i32>} : memref<8x14x256xf32, #tpu.memory_space<vmem>>, vector<8x14x256xf32>,
    %10 = arith.truncf %0 : vector<8x256xf32> to vector<8x256xbf16>
    %c0_10 = arith.constant 0 : index
    %c0_11 = arith.constant 0 : index
    %11 = vector.load %arg5[%c0_10, %c0_11] : memref<256x896xbf16, #tpu.memory_space<vmem>>, vector<256x896xbf16>
    %cst = arith.constant dense<0.000000e+00> : vector<8x896xf32>
    %12 = tpu.matmul %10, %11, %cst {dimension_numbers = #tpu.dot_dimension_numbers<[1], [0], [0], [1], [0, 0, 1, 1], [], []>} : vector<8x256xbf16>, vector<256x896xbf16>, vector<8x896xf32> -> vector<8x896xf32>
    %c0_i32 = arith.constant 0 : i32
    %13 = arith.cmpi eq, %arg1, %c0_i32 : i32
    %14 = arith.extui %13 : i1 to i32
    %c0_i32_12 = arith.constant 0 : i32
    %15 = arith.cmpi ne, %14, %c0_i32_12 : i32
    scf.if %15 {
      %cst_19 = arith.constant 0.000000e+00 : f32
      %22 = vector.broadcast %cst_19 : f32 to vector<8x896xf32>
      %c0_20 = arith.constant 0 : index
      %c0_21 = arith.constant 0 : index
      %23 = vector.load %arg16[%c0_20, %c0_21] : memref<8x896xf32, #tpu.memory_space<vmem>>, vector<8x896xf32>
      tpu.vector_store %arg16[%c0_20, %c0_21], %22 {strides = array<i32>} : memref<8x896xf32, #tpu.memory_space<vmem>>, vector<8x896xf32>,
    } else {
    }
    %c0_13 = arith.constant 0 : index
    %c0_14 = arith.constant 0 : index
    %16 = vector.load %arg16[%c0_13, %c0_14] : memref<8x896xf32, #tpu.memory_space<vmem>>, vector<8x896xf32>
    %17 = arith.addf %16, %12 : vector<8x896xf32>
    %c0_15 = arith.constant 0 : index
    %c0_16 = arith.constant 0 : index
    %18 = vector.load %arg16[%c0_15, %c0_16] : memref<8x896xf32, #tpu.memory_space<vmem>>, vector<8x896xf32>
    tpu.vector_store %arg16[%c0_15, %c0_16], %17 {strides = array<i32>} : memref<8x896xf32, #tpu.memory_space<vmem>>, vector<8x896xf32>,
    %c0_i32_17 = arith.constant 0 : i32
    %19 = arith.cmpi eq, %arg1, %c0_i32_17 : i32
    %20 = arith.extui %19 : i1 to i32
    %c0_i32_18 = arith.constant 0 : i32
    %21 = arith.cmpi ne, %20, %c0_i32_18 : i32
    scf.if %21 {
      %c0_19 = arith.constant 0 : index
      %c0_20 = arith.constant 0 : index
      %22 = vector.load %arg16[%c0_19, %c0_20] : memref<8x896xf32, #tpu.memory_space<vmem>>, vector<8x896xf32>
      %c0_21 = arith.constant 0 : index
      %c0_22 = arith.constant 0 : index
      %23 = vector.load %arg6[%c0_21, %c0_22] : memref<896x512xf32, #tpu.memory_space<vmem>>, vector<896x512xf32>
      %cst_23 = arith.constant dense<0.000000e+00> : vector<8x512xf32>
      %24 = tpu.matmul %22, %23, %cst_23 {dimension_numbers = #tpu.dot_dimension_numbers<[1], [0], [0], [1], [0, 0, 1, 1], [], []>} : vector<8x896xf32>, vector<896x512xf32>, vector<8x512xf32> -> vector<8x512xf32>
      %c0_24 = arith.constant 0 : index
      %c0_25 = arith.constant 0 : index
      %25 = vector.load %arg7[%c0_24, %c0_25] : memref<1x512xf32, #tpu.memory_space<vmem>>, vector<1x512xf32>
      %26 = vector.broadcast %25 : vector<1x512xf32> to vector<8x512xf32>
      %27 = arith.addf %24, %26 : vector<8x512xf32>
      %cst_26 = arith.constant 0.000000e+00 : f32
      %28 = vector.broadcast %cst_26 : f32 to vector<8x512xf32>
      %29 = arith.cmpf oge, %27, %28 : vector<8x512xf32>
      %cst_27 = arith.constant 0.00999999977 : f32
      %30 = vector.broadcast %cst_27 : f32 to vector<8x512xf32>
      %31 = arith.mulf %30, %27 : vector<8x512xf32>
      %32 = arith.select %29, %27, %31 : vector<8x512xi1>, vector<8x512xf32>
      %c0_28 = arith.constant 0 : index
      %c0_29 = arith.constant 0 : index
      %33 = vector.load %arg8[%c0_28, %c0_29] : memref<512x512xf32, #tpu.memory_space<vmem>>, vector<512x512xf32>
      %cst_30 = arith.constant dense<0.000000e+00> : vector<8x512xf32>
      %34 = tpu.matmul %32, %33, %cst_30 {dimension_numbers = #tpu.dot_dimension_numbers<[1], [0], [0], [1], [0, 0, 1, 1], [], []>} : vector<8x512xf32>, vector<512x512xf32>, vector<8x512xf32> -> vector<8x512xf32>
      %c0_31 = arith.constant 0 : index
      %c0_32 = arith.constant 0 : index
      %35 = vector.load %arg9[%c0_31, %c0_32] : memref<1x512xf32, #tpu.memory_space<vmem>>, vector<1x512xf32>
      %36 = vector.broadcast %35 : vector<1x512xf32> to vector<8x512xf32>
      %37 = arith.addf %34, %36 : vector<8x512xf32>
      %cst_33 = arith.constant 0.000000e+00 : f32
      %38 = vector.broadcast %cst_33 : f32 to vector<8x512xf32>
      %39 = arith.cmpf oge, %37, %38 : vector<8x512xf32>
      %cst_34 = arith.constant 0.00999999977 : f32
      %40 = vector.broadcast %cst_34 : f32 to vector<8x512xf32>
      %41 = arith.mulf %40, %37 : vector<8x512xf32>
      %42 = arith.select %39, %37, %41 : vector<8x512xi1>, vector<8x512xf32>
      %c0_35 = arith.constant 0 : index
      %c0_36 = arith.constant 0 : index
      %43 = vector.load %arg10[%c0_35, %c0_36] : memref<512x256xf32, #tpu.memory_space<vmem>>, vector<512x256xf32>
      %cst_37 = arith.constant dense<0.000000e+00> : vector<8x256xf32>
      %44 = tpu.matmul %42, %43, %cst_37 {dimension_numbers = #tpu.dot_dimension_numbers<[1], [0], [0], [1], [0, 0, 1, 1], [], []>} : vector<8x512xf32>, vector<512x256xf32>, vector<8x256xf32> -> vector<8x256xf32>
      %c0_38 = arith.constant 0 : index
      %c0_39 = arith.constant 0 : index
      %45 = vector.load %arg11[%c0_38, %c0_39] : memref<1x256xf32, #tpu.memory_space<vmem>>, vector<1x256xf32>
      %46 = vector.broadcast %45 : vector<1x256xf32> to vector<8x256xf32>
      %47 = arith.addf %44, %46 : vector<8x256xf32>
      %cst_40 = arith.constant 0.000000e+00 : f32
      %48 = vector.broadcast %cst_40 : f32 to vector<8x256xf32>
      %49 = arith.cmpf oge, %47, %48 : vector<8x256xf32>
      %cst_41 = arith.constant 0.00999999977 : f32
      %50 = vector.broadcast %cst_41 : f32 to vector<8x256xf32>
      %51 = arith.mulf %50, %47 : vector<8x256xf32>
      %52 = arith.select %49, %47, %51 : vector<8x256xi1>, vector<8x256xf32>
      %c0_42 = arith.constant 0 : index
      %c0_43 = arith.constant 0 : index
      %53 = vector.load %arg12[%c0_42, %c0_43] : memref<256x128xf32, #tpu.memory_space<vmem>>, vector<256x128xf32>
      %cst_44 = arith.constant dense<0.000000e+00> : vector<8x128xf32>
      %54 = tpu.matmul %52, %53, %cst_44 {dimension_numbers = #tpu.dot_dimension_numbers<[1], [0], [0], [1], [0, 0, 1, 1], [], []>} : vector<8x256xf32>, vector<256x128xf32>, vector<8x128xf32> -> vector<8x128xf32>
      %c0_45 = arith.constant 0 : index
      %c0_46 = arith.constant 0 : index
      %55 = vector.load %arg13[%c0_45, %c0_46] : memref<1x128xf32, #tpu.memory_space<vmem>>, vector<1x128xf32>
      %56 = vector.broadcast %55 : vector<1x128xf32> to vector<8x128xf32>
      %57 = arith.addf %54, %56 : vector<8x128xf32>
      %c0_47 = arith.constant 0 : index
      %c0_48 = arith.constant 0 : index
      %58 = vector.load %arg15[%c0_47, %c0_48] : memref<8x128xf32, #tpu.memory_space<vmem>>, vector<8x128xf32>
      tpu.vector_store %arg15[%c0_47, %c0_48], %57 {strides = array<i32>} : memref<8x128xf32, #tpu.memory_space<vmem>>, vector<8x128xf32>,
    } else {
    }
    return
  }
  func.func @transform_0(%arg0: i32, %arg1: i32) -> (i32, i32) {
    %c0_i32 = arith.constant 0 : i32
    return %arg0, %arg1 : i32, i32
  }
  func.func @transform_1(%arg0: i32, %arg1: i32) -> (i32, i32, i32) {
    %c0_i32 = arith.constant 0 : i32
    %c0_i32_0 = arith.constant 0 : i32
    %c0_i32_1 = arith.constant 0 : i32
    %c0_i32_2 = arith.constant 0 : i32
    return %c0_i32, %c0_i32_0, %c0_i32_1 : i32, i32, i32
  }
  func.func @transform_2(%arg0: i32, %arg1: i32) -> (i32, i32, i32) {
    %c0_i32 = arith.constant 0 : i32
    %c0_i32_0 = arith.constant 0 : i32
    %c0_i32_1 = arith.constant 0 : i32
    %c0_i32_2 = arith.constant 0 : i32
    return %c0_i32, %c0_i32_0, %c0_i32_1 : i32, i32, i32
  }
  func.func @transform_3(%arg0: i32, %arg1: i32) -> (i32, i32) {
    %c0_i32 = arith.constant 0 : i32
    %c0_i32_0 = arith.constant 0 : i32
    return %arg1, %c0_i32 : i32, i32
  }
  func.func @transform_4(%arg0: i32, %arg1: i32) -> (i32, i32) {
    %c0_i32 = arith.constant 0 : i32
    %c0_i32_0 = arith.constant 0 : i32
    %c0_i32_1 = arith.constant 0 : i32
    return %c0_i32, %c0_i32_0 : i32, i32
  }
  func.func @transform_5(%arg0: i32, %arg1: i32) -> (i32, i32) {
    %c0_i32 = arith.constant 0 : i32
    %c0_i32_0 = arith.constant 0 : i32
    %c0_i32_1 = arith.constant 0 : i32
    return %c0_i32, %c0_i32_0 : i32, i32
  }
  func.func @transform_6(%arg0: i32, %arg1: i32) -> (i32, i32) {
    %c0_i32 = arith.constant 0 : i32
    %c0_i32_0 = arith.constant 0 : i32
    %c0_i32_1 = arith.constant 0 : i32
    return %c0_i32, %c0_i32_0 : i32, i32
  }
  func.func @transform_7(%arg0: i32, %arg1: i32) -> (i32, i32) {
    %c0_i32 = arith.constant 0 : i32
    %c0_i32_0 = arith.constant 0 : i32
    %c0_i32_1 = arith.constant 0 : i32
    return %c0_i32, %c0_i32_0 : i32, i32
  }
  func.func @transform_8(%arg0: i32, %arg1: i32) -> (i32, i32) {
    %c0_i32 = arith.constant 0 : i32
    %c0_i32_0 = arith.constant 0 : i32
    %c0_i32_1 = arith.constant 0 : i32
    return %c0_i32, %c0_i32_0 : i32, i32
  }
  func.func @transform_9(%arg0: i32, %arg1: i32) -> (i32, i32) {
    %c0_i32 = arith.constant 0 : i32
    %c0_i32_0 = arith.constant 0 : i32
    %c0_i32_1 = arith.constant 0 : i32
    return %c0_i32, %c0_i32_0 : i32, i32
  }
  func.func @transform_10(%arg0: i32, %arg1: i32) -> (i32, i32) {
    %c0_i32 = arith.constant 0 : i32
    %c0_i32_0 = arith.constant 0 : i32
    %c0_i32_1 = arith.constant 0 : i32
    return %c0_i32, %c0_i32_0 : i32, i32
  }
  func.func @transform_11(%arg0: i32, %arg1: i32) -> (i32, i32) {
    %c0_i32 = arith.constant 0 : i32
    %c0_i32_0 = arith.constant 0 : i32
    %c0_i32_1 = arith.constant 0 : i32
    return %c0_i32, %c0_i32_0 : i32, i32
  }
  func.func @transform_12(%arg0: i32, %arg1: i32) -> (i32, i32, i32) {
    %c0_i32 = arith.constant 0 : i32
    %c0_i32_0 = arith.constant 0 : i32
    return %arg0, %c0_i32, %arg1 : i32, i32, i32
  }
  func.func @transform_13(%arg0: i32, %arg1: i32) -> (i32, i32) {
    %c0_i32 = arith.constant 0 : i32
    %c0_i32_0 = arith.constant 0 : i32
    return %arg0, %c0_i32 : i32, i32
  }
}

</mosaic_0001>

<llo_original>
// kernel: mtlnet_forward.1
$region0: #{mtlnet_forward.1}
  #allocation0 [shape = 'u32[]', space=smem, size = 0x4, offset = 0x4, fixed_abs, tag = 'smem constant byte address 0x4 - core index']
  #allocation1 [shape = 'u32[144,128]{1,0:T(1,128)}', space=vmem, size = 0x12000, scoped, tag = 'internal scratch']
  #allocation2 [shape = 'f32[8,896]{1,0:T(8,128)}', space=vmem, size = 0x7000, scoped, tag = 'scratch operand']
  %s0 = inlined_call_operand.vmem [shape: f32[8,256], index: 0, kind: input, shape index: {}]
  %s1 = inlined_call_operand.vmem [shape: f32[1,14,1], index: 1, kind: input, shape index: {}]
  %s2 = inlined_call_operand.vmem [shape: f32[1,14,1], index: 2, kind: input, shape index: {}]
  %s3 = inlined_call_operand.hbm [shape: bf16[256,896], index: 3, kind: input, shape index: {}]
  %s4 = inlined_call_operand.hbm [shape: f32[896,512], index: 4, kind: input, shape index: {}]
  %s5 = inlined_call_operand.hbm [shape: f32[1,512], index: 5, kind: input, shape index: {}]
  %s6 = inlined_call_operand.hbm [shape: f32[512,512], index: 6, kind: input, shape index: {}]
  %s7 = inlined_call_operand.hbm [shape: f32[1,512], index: 7, kind: input, shape index: {}]
  %s8 = inlined_call_operand.hbm [shape: f32[512,256], index: 8, kind: input, shape index: {}]
  %s9 = inlined_call_operand.hbm [shape: f32[1,256], index: 9, kind: input, shape index: {}]
  %s10 = inlined_call_operand.hbm [shape: f32[256,128], index: 10, kind: input, shape index: {}]
  %s11 = inlined_call_operand.hbm [shape: f32[1,128], index: 11, kind: input, shape index: {}]
  %s12 = inlined_call_operand.vmem [shape: f32[8,14,256], index: 12, kind: output, shape index: {0}]
  %s13 = inlined_call_operand.vmem [shape: f32[8,128], index: 13, kind: output, shape index: {1}]
  %14 = xla_tuple %s12, %s13
  %s15 = sld [smem:[#allocation0]]
  $region110: #{mtlnet_forward.1} parent=0
    _
  %s17 = ssub.s32 1, %s15
  %s18 = scalar_select 0, %s17, %s15
  $region1: #{mtlnet_forward.1} parent=0
    #allocation3 [shape = 'u8[458752]{0}', space=vmem, size = 0x70000, scoped, tag = 'input window, operand 3, single buffered']
    #allocation4 [shape = 's32[1]{0}', space=sflag, size = 0x4, scoped, tag = 'scoped memory for mtlnet_forward.1']
    #allocation5 [shape = 'u8[1835008]{0}', space=vmem, size = 0x1c0000, scoped, tag = 'input window, operand 4, single buffered']
    #allocation6 [shape = 's32[1]{0}', space=sflag, size = 0x4, scoped, tag = 'scoped memory for mtlnet_forward.1']
    #allocation7 [shape = 'u8[2048]{0}', space=vmem, size = 0x800, scoped, tag = 'input window, operand 5, single buffered']
    #allocation8 [shape = 'u8[1048576]{0}', space=vmem, size = 0x100000, scoped, tag = 'input window, operand 6, single buffered']
    #allocation9 [shape = 's32[1]{0}', space=sflag, size = 0x4, scoped, tag = 'scoped memory for mtlnet_forward.1']
    #allocation10 [shape = 'u8[2048]{0}', space=vmem, size = 0x800, scoped, tag = 'input window, operand 7, single buffered']
    #allocation11 [shape = 'u8[524288]{0}', space=vmem, size = 0x80000, scoped, tag = 'input window, operand 8, single buffered']
    #allocation12 [shape = 's32[1]{0}', space=sflag, size = 0x4, scoped, tag = 'scoped memory for mtlnet_forward.1']
    #allocation13 [shape = 'u8[1024]{0}', space=vmem, size = 0x400, scoped, tag = 'input window, operand 9, single buffered']
    #allocation14 [shape = 'u8[131072]{0}', space=vmem, size = 0x20000, scoped, tag = 'input window, operand 10, single buffered']
    #allocation15 [shape = 's32[1]{0}', space=sflag, size = 0x4, scoped, tag = 'scoped memory for mtlnet_forward.1']
    #allocation16 [shape = 'u8[512]{0}', space=vmem, size = 0x400, scoped, tag = 'input window, operand 11, single buffered']
    %19 = vsyncpa [#allocation4], 0
    %20 = vsyncpa [#allocation6], 0
    %21 = vsyncpa [#allocation9], 0
    %22 = vsyncpa [#allocation12], 0
    %23 = vsyncpa [#allocation15], 0
    // Predicated region
    $region2: #{mtlnet_forward.1} parent=1 // pred_check
      _
    $region3: #{mtlnet_forward.1} parent=1 // pred_check_branch
      %25 = sbr.rel (0) target = $region5
    $region4: #{mtlnet_forward.1} parent=1 // pred_region
      _
    $region5: #{mtlnet_forward.1} parent=1 // pred_fallthru
      _
    // Predicated region
    $region6: #{mtlnet_forward.1} parent=1 // pred_check
      _
    $region7: #{mtlnet_forward.1} parent=1 // pred_check_branch
      %27 = sbr.rel (0) target = $region9
    $region8: #{mtlnet_forward.1} parent=1 // pred_region
      _
    $region9: #{mtlnet_forward.1} parent=1 // pred_fallthru
      _
    // Predicated region
    $region10: #{mtlnet_forward.1} parent=1 // pred_check
      _
    $region11: #{mtlnet_forward.1} parent=1 // pred_check_branch
      %29 = sbr.rel (0) target = $region13
    $region12: #{mtlnet_forward.1} parent=1 // pred_region
      _
    $region13: #{mtlnet_forward.1} parent=1 // pred_fallthru
      _
    // Predicated region
    $region14: #{mtlnet_forward.1} parent=1 // pred_check
      _
    $region15: #{mtlnet_forward.1} parent=1 // pred_check_branch
      %31 = sbr.rel (0) target = $region17
    $region16: #{mtlnet_forward.1} parent=1 // pred_region
      %s33 = ssub.s32 14336, 14336
      %34 = vsyncadd [#allocation4], %s33
      %s35 = sshll.u32 [#allocation3], 4
      %s36 = int_to_ptr.vmem [resolvable:$true] %s35
      %41 = dma.hbm_to_vmem [thread:$0]  %s3, 14336, %s36, [#allocation4], 448, 448, 28
    $region17: #{mtlnet_forward.1} parent=1 // pred_fallthru
      _
    // Predicated region
    $region18: #{mtlnet_forward.1} parent=1 // pred_check
      _
    $region19: #{mtlnet_forward.1} parent=1 // pred_check_branch
      %43 = sbr.rel (0) target = $region21
    $region20: #{mtlnet_forward.1} parent=1 // pred_region
      %s45 = ssub.s32 57344, 57344
      %46 = vsyncadd [#allocation6], %s45
      %s47 = sshll.u32 [#allocation5], 4
      %s48 = int_to_ptr.vmem [resolvable:$true] %s47
      %53 = dma.hbm_to_vmem [thread:$0]  %s4, 57344, %s48, [#allocation6], 512, 512, 32
    $region21: #{mtlnet_forward.1} parent=1 // pred_fallthru
      _
    // Predicated region
    $region22: #{mtlnet_forward.1} parent=1 // pred_check
      _
    $region23: #{mtlnet_forward.1} parent=1 // pred_check_branch
      %55 = sbr.rel (0) target = $region25
    $region24: #{mtlnet_forward.1} parent=1 // pred_region
      %s57 = ssub.s32 64, 64
      %58 = vsyncadd [#allocation6], %s57
      %s60 = sshll.u32 [#allocation7], 4
      %s61 = int_to_ptr.vmem [resolvable:$true] %s60
      %63 = dma.hbm_to_vmem [thread:$0]  %s5, 64, %s61, [#allocation6]
    $region25: #{mtlnet_forward.1} parent=1 // pred_fallthru
      _
    // Predicated region
    $region26: #{mtlnet_forward.1} parent=1 // pred_check
      _
    $region27: #{mtlnet_forward.1} parent=1 // pred_check_branch
      %65 = sbr.rel (0) target = $region29
    $region28: #{mtlnet_forward.1} parent=1 // pred_region
      %s67 = ssub.s32 32768, 32768
      %68 = vsyncadd [#allocation9], %s67
      %s69 = sshll.u32 [#allocation8], 4
      %s70 = int_to_ptr.vmem [resolvable:$true] %s69
      %75 = dma.hbm_to_vmem [thread:$0]  %s6, 32768, %s70, [#allocation9], 512, 512, 32
    $region29: #{mtlnet_forward.1} parent=1 // pred_fallthru
      _
    // Predicated region
    $region30: #{mtlnet_forward.1} parent=1 // pred_check
      _
    $region31: #{mtlnet_forward.1} parent=1 // pred_check_branch
      %77 = sbr.rel (0) target = $region33
    $region32: #{mtlnet_forward.1} parent=1 // pred_region
      %s79 = ssub.s32 64, 64
      %80 = vsyncadd [#allocation9], %s79
      %s82 = sshll.u32 [#allocation10], 4
      %s83 = int_to_ptr.vmem [resolvable:$true] %s82
      %85 = dma.hbm_to_vmem [thread:$0]  %s7, 64, %s83, [#allocation9]
    $region33: #{mtlnet_forward.1} parent=1 // pred_fallthru
      _
    // Predicated region
    $region34: #{mtlnet_forward.1} parent=1 // pred_check
      _
    $region35: #{mtlnet_forward.1} parent=1 // pred_check_branch
      %87 = sbr.rel (0) target = $region37
    $region36: #{mtlnet_forward.1} parent=1 // pred_region
      %s89 = ssub.s32 16384, 16384
      %90 = vsyncadd [#allocation12], %s89
      %s91 = sshll.u32 [#allocation11], 4
      %s92 = int_to_ptr.vmem [resolvable:$true] %s91
      %97 = dma.hbm_to_vmem [thread:$0]  %s8, 16384, %s92, [#allocation12], 256, 256, 16
    $region37: #{mtlnet_forward.1} parent=1 // pred_fallthru
      _
    // Predicated region
    $region38: #{mtlnet_forward.1} parent=1 // pred_check
      _
    $region39: #{mtlnet_forward.1} parent=1 // pred_check_branch
      %99 = sbr.rel (0) target = $region41
    $region40: #{mtlnet_forward.1} parent=1 // pred_region
      %s101 = ssub.s32 32, 32
      %102 = vsyncadd [#allocation12], %s101
      %s104 = sshll.u32 [#allocation13], 4
      %s105 = int_to_ptr.vmem [resolvable:$true] %s104
      %107 = dma.hbm_to_vmem [thread:$0]  %s9, 32, %s105, [#allocation12]
    $region41: #{mtlnet_forward.1} parent=1 // pred_fallthru
      _
    // Predicated region
    $region42: #{mtlnet_forward.1} parent=1 // pred_check
      _
    $region43: #{mtlnet_forward.1} parent=1 // pred_check_branch
      %109 = sbr.rel (0) target = $region45
    $region44: #{mtlnet_forward.1} parent=1 // pred_region
      %s111 = ssub.s32 4096, 4096
      %112 = vsyncadd [#allocation15], %s111
      %s113 = sshll.u32 [#allocation14], 4
      %s114 = int_to_ptr.vmem [resolvable:$true] %s113
      %119 = dma.hbm_to_vmem [thread:$0]  %s10, 4096, %s114, [#allocation15], 128, 128, 8
    $region45: #{mtlnet_forward.1} parent=1 // pred_fallthru
      _
    // Predicated region
    $region46: #{mtlnet_forward.1} parent=1 // pred_check
      _
    $region47: #{mtlnet_forward.1} parent=1 // pred_check_branch
      %121 = sbr.rel (0) target = $region49
    $region48: #{mtlnet_forward.1} parent=1 // pred_region
      %s123 = ssub.s32 16, 16
      %124 = vsyncadd [#allocation15], %s123
      %s126 = sshll.u32 [#allocation16], 4
      %s127 = int_to_ptr.vmem [resolvable:$true] %s126
      %129 = dma.hbm_to_vmem [thread:$0]  %s11, 16, %s127, [#allocation15]
    $region49: #{mtlnet_forward.1} parent=1 // pred_fallthru
      _
    // Predicated region
    $region50: #{mtlnet_forward.1} parent=1 // pred_check
      _
    $region51: #{mtlnet_forward.1} parent=1 // pred_check_branch
      %131 = sbr.rel (0) target = $region53
    $region52: #{mtlnet_forward.1} parent=1 // pred_region
      %132 = dma.done [#allocation4], 14336
    $region53: #{mtlnet_forward.1} parent=1 // pred_fallthru
      _
    // Predicated region
    $region54: #{mtlnet_forward.1} parent=1 // pred_check
      _
    $region55: #{mtlnet_forward.1} parent=1 // pred_check_branch
      %134 = sbr.rel (0) target = $region57
    $region56: #{mtlnet_forward.1} parent=1 // pred_region
      %135 = dma.done [#allocation6], 57344
    $region57: #{mtlnet_forward.1} parent=1 // pred_fallthru
      _
    // Predicated region
    $region58: #{mtlnet_forward.1} parent=1 // pred_check
      _
    $region59: #{mtlnet_forward.1} parent=1 // pred_check_branch
      %137 = sbr.rel (0) target = $region61
    $region60: #{mtlnet_forward.1} parent=1 // pred_region
      %138 = dma.done [#allocation6], 64
    $region61: #{mtlnet_forward.1} parent=1 // pred_fallthru
      _
    // Predicated region
    $region62: #{mtlnet_forward.1} parent=1 // pred_check
      _
    $region63: #{mtlnet_forward.1} parent=1 // pred_check_branch
      %140 = sbr.rel (0) target = $region65
    $region64: #{mtlnet_forward.1} parent=1 // pred_region
      %141 = dma.done [#allocation9], 32768
    $region65: #{mtlnet_forward.1} parent=1 // pred_fallthru
      _
    // Predicated region
    $region66: #{mtlnet_forward.1} parent=1 // pred_check
      _
    $region67: #{mtlnet_forward.1} parent=1 // pred_check_branch
      %143 = sbr.rel (0) target = $region69
    $region68: #{mtlnet_forward.1} parent=1 // pred_region
      %144 = dma.done [#allocation9], 64
    $region69: #{mtlnet_forward.1} parent=1 // pred_fallthru
      _
    // Predicated region
    $region70: #{mtlnet_forward.1} parent=1 // pred_check
      _
    $region71: #{mtlnet_forward.1} parent=1 // pred_check_branch
      %146 = sbr.rel (0) target = $region73
    $region72: #{mtlnet_forward.1} parent=1 // pred_region
      %147 = dma.done [#allocation12], 16384
    $region73: #{mtlnet_forward.1} parent=1 // pred_fallthru
      _
    // Predicated region
    $region74: #{mtlnet_forward.1} parent=1 // pred_check
      _
    $region75: #{mtlnet_forward.1} parent=1 // pred_check_branch
      %149 = sbr.rel (0) target = $region77
    $region76: #{mtlnet_forward.1} parent=1 // pred_region
      %150 = dma.done [#allocation12], 32
    $region77: #{mtlnet_forward.1} parent=1 // pred_fallthru
      _
    // Predicated region
    $region78: #{mtlnet_forward.1} parent=1 // pred_check
      _
    $region79: #{mtlnet_forward.1} parent=1 // pred_check_branch
      %152 = sbr.rel (0) target = $region81
    $region80: #{mtlnet_forward.1} parent=1 // pred_region
      %153 = dma.done [#allocation15], 4096
    $region81: #{mtlnet_forward.1} parent=1 // pred_fallthru
      _
    // Predicated region
    $region82: #{mtlnet_forward.1} parent=1 // pred_check
      _
    $region83: #{mtlnet_forward.1} parent=1 // pred_check_branch
      %155 = sbr.rel (0) target = $region85
    $region84: #{mtlnet_forward.1} parent=1 // pred_region
      %156 = dma.done [#allocation15], 16
    $region85: #{mtlnet_forward.1} parent=1 // pred_fallthru
      _
    %v158 = vld [vmem:[%s0] sm:$0xff]
    %v159 = vld [vmem:[%s0 + $0x8] sm:$0xff]
    %v162 = vcombine.low %v158, %v159
    %v163 = vcombine.high %v158, %v159
    %v165 = vunpack.c.l.s4 1966171168
    %v166 = vunpack.c.0.s8 %v165
    %v167 = vlaneseq
    %v168 = vshrl.u32 %v167, 7
    %v169 = vsub.s32 %v166, %v168
    %v170 = vrot.slane %v162, %v169
    %v172 = vunpack.c.l.s4 1966171168
    %v173 = vunpack.c.0.s8 %v172
    %v174 = vlaneseq
    %v175 = vshrl.u32 %v174, 7
    %v176 = vsub.s32 %v173, %v175
    %v177 = vrot.slane %v163, %v176
    %v178 = vcombine.high %v170, %v170
    %v179 = vcombine.high %v177, %v177
    %v181 = vunpack.c.l.s4 1966171168
    %v182 = vunpack.c.0.s8 %v181
    %v183 = vlaneseq
    %v184 = vshrl.u32 %v183, 7
    %v185 = vsub.s32 %v182, %v184
    %v186 = vrot.slane %v170, %v185
    %v188 = vunpack.c.l.s4 1966171168
    %v189 = vunpack.c.0.s8 %v188
    %v190 = vlaneseq
    %v191 = vshrl.u32 %v190, 7
    %v192 = vsub.s32 %v189, %v191
    %v193 = vrot.slane %v177, %v192
    %v195 = vunpack.c.l.s4 1966171168
    %v196 = vunpack.c.0.s8 %v195
    %v197 = vlaneseq
    %v198 = vshrl.u32 %v197, 7
    %v199 = vsub.s32 %v196, %v198
    %v200 = vrot.slane %v178, %v199
    %v202 = vunpack.c.l.s4 1966171168
    %v203 = vunpack.c.0.s8 %v202
    %v204 = vlaneseq
    %v205 = vshrl.u32 %v204, 7
    %v206 = vsub.s32 %v203, %v205
    %v207 = vrot.slane %v179, %v206
    %v208 = vcombine.high %v186, %v186
    %v209 = vcombine.high %v193, %v193
    %v210 = vcombine.high %v200, %v200
    %v211 = vcombine.high %v207, %v207
    %v212 = vld [vmem:[%s1] sm:$0xff]
    %v213 = vld [vmem:[%s1 + $0x8] sm:$0x3f]
    %v214 = vlaneseq
    %v215 = vshrl.u32 %v214, 7
    %v216 = vsub.s32 0, %v215
    %v217 = vrot.slane %v186, %v216
    %v218 = vlaneseq
    %v219 = vshrl.u32 %v218, 7
    %v220 = vsub.s32 1, %v219
    %v221 = vrot.slane %v186, %v220
    %v222 = vlaneseq
    %v223 = vshrl.u32 %v222, 7
    %v224 = vsub.s32 0, %v223
    %v225 = vrot.slane %v200, %v224
    %v226 = vlaneseq
    %v227 = vshrl.u32 %v226, 7
    %v228 = vsub.s32 1, %v227
    %v229 = vrot.slane %v200, %v228
    %v230 = vlaneseq
    %v231 = vshrl.u32 %v230, 7
    %v232 = vsub.s32 0, %v231
    %v233 = vrot.slane %v208, %v232
    %v234 = vlaneseq
    %v235 = vshrl.u32 %v234, 7
    %v236 = vsub.s32 1, %v235
    %v237 = vrot.slane %v208, %v236
    %v238 = vlaneseq
    %v239 = vshrl.u32 %v238, 7
    %v240 = vsub.s32 0, %v239
    %v241 = vrot.slane %v210, %v240
    %v242 = vlaneseq
    %v243 = vshrl.u32 %v242, 7
    %v244 = vsub.s32 1, %v243
    %v245 = vrot.slane %v210, %v244
    %v246 = vlaneseq
    %v247 = vshrl.u32 %v246, 7
    %v248 = vsub.s32 0, %v247
    %v249 = vrot.slane %v193, %v248
    %v250 = vlaneseq
    %v251 = vshrl.u32 %v250, 7
    %v252 = vsub.s32 1, %v251
    %v253 = vrot.slane %v193, %v252
    %v254 = vlaneseq
    %v255 = vshrl.u32 %v254, 7
    %v256 = vsub.s32 0, %v255
    %v257 = vrot.slane %v207, %v256
    %v258 = vlaneseq
    %v259 = vshrl.u32 %v258, 7
    %v260 = vsub.s32 1, %v259
    %v261 = vrot.slane %v207, %v260
    %v262 = vlaneseq
    %v263 = vshrl.u32 %v262, 7
    %v264 = vsub.s32 0, %v263
    %v265 = vrot.slane %v209, %v264
    %v266 = vlaneseq
    %v267 = vshrl.u32 %v266, 7
    %v268 = vsub.s32 1, %v267
    %v269 = vrot.slane %v209, %v268
    %v270 = vlaneseq
    %v271 = vshrl.u32 %v270, 7
    %v272 = vsub.s32 0, %v271
    %v273 = vrot.slane %v211, %v272
    %v274 = vlaneseq
    %v275 = vshrl.u32 %v274, 7
    %v276 = vsub.s32 1, %v275
    %v277 = vrot.slane %v211, %v276
    %295 = vset.pattern.permute.xlu0 0
    %296 = vperm.xlu0 %295, %v212
    %v297 = vpop.permute.xlu0 %296
    %300 = vset.pattern.permute.xlu0 0
    %301 = vperm.xlu0 %300, %v213
    %v302 = vpop.permute.xlu0 %301
    %v304 = vmul.f32 %v217, %v297
    %v305 = vmul.f32 %v221, %v297
    %v306 = vmul.f32 %v217, %v302
    %v307 = vmul.f32 %v221, %v302
    %v308 = vmul.f32 %v225, %v297
    %v309 = vmul.f32 %v229, %v297
    %v310 = vmul.f32 %v225, %v302
    %v311 = vmul.f32 %v229, %v302
    %v312 = vmul.f32 %v233, %v297
    %v313 = vmul.f32 %v237, %v297
    %v314 = vmul.f32 %v233, %v302
    %v315 = vmul.f32 %v237, %v302
    %v316 = vmul.f32 %v241, %v297
    %v317 = vmul.f32 %v245, %v297
    %v318 = vmul.f32 %v241, %v302
    %v319 = vmul.f32 %v245, %v302
    %v320 = vmul.f32 %v249, %v297
    %v321 = vmul.f32 %v253, %v297
    %v322 = vmul.f32 %v249, %v302
    %v323 = vmul.f32 %v253, %v302
    %v324 = vmul.f32 %v257, %v297
    %v325 = vmul.f32 %v261, %v297
    %v326 = vmul.f32 %v257, %v302
    %v327 = vmul.f32 %v261, %v302
    %v328 = vmul.f32 %v265, %v297
    %v329 = vmul.f32 %v269, %v297
    %v330 = vmul.f32 %v265, %v302
    %v331 = vmul.f32 %v269, %v302
    %v332 = vmul.f32 %v273, %v297
    %v333 = vmul.f32 %v277, %v297
    %v334 = vmul.f32 %v273, %v302
    %v335 = vmul.f32 %v277, %v302
    %v336 = vld [vmem:[%s2] sm:$0xff]
    %v337 = vld [vmem:[%s2 + $0x8] sm:$0x3f]
    %339 = vset.pattern.permute.xlu0 0
    %340 = vperm.xlu0 %339, %v336
    %v341 = vpop.permute.xlu0 %340
    %344 = vset.pattern.permute.xlu0 0
    %345 = vperm.xlu0 %344, %v337
    %v346 = vpop.permute.xlu0 %345
    %v348 = vadd.f32 %v304, %v341
    %v349 = vadd.f32 %v305, %v341
    %v350 = vadd.f32 %v306, %v346
    %v351 = vadd.f32 %v307, %v346
    %v352 = vadd.f32 %v308, %v341
    %v353 = vadd.f32 %v309, %v341
    %v354 = vadd.f32 %v310, %v346
    %v355 = vadd.f32 %v311, %v346
    %v356 = vadd.f32 %v312, %v341
    %v357 = vadd.f32 %v313, %v341
    %v358 = vadd.f32 %v314, %v346
    %v359 = vadd.f32 %v315, %v346
    %v360 = vadd.f32 %v316, %v341
    %v361 = vadd.f32 %v317, %v341
    %v362 = vadd.f32 %v318, %v346
    %v363 = vadd.f32 %v319, %v346
    %v364 = vadd.f32 %v320, %v341
    %v365 = vadd.f32 %v321, %v341
    %v366 = vadd.f32 %v322, %v346
    %v367 = vadd.f32 %v323, %v346
    %v368 = vadd.f32 %v324, %v341
    %v369 = vadd.f32 %v325, %v341
    %v370 = vadd.f32 %v326, %v346
    %v371 = vadd.f32 %v327, %v346
    %v372 = vadd.f32 %v328, %v341
    %v373 = vadd.f32 %v329, %v341
    %v374 = vadd.f32 %v330, %v346
    %v375 = vadd.f32 %v331, %v346
    %v376 = vadd.f32 %v332, %v341
    %v377 = vadd.f32 %v333, %v341
    %v378 = vadd.f32 %v334, %v346
    %v379 = vadd.f32 %v335, %v346
    %380 = vst [vmem:[%s12] sm:$0xff] %v348
    %381 = vst [vmem:[%s12 + $0x8] sm:$0xff] %v349
    %382 = vst [vmem:[%s12 + $0x10] sm:$0x3f] %v350
    %383 = vst [vmem:[%s12 + $0x18] sm:$0x3f] %v351
    %384 = vst [vmem:[%s12 + $0x20] sm:$0xff] %v352
    %385 = vst [vmem:[%s12 + $0x28] sm:$0xff] %v353
    %386 = vst [vmem:[%s12 + $0x30] sm:$0x3f] %v354
    %387 = vst [vmem:[%s12 + $0x38] sm:$0x3f] %v355
    %388 = vst [vmem:[%s12 + $0x40] sm:$0xff] %v356
    %389 = vst [vmem:[%s12 + $0x48] sm:$0xff] %v357
    %390 = vst [vmem:[%s12 + $0x50] sm:$0x3f] %v358
    %391 = vst [vmem:[%s12 + $0x58] sm:$0x3f] %v359
    %392 = vst [vmem:[%s12 + $0x60] sm:$0xff] %v360
    %393 = vst [vmem:[%s12 + $0x68] sm:$0xff] %v361
    %394 = vst [vmem:[%s12 + $0x70] sm:$0x3f] %v362
    %395 = vst [vmem:[%s12 + $0x78] sm:$0x3f] %v363
    %396 = vst [vmem:[%s12 + $0x80] sm:$0xff] %v364
    %397 = vst [vmem:[%s12 + $0x88] sm:$0xff] %v365
    %398 = vst [vmem:[%s12 + $0x90] sm:$0x3f] %v366
    %399 = vst [vmem:[%s12 + $0x98] sm:$0x3f] %v367
    %400 = vst [vmem:[%s12 + $0xa0] sm:$0xff] %v368
    %401 = vst [vmem:[%s12 + $0xa8] sm:$0xff] %v369
    %402 = vst [vmem:[%s12 + $0xb0] sm:$0x3f] %v370
    %403 = vst [vmem:[%s12 + $0xb8] sm:$0x3f] %v371
    %404 = vst [vmem:[%s12 + $0xc0] sm:$0xff] %v372
    %405 = vst [vmem:[%s12 + $0xc8] sm:$0xff] %v373
    %406 = vst [vmem:[%s12 + $0xd0] sm:$0x3f] %v374
    %407 = vst [vmem:[%s12 + $0xd8] sm:$0x3f] %v375
    %408 = vst [vmem:[%s12 + $0xe0] sm:$0xff] %v376
    %409 = vst [vmem:[%s12 + $0xe8] sm:$0xff] %v377
    %410 = vst [vmem:[%s12 + $0xf0] sm:$0x3f] %v378
    %411 = vst [vmem:[%s12 + $0xf8] sm:$0x3f] %v379
    %v412 = vpack.c.bf16 %v158, %v158
    %v413 = vpack.c.bf16 %v159, %v159
    %v414 = vld [vmem:[#allocation3] sm:$0xff]
    %v415 = vld [vmem:[#allocation3 + $0x8] sm:$0xff]
    %v416 = vld [vmem:[#allocation3 + $0x10] sm:$0xff]
    %v417 = vld [vmem:[#allocation3 + $0x18] sm:$0xf]
    %v418 = vld [vmem:[#allocation3 + $0x1c] sm:$0xff]
    %v419 = vld [vmem:[#allocation3 + $0x24] sm:$0xff]
    %v420 = vld [vmem:[#allocation3 + $0x2c] sm:$0xff]
    %v421 = vld [vmem:[#allocation3 + $0x34] sm:$0xf]
    %v422 = vld [vmem:[#allocation3 + $0x38] sm:$0xff]
    %v423 = vld [vmem:[#allocation3 + $0x40] sm:$0xff]
    %v424 = vld [vmem:[#allocation3 + $0x48] sm:$0xff]
    %v425 = vld [vmem:[#allocation3 + $0x50] sm:$0xf]
    %v426 = vld [vmem:[#allocation3 + $0x54] sm:$0xff]
    %v427 = vld [vmem:[#allocation3 + $0x5c] sm:$0xff]
    %v428 = vld [vmem:[#allocation3 + $0x64] sm:$0xff]
    %v429 = vld [vmem:[#allocation3 + $0x6c] sm:$0xf]
    %v430 = vld [vmem:[#allocation3 + $0x70] sm:$0xff]
    %v431 = vld [vmem:[#allocation3 + $0x78] sm:$0xff]
    %v432 = vld [vmem:[#allocation3 + $0x80] sm:$0xff]
    %v433 = vld [vmem:[#allocation3 + $0x88] sm:$0xf]
    %v434 = vld [vmem:[#allocation3 + $0x8c] sm:$0xff]
    %v435 = vld [vmem:[#allocation3 + $0x94] sm:$0xff]
    %v436 = vld [vmem:[#allocation3 + $0x9c] sm:$0xff]
    %v437 = vld [vmem:[#allocation3 + $0xa4] sm:$0xf]
    %v438 = vld [vmem:[#allocation3 + $0xa8] sm:$0xff]
    %v439 = vld [vmem:[#allocation3 + $0xb0] sm:$0xff]
    %v440 = vld [vmem:[#allocation3 + $0xb8] sm:$0xff]
    %v441 = vld [vmem:[#allocation3 + $0xc0] sm:$0xf]
    %v442 = vld [vmem:[#allocation3 + $0xc4] sm:$0xff]
    %v443 = vld [vmem:[#allocation3 + $0xcc] sm:$0xff]
    %v444 = vld [vmem:[#allocation3 + $0xd4] sm:$0xff]
    %v445 = vld [vmem:[#allocation3 + $0xdc] sm:$0xf]
    %v446 = vld [vmem:[#allocation3 + $0xe0] sm:$0xff]
    %v447 = vld [vmem:[#allocation3 + $0xe8] sm:$0xff]
    %v448 = vld [vmem:[#allocation3 + $0xf0] sm:$0xff]
    %v449 = vld [vmem:[#allocation3 + $0xf8] sm:$0xf]
    %v450 = vld [vmem:[#allocation3 + $0xfc] sm:$0xff]
    %v451 = vld [vmem:[#allocation3 + $0x104] sm:$0xff]
    %v452 = vld [vmem:[#allocation3 + $0x10c] sm:$0xff]
    %v453 = vld [vmem:[#allocation3 + $0x114] sm:$0xf]
    %v454 = vld [vmem:[#allocation3 + $0x118] sm:$0xff]
    %v455 = vld [vmem:[#allocation3 + $0x120] sm:$0xff]
    %v456 = vld [vmem:[#allocation3 + $0x128] sm:$0xff]
    %v457 = vld [vmem:[#allocation3 + $0x130] sm:$0xf]
    %v458 = vld [vmem:[#allocation3 + $0x134] sm:$0xff]
    %v459 = vld [vmem:[#allocation3 + $0x13c] sm:$0xff]
    %v460 = vld [vmem:[#allocation3 + $0x144] sm:$0xff]
    %v461 = vld [vmem:[#allocation3 + $0x14c] sm:$0xf]
    %v462 = vld [vmem:[#allocation3 + $0x150] sm:$0xff]
    %v463 = vld [vmem:[#allocation3 + $0x158] sm:$0xff]
    %v464 = vld [vmem:[#allocation3 + $0x160] sm:$0xff]
    %v465 = vld [vmem:[#allocation3 + $0x168] sm:$0xf]
    %v466 = vld [vmem:[#allocation3 + $0x16c] sm:$0xff]
    %v467 = vld [vmem:[#allocation3 + $0x174] sm:$0xff]
    %v468 = vld [vmem:[#allocation3 + $0x17c] sm:$0xff]
    %v469 = vld [vmem:[#allocation3 + $0x184] sm:$0xf]
    %v470 = vld [vmem:[#allocation3 + $0x188] sm:$0xff]
    %v471 = vld [vmem:[#allocation3 + $0x190] sm:$0xff]
    %v472 = vld [vmem:[#allocation3 + $0x198] sm:$0xff]
    %v473 = vld [vmem:[#allocation3 + $0x1a0] sm:$0xf]
    %v474 = vld [vmem:[#allocation3 + $0x1a4] sm:$0xff]
    %v475 = vld [vmem:[#allocation3 + $0x1ac] sm:$0xff]
    %v476 = vld [vmem:[#allocation3 + $0x1b4] sm:$0xff]
    %v477 = vld [vmem:[#allocation3 + $0x1bc] sm:$0xf]
    %v478 = vld [vmem:[#allocation3 + $0x1c0] sm:$0xff]
    %v479 = vld [vmem:[#allocation3 + $0x1c8] sm:$0xff]
    %v480 = vld [vmem:[#allocation3 + $0x1d0] sm:$0xff]
    %v481 = vld [vmem:[#allocation3 + $0x1d8] sm:$0xf]
    %v482 = vld [vmem:[#allocation3 + $0x1dc] sm:$0xff]
    %v483 = vld [vmem:[#allocation3 + $0x1e4] sm:$0xff]
    %v484 = vld [vmem:[#allocation3 + $0x1ec] sm:$0xff]
    %v485 = vld [vmem:[#allocation3 + $0x1f4] sm:$0xf]
    %v486 = vld [vmem:[#allocation3 + $0x1f8] sm:$0xff]
    %v487 = vld [vmem:[#allocation3 + $0x200] sm:$0xff]
    %v488 = vld [vmem:[#allocation3 + $0x208] sm:$0xff]
    %v489 = vld [vmem:[#allocation3 + $0x210] sm:$0xf]
    %v490 = vld [vmem:[#allocation3 + $0x214] sm:$0xff]
    %v491 = vld [vmem:[#allocation3 + $0x21c] sm:$0xff]
    %v492 = vld [vmem:[#allocation3 + $0x224] sm:$0xff]
    %v493 = vld [vmem:[#allocation3 + $0x22c] sm:$0xf]
    %v494 = vld [vmem:[#allocation3 + $0x230] sm:$0xff]
    %v495 = vld [vmem:[#allocation3 + $0x238] sm:$0xff]
    %v496 = vld [vmem:[#allocation3 + $0x240] sm:$0xff]
    %v497 = vld [vmem:[#allocation3 + $0x248] sm:$0xf]
    %v498 = vld [vmem:[#allocation3 + $0x24c] sm:$0xff]
    %v499 = vld [vmem:[#allocation3 + $0x254] sm:$0xff]
    %v500 = vld [vmem:[#allocation3 + $0x25c] sm:$0xff]
    %v501 = vld [vmem:[#allocation3 + $0x264] sm:$0xf]
    %v502 = vld [vmem:[#allocation3 + $0x268] sm:$0xff]
    %v503 = vld [vmem:[#allocation3 + $0x270] sm:$0xff]
    %v504 = vld [vmem:[#allocation3 + $0x278] sm:$0xff]
    %v505 = vld [vmem:[#allocation3 + $0x280] sm:$0xf]
    %v506 = vld [vmem:[#allocation3 + $0x284] sm:$0xff]
    %v507 = vld [vmem:[#allocation3 + $0x28c] sm:$0xff]
    %v508 = vld [vmem:[#allocation3 + $0x294] sm:$0xff]
    %v509 = vld [vmem:[#allocation3 + $0x29c] sm:$0xf]
    %v510 = vld [vmem:[#allocation3 + $0x2a0] sm:$0xff]
    %v511 = vld [vmem:[#allocation3 + $0x2a8] sm:$0xff]
    %v512 = vld [vmem:[#allocation3 + $0x2b0] sm:$0xff]
    %v513 = vld [vmem:[#allocation3 + $0x2b8] sm:$0xf]
    %v514 = vld [vmem:[#allocation3 + $0x2bc] sm:$0xff]
    %v515 = vld [vmem:[#allocation3 + $0x2c4] sm:$0xff]
    %v516 = vld [vmem:[#allocation3 + $0x2cc] sm:$0xff]
    %v517 = vld [vmem:[#allocation3 + $0x2d4] sm:$0xf]
    %v518 = vld [vmem:[#allocation3 + $0x2d8] sm:$0xff]
    %v519 = vld [vmem:[#allocation3 + $0x2e0] sm:$0xff]
    %v520 = vld [vmem:[#allocation3 + $0x2e8] sm:$0xff]
    %v521 = vld [vmem:[#allocation3 + $0x2f0] sm:$0xf]
    %v522 = vld [vmem:[#allocation3 + $0x2f4] sm:$0xff]
    %v523 = vld [vmem:[#allocation3 + $0x2fc] sm:$0xff]
    %v524 = vld [vmem:[#allocation3 + $0x304] sm:$0xff]
    %v525 = vld [vmem:[#allocation3 + $0x30c] sm:$0xf]
    %v526 = vld [vmem:[#allocation3 + $0x310] sm:$0xff]
    %v527 = vld [vmem:[#allocation3 + $0x318] sm:$0xff]
    %v528 = vld [vmem:[#allocation3 + $0x320] sm:$0xff]
    %v529 = vld [vmem:[#allocation3 + $0x328] sm:$0xf]
    %v530 = vld [vmem:[#allocation3 + $0x32c] sm:$0xff]
    %v531 = vld [vmem:[#allocation3 + $0x334] sm:$0xff]
    %v532 = vld [vmem:[#allocation3 + $0x33c] sm:$0xff]
    %v533 = vld [vmem:[#allocation3 + $0x344] sm:$0xf]
    %v534 = vld [vmem:[#allocation3 + $0x348] sm:$0xff]
    %v535 = vld [vmem:[#allocation3 + $0x350] sm:$0xff]
    %v536 = vld [vmem:[#allocation3 + $0x358] sm:$0xff]
    %v537 = vld [vmem:[#allocation3 + $0x360] sm:$0xf]
    %v538 = vld [vmem:[#allocation3 + $0x364] sm:$0xff]
    %v539 = vld [vmem:[#allocation3 + $0x36c] sm:$0xff]
    %v540 = vld [vmem:[#allocation3 + $0x374] sm:$0xff]
    %v541 = vld [vmem:[#allocation3 + $0x37c] sm:$0xf]
    %v670 = vunpack.c.l.b16 %v414
    %v671 = vunpack.c.h.b16 %v414
    %v672 = vunpack.c.l.b16 %v415
    %v673 = vunpack.c.h.b16 %v415
    %v674 = vunpack.c.l.b16 %v416
    %v675 = vunpack.c.h.b16 %v416
    %v676 = vunpack.c.l.b16 %v417
    %v677 = vunpack.c.l.b16 %v418
    %v678 = vunpack.c.h.b16 %v418
    %v679 = vunpack.c.l.b16 %v419
    %v680 = vunpack.c.h.b16 %v419
    %v681 = vunpack.c.l.b16 %v420
    %v682 = vunpack.c.h.b16 %v420
    %v683 = vunpack.c.l.b16 %v421
    %v684 = vunpack.c.l.b16 %v422
    %v685 = vunpack.c.h.b16 %v422
    %v686 = vunpack.c.l.b16 %v423
    %v687 = vunpack.c.h.b16 %v423
    %v688 = vunpack.c.l.b16 %v424
    %v689 = vunpack.c.h.b16 %v424
    %v690 = vunpack.c.l.b16 %v425
    %v691 = vunpack.c.l.b16 %v426
    %v692 = vunpack.c.h.b16 %v426
    %v693 = vunpack.c.l.b16 %v427
    %v694 = vunpack.c.h.b16 %v427
    %v695 = vunpack.c.l.b16 %v428
    %v696 = vunpack.c.h.b16 %v428
    %v697 = vunpack.c.l.b16 %v429
    %v698 = vunpack.c.l.b16 %v430
    %v699 = vunpack.c.h.b16 %v430
    %v700 = vunpack.c.l.b16 %v431
    %v701 = vunpack.c.h.b16 %v431
    %v702 = vunpack.c.l.b16 %v432
    %v703 = vunpack.c.h.b16 %v432
    %v704 = vunpack.c.l.b16 %v433
    %v705 = vunpack.c.l.b16 %v434
    %v706 = vunpack.c.h.b16 %v434
    %v707 = vunpack.c.l.b16 %v435
    %v708 = vunpack.c.h.b16 %v435
    %v709 = vunpack.c.l.b16 %v436
    %v710 = vunpack.c.h.b16 %v436
    %v711 = vunpack.c.l.b16 %v437
    %v712 = vunpack.c.l.b16 %v438
    %v713 = vunpack.c.h.b16 %v438
    %v714 = vunpack.c.l.b16 %v439
    %v715 = vunpack.c.h.b16 %v439
    %v716 = vunpack.c.l.b16 %v440
    %v717 = vunpack.c.h.b16 %v440
    %v718 = vunpack.c.l.b16 %v441
    %v719 = vunpack.c.l.b16 %v442
    %v720 = vunpack.c.h.b16 %v442
    %v721 = vunpack.c.l.b16 %v443
    %v722 = vunpack.c.h.b16 %v443
    %v723 = vunpack.c.l.b16 %v444
    %v724 = vunpack.c.h.b16 %v444
    %v725 = vunpack.c.l.b16 %v445
    %v726 = vunpack.c.l.b16 %v446
    %v727 = vunpack.c.h.b16 %v446
    %v728 = vunpack.c.l.b16 %v447
    %v729 = vunpack.c.h.b16 %v447
    %v730 = vunpack.c.l.b16 %v448
    %v731 = vunpack.c.h.b16 %v448
    %v732 = vunpack.c.l.b16 %v449
    %v733 = vunpack.c.l.b16 %v450
    %v734 = vunpack.c.h.b16 %v450
    %v735 = vunpack.c.l.b16 %v451
    %v736 = vunpack.c.h.b16 %v451
    %v737 = vunpack.c.l.b16 %v452
    %v738 = vunpack.c.h.b16 %v452
    %v739 = vunpack.c.l.b16 %v453
    %v740 = vunpack.c.l.b16 %v454
    %v741 = vunpack.c.h.b16 %v454
    %v742 = vunpack.c.l.b16 %v455
    %v743 = vunpack.c.h.b16 %v455
    %v744 = vunpack.c.l.b16 %v456
    %v745 = vunpack.c.h.b16 %v456
    %v746 = vunpack.c.l.b16 %v457
    %v747 = vunpack.c.l.b16 %v458
    %v748 = vunpack.c.h.b16 %v458
    %v749 = vunpack.c.l.b16 %v459
    %v750 = vunpack.c.h.b16 %v459
    %v751 = vunpack.c.l.b16 %v460
    %v752 = vunpack.c.h.b16 %v460
    %v753 = vunpack.c.l.b16 %v461
    %v754 = vunpack.c.l.b16 %v462
    %v755 = vunpack.c.h.b16 %v462
    %v756 = vunpack.c.l.b16 %v463
    %v757 = vunpack.c.h.b16 %v463
    %v758 = vunpack.c.l.b16 %v464
    %v759 = vunpack.c.h.b16 %v464
    %v760 = vunpack.c.l.b16 %v465
    %v761 = vunpack.c.l.b16 %v466
    %v762 = vunpack.c.h.b16 %v466
    %v763 = vunpack.c.l.b16 %v467
    %v764 = vunpack.c.h.b16 %v467
    %v765 = vunpack.c.l.b16 %v468
    %v766 = vunpack.c.h.b16 %v468
    %v767 = vunpack.c.l.b16 %v469
    %v768 = vunpack.c.l.b16 %v470
    %v769 = vunpack.c.h.b16 %v470
    %v770 = vunpack.c.l.b16 %v471
    %v771 = vunpack.c.h.b16 %v471
    %v772 = vunpack.c.l.b16 %v472
    %v773 = vunpack.c.h.b16 %v472
    %v774 = vunpack.c.l.b16 %v473
    %v775 = vunpack.c.l.b16 %v474
    %v776 = vunpack.c.h.b16 %v474
    %v777 = vunpack.c.l.b16 %v475
    %v778 = vunpack.c.h.b16 %v475
    %v779 = vunpack.c.l.b16 %v476
    %v780 = vunpack.c.h.b16 %v476
    %v781 = vunpack.c.l.b16 %v477
    %v782 = vunpack.c.l.b16 %v478
    %v783 = vunpack.c.h.b16 %v478
    %v784 = vunpack.c.l.b16 %v479
    %v785 = vunpack.c.h.b16 %v479
    %v786 = vunpack.c.l.b16 %v480
    %v787 = vunpack.c.h.b16 %v480
    %v788 = vunpack.c.l.b16 %v481
    %v789 = vunpack.c.l.b16 %v482
    %v790 = vunpack.c.h.b16 %v482
    %v791 = vunpack.c.l.b16 %v483
    %v792 = vunpack.c.h.b16 %v483
    %v793 = vunpack.c.l.b16 %v484
    %v794 = vunpack.c.h.b16 %v484
    %v795 = vunpack.c.l.b16 %v485
    %v796 = vunpack.c.l.b16 %v486
    %v797 = vunpack.c.h.b16 %v486
    %v798 = vunpack.c.l.b16 %v487
    %v799 = vunpack.c.h.b16 %v487
    %v800 = vunpack.c.l.b16 %v488
    %v801 = vunpack.c.h.b16 %v488
    %v802 = vunpack.c.l.b16 %v489
    %v803 = vunpack.c.l.b16 %v490
    %v804 = vunpack.c.h.b16 %v490
    %v805 = vunpack.c.l.b16 %v491
    %v806 = vunpack.c.h.b16 %v491
    %v807 = vunpack.c.l.b16 %v492
    %v808 = vunpack.c.h.b16 %v492
    %v809 = vunpack.c.l.b16 %v493
    %v810 = vunpack.c.l.b16 %v494
    %v811 = vunpack.c.h.b16 %v494
    %v812 = vunpack.c.l.b16 %v495
    %v813 = vunpack.c.h.b16 %v495
    %v814 = vunpack.c.l.b16 %v496
    %v815 = vunpack.c.h.b16 %v496
    %v816 = vunpack.c.l.b16 %v497
    %v817 = vunpack.c.l.b16 %v498
    %v818 = vunpack.c.h.b16 %v498
    %v819 = vunpack.c.l.b16 %v499
    %v820 = vunpack.c.h.b16 %v499
    %v821 = vunpack.c.l.b16 %v500
    %v822 = vunpack.c.h.b16 %v500
    %v823 = vunpack.c.l.b16 %v501
    %v824 = vunpack.c.l.b16 %v502
    %v825 = vunpack.c.h.b16 %v502
    %v826 = vunpack.c.l.b16 %v503
    %v827 = vunpack.c.h.b16 %v503
    %v828 = vunpack.c.l.b16 %v504
    %v829 = vunpack.c.h.b16 %v504
    %v830 = vunpack.c.l.b16 %v505
    %v831 = vunpack.c.l.b16 %v506
    %v832 = vunpack.c.h.b16 %v506
    %v833 = vunpack.c.l.b16 %v507
    %v834 = vunpack.c.h.b16 %v507
    %v835 = vunpack.c.l.b16 %v508
    %v836 = vunpack.c.h.b16 %v508
    %v837 = vunpack.c.l.b16 %v509
    %v838 = vunpack.c.l.b16 %v510
    %v839 = vunpack.c.h.b16 %v510
    %v840 = vunpack.c.l.b16 %v511
    %v841 = vunpack.c.h.b16 %v511
    %v842 = vunpack.c.l.b16 %v512
    %v843 = vunpack.c.h.b16 %v512
    %v844 = vunpack.c.l.b16 %v513
    %v845 = vunpack.c.l.b16 %v514
    %v846 = vunpack.c.h.b16 %v514
    %v847 = vunpack.c.l.b16 %v515
    %v848 = vunpack.c.h.b16 %v515
    %v849 = vunpack.c.l.b16 %v516
    %v850 = vunpack.c.h.b16 %v516
    %v851 = vunpack.c.l.b16 %v517
    %v852 = vunpack.c.l.b16 %v518
    %v853 = vunpack.c.h.b16 %v518
    %v854 = vunpack.c.l.b16 %v519
    %v855 = vunpack.c.h.b16 %v519
    %v856 = vunpack.c.l.b16 %v520
    %v857 = vunpack.c.h.b16 %v520
    %v858 = vunpack.c.l.b16 %v521
    %v859 = vunpack.c.l.b16 %v522
    %v860 = vunpack.c.h.b16 %v522
    %v861 = vunpack.c.l.b16 %v523
    %v862 = vunpack.c.h.b16 %v523
    %v863 = vunpack.c.l.b16 %v524
    %v864 = vunpack.c.h.b16 %v524
    %v865 = vunpack.c.l.b16 %v525
    %v866 = vunpack.c.l.b16 %v526
    %v867 = vunpack.c.h.b16 %v526
    %v868 = vunpack.c.l.b16 %v527
    %v869 = vunpack.c.h.b16 %v527
    %v870 = vunpack.c.l.b16 %v528
    %v871 = vunpack.c.h.b16 %v528
    %v872 = vunpack.c.l.b16 %v529
    %v873 = vunpack.c.l.b16 %v530
    %v874 = vunpack.c.h.b16 %v530
    %v875 = vunpack.c.l.b16 %v531
    %v876 = vunpack.c.h.b16 %v531
    %v877 = vunpack.c.l.b16 %v532
    %v878 = vunpack.c.h.b16 %v532
    %v879 = vunpack.c.l.b16 %v533
    %v880 = vunpack.c.l.b16 %v534
    %v881 = vunpack.c.h.b16 %v534
    %v882 = vunpack.c.l.b16 %v535
    %v883 = vunpack.c.h.b16 %v535
    %v884 = vunpack.c.l.b16 %v536
    %v885 = vunpack.c.h.b16 %v536
    %v886 = vunpack.c.l.b16 %v537
    %v887 = vunpack.c.l.b16 %v538
    %v888 = vunpack.c.h.b16 %v538
    %v889 = vunpack.c.l.b16 %v539
    %v890 = vunpack.c.h.b16 %v539
    %v891 = vunpack.c.l.b16 %v540
    %v892 = vunpack.c.h.b16 %v540
    %v893 = vunpack.c.l.b16 %v541
    %v894 = vpack.c.b16 %v677, %v670
    %v895 = vpack.c.b16 %v678, %v671
    %v896 = vpack.c.b16 %v679, %v672
    %v897 = vpack.c.b16 %v680, %v673
    %v898 = vpack.c.b16 %v681, %v674
    %v899 = vpack.c.b16 %v682, %v675
    %v900 = vpack.c.b16 %v683, %v676
    %v901 = vpack.c.b16 %v691, %v684
    %v902 = vpack.c.b16 %v692, %v685
    %v903 = vpack.c.b16 %v693, %v686
    %v904 = vpack.c.b16 %v694, %v687
    %v905 = vpack.c.b16 %v695, %v688
    %v906 = vpack.c.b16 %v696, %v689
    %v907 = vpack.c.b16 %v697, %v690
    %v908 = vpack.c.b16 %v705, %v698
    %v909 = vpack.c.b16 %v706, %v699
    %v910 = vpack.c.b16 %v707, %v700
    %v911 = vpack.c.b16 %v708, %v701
    %v912 = vpack.c.b16 %v709, %v702
    %v913 = vpack.c.b16 %v710, %v703
    %v914 = vpack.c.b16 %v711, %v704
    %v915 = vpack.c.b16 %v719, %v712
    %v916 = vpack.c.b16 %v720, %v713
    %v917 = vpack.c.b16 %v721, %v714
    %v918 = vpack.c.b16 %v722, %v715
    %v919 = vpack.c.b16 %v723, %v716
    %v920 = vpack.c.b16 %v724, %v717
    %v921 = vpack.c.b16 %v725, %v718
    %v922 = vpack.c.b16 %v733, %v726
    %v923 = vpack.c.b16 %v734, %v727
    %v924 = vpack.c.b16 %v735, %v728
    %v925 = vpack.c.b16 %v736, %v729
    %v926 = vpack.c.b16 %v737, %v730
    %v927 = vpack.c.b16 %v738, %v731
    %v928 = vpack.c.b16 %v739, %v732
    %v929 = vpack.c.b16 %v747, %v740
    %v930 = vpack.c.b16 %v748, %v741
    %v931 = vpack.c.b16 %v749, %v742
    %v932 = vpack.c.b16 %v750, %v743
    %v933 = vpack.c.b16 %v751, %v744
    %v934 = vpack.c.b16 %v752, %v745
    %v935 = vpack.c.b16 %v753, %v746
    %v936 = vpack.c.b16 %v761, %v754
    %v937 = vpack.c.b16 %v762, %v755
    %v938 = vpack.c.b16 %v763, %v756
    %v939 = vpack.c.b16 %v764, %v757
    %v940 = vpack.c.b16 %v765, %v758
    %v941 = vpack.c.b16 %v766, %v759
    %v942 = vpack.c.b16 %v767, %v760
    %v943 = vpack.c.b16 %v775, %v768
    %v944 = vpack.c.b16 %v776, %v769
    %v945 = vpack.c.b16 %v777, %v770
    %v946 = vpack.c.b16 %v778, %v771
    %v947 = vpack.c.b16 %v779, %v772
    %v948 = vpack.c.b16 %v780, %v773
    %v949 = vpack.c.b16 %v781, %v774
    %v950 = vpack.c.b16 %v789, %v782
    %v951 = vpack.c.b16 %v790, %v783
    %v952 = vpack.c.b16 %v791, %v784
    %v953 = vpack.c.b16 %v792, %v785
    %v954 = vpack.c.b16 %v793, %v786
    %v955 = vpack.c.b16 %v794, %v787
    %v956 = vpack.c.b16 %v795, %v788
    %v957 = vpack.c.b16 %v803, %v796
    %v958 = vpack.c.b16 %v804, %v797
    %v959 = vpack.c.b16 %v805, %v798
    %v960 = vpack.c.b16 %v806, %v799
    %v961 = vpack.c.b16 %v807, %v800
    %v962 = vpack.c.b16 %v808, %v801
    %v963 = vpack.c.b16 %v809, %v802
    %v964 = vpack.c.b16 %v817, %v810
    %v965 = vpack.c.b16 %v818, %v811
    %v966 = vpack.c.b16 %v819, %v812
    %v967 = vpack.c.b16 %v820, %v813
    %v968 = vpack.c.b16 %v821, %v814
    %v969 = vpack.c.b16 %v822, %v815
    %v970 = vpack.c.b16 %v823, %v816
    %v971 = vpack.c.b16 %v831, %v824
    %v972 = vpack.c.b16 %v832, %v825
    %v973 = vpack.c.b16 %v833, %v826
    %v974 = vpack.c.b16 %v834, %v827
    %v975 = vpack.c.b16 %v835, %v828
    %v976 = vpack.c.b16 %v836, %v829
    %v977 = vpack.c.b16 %v837, %v830
    %v978 = vpack.c.b16 %v845, %v838
    %v979 = vpack.c.b16 %v846, %v839
    %v980 = vpack.c.b16 %v847, %v840
    %v981 = vpack.c.b16 %v848, %v841
    %v982 = vpack.c.b16 %v849, %v842
    %v983 = vpack.c.b16 %v850, %v843
    %v984 = vpack.c.b16 %v851, %v844
    %v985 = vpack.c.b16 %v859, %v852
    %v986 = vpack.c.b16 %v860, %v853
    %v987 = vpack.c.b16 %v861, %v854
    %v988 = vpack.c.b16 %v862, %v855
    %v989 = vpack.c.b16 %v863, %v856
    %v990 = vpack.c.b16 %v864, %v857
    %v991 = vpack.c.b16 %v865, %v858
    %v992 = vpack.c.b16 %v873, %v866
    %v993 = vpack.c.b16 %v874, %v867
    %v994 = vpack.c.b16 %v875, %v868
    %v995 = vpack.c.b16 %v876, %v869
    %v996 = vpack.c.b16 %v877, %v870
    %v997 = vpack.c.b16 %v878, %v871
    %v998 = vpack.c.b16 %v879, %v872
    %v999 = vpack.c.b16 %v887, %v880
    %v1000 = vpack.c.b16 %v888, %v881
    %v1001 = vpack.c.b16 %v889, %v882
    %v1002 = vpack.c.b16 %v890, %v883
    %v1003 = vpack.c.b16 %v891, %v884
    %v1004 = vpack.c.b16 %v892, %v885
    %v1005 = vpack.c.b16 %v893, %v886
    %1118 = vmatprep.subr.bf16.mxu0 %v895
    %1119 = vmatpush1.bf16.msra.mxu0 %v894
    %1120 = vmatprep.subr.bf16.mxu0 %v902
    %1121 = vmatpush1.bf16.msra.mxu0 %v901
    %1122 = vmatprep.subr.bf16.mxu0 %v909
    %1123 = vmatpush1.bf16.msra.mxu0 %v908
    %1124 = vmatprep.subr.bf16.mxu0 %v916
    %1125 = vmatpush1.bf16.msra.mxu0 %v915
    %1126 = vmatprep.subr.bf16.mxu0 %v923
    %1127 = vmatpush1.bf16.msra.mxu0 %v922
    %1128 = vmatprep.subr.bf16.mxu0 %v930
    %1129 = vmatpush1.bf16.msra.mxu0 %v929
    %1130 = vmatprep.subr.bf16.mxu0 %v937
    %1131 = vmatpush1.bf16.msra.mxu0 %v936
    %1132 = vmatprep.subr.bf16.mxu0 %v944
    %1133 = vmatpush1.bf16.msra.mxu0 %v943
    %1134 = vmatprep.subr.bf16.mxu0 %v951
    %1135 = vmatpush1.bf16.msra.mxu0 %v950
    %1136 = vmatprep.subr.bf16.mxu0 %v958
    %1137 = vmatpush1.bf16.msra.mxu0 %v957
    %1138 = vmatprep.subr.bf16.mxu0 %v965
    %1139 = vmatpush1.bf16.msra.mxu0 %v964
    %1140 = vmatprep.subr.bf16.mxu0 %v972
    %1141 = vmatpush1.bf16.msra.mxu0 %v971
    %1142 = vmatprep.subr.bf16.mxu0 %v979
    %1143 = vmatpush1.bf16.msra.mxu0 %v978
    %1144 = vmatprep.subr.bf16.mxu0 %v986
    %1145 = vmatpush1.bf16.msra.mxu0 %v985
    %1146 = vmatprep.subr.bf16.mxu0 %v993
    %1147 = vmatpush1.bf16.msra.mxu0 %v992
    %1148 = vmatprep.subr.bf16.mxu0 %v1000
    %1149 = vmatpush1.bf16.msra.mxu0 %v999
    %1150 = vmatprep.mubr.bf16.mxu0 %v413
    %1151 = vmatmul.mubr.bf16.gmra.mrb[0].mxu0 %v412
    %v1152 = vpop.f32.mrb[0].mxu0
    %v1153 = vadd.f32 0.0, %v1152
    %v1154 = vpop.f32.mrb[0].mxu0
    %v1155 = vadd.f32 0.0, %v1154
    %v1156 = vpop.f32.mrb[0].mxu0
    %v1157 = vpop.f32.mrb[0].mxu0
    %1158 = vdwg.mxu0
    %1159 = vmatprep.subr.bf16.mxu0 %v897
    %1160 = vmatpush1.bf16.msra.mxu0 %v896
    %1161 = vmatprep.subr.bf16.mxu0 %v904
    %1162 = vmatpush1.bf16.msra.mxu0 %v903
    %1163 = vmatprep.subr.bf16.mxu0 %v911
    %1164 = vmatpush1.bf16.msra.mxu0 %v910
    %1165 = vmatprep.subr.bf16.mxu0 %v918
    %1166 = vmatpush1.bf16.msra.mxu0 %v917
    %1167 = vmatprep.subr.bf16.mxu0 %v925
    %1168 = vmatpush1.bf16.msra.mxu0 %v924
    %1169 = vmatprep.subr.bf16.mxu0 %v932
    %1170 = vmatpush1.bf16.msra.mxu0 %v931
    %1171 = vmatprep.subr.bf16.mxu0 %v939
    %1172 = vmatpush1.bf16.msra.mxu0 %v938
    %1173 = vmatprep.subr.bf16.mxu0 %v946
    %1174 = vmatpush1.bf16.msra.mxu0 %v945
    %1175 = vmatprep.subr.bf16.mxu0 %v953
    %1176 = vmatpush1.bf16.msra.mxu0 %v952
    %1177 = vmatprep.subr.bf16.mxu0 %v960
    %1178 = vmatpush1.bf16.msra.mxu0 %v959
    %1179 = vmatprep.subr.bf16.mxu0 %v967
    %1180 = vmatpush1.bf16.msra.mxu0 %v966
    %1181 = vmatprep.subr.bf16.mxu0 %v974
    %1182 = vmatpush1.bf16.msra.mxu0 %v973
    %1183 = vmatprep.subr.bf16.mxu0 %v981
    %1184 = vmatpush1.bf16.msra.mxu0 %v980
    %1185 = vmatprep.subr.bf16.mxu0 %v988
    %1186 = vmatpush1.bf16.msra.mxu0 %v987
    %1187 = vmatprep.subr.bf16.mxu0 %v995
    %1188 = vmatpush1.bf16.msra.mxu0 %v994
    %1189 = vmatprep.subr.bf16.mxu0 %v1002
    %1190 = vmatpush1.bf16.msra.mxu0 %v1001
    %1191 = vmatprep.mubr.bf16.mxu0 %v413
    %1192 = vmatmul.mubr.bf16.gmra.mrb[0].mxu0 %v412
    %v1193 = vpop.f32.mrb[0].mxu0
    %v1194 = vadd.f32 0.0, %v1193
    %v1195 = vpop.f32.mrb[0].mxu0
    %v1196 = vadd.f32 0.0, %v1195
    %v1197 = vpop.f32.mrb[0].mxu0
    %v1198 = vpop.f32.mrb[0].mxu0
    %1199 = vdwg.mxu0
    %1200 = vmatprep.subr.bf16.mxu0 %v899
    %1201 = vmatpush1.bf16.msra.mxu0 %v898
    %1202 = vmatprep.subr.bf16.mxu0 %v906
    %1203 = vmatpush1.bf16.msra.mxu0 %v905
    %1204 = vmatprep.subr.bf16.mxu0 %v913
    %1205 = vmatpush1.bf16.msra.mxu0 %v912
    %1206 = vmatprep.subr.bf16.mxu0 %v920
    %1207 = vmatpush1.bf16.msra.mxu0 %v919
    %1208 = vmatprep.subr.bf16.mxu0 %v927
    %1209 = vmatpush1.bf16.msra.mxu0 %v926
    %1210 = vmatprep.subr.bf16.mxu0 %v934
    %1211 = vmatpush1.bf16.msra.mxu0 %v933
    %1212 = vmatprep.subr.bf16.mxu0 %v941
    %1213 = vmatpush1.bf16.msra.mxu0 %v940
    %1214 = vmatprep.subr.bf16.mxu0 %v948
    %1215 = vmatpush1.bf16.msra.mxu0 %v947
    %1216 = vmatprep.subr.bf16.mxu0 %v955
    %1217 = vmatpush1.bf16.msra.mxu0 %v954
    %1218 = vmatprep.subr.bf16.mxu0 %v962
    %1219 = vmatpush1.bf16.msra.mxu0 %v961
    %1220 = vmatprep.subr.bf16.mxu0 %v969
    %1221 = vmatpush1.bf16.msra.mxu0 %v968
    %1222 = vmatprep.subr.bf16.mxu0 %v976
    %1223 = vmatpush1.bf16.msra.mxu0 %v975
    %1224 = vmatprep.subr.bf16.mxu0 %v983
    %1225 = vmatpush1.bf16.msra.mxu0 %v982
    %1226 = vmatprep.subr.bf16.mxu0 %v990
    %1227 = vmatpush1.bf16.msra.mxu0 %v989
    %1228 = vmatprep.subr.bf16.mxu0 %v997
    %1229 = vmatpush1.bf16.msra.mxu0 %v996
    %1230 = vmatprep.subr.bf16.mxu0 %v1004
    %1231 = vmatpush1.bf16.msra.mxu0 %v1003
    %1232 = vmatprep.mubr.bf16.mxu0 %v413
    %1233 = vmatmul.mubr.bf16.gmra.mrb[0].mxu0 %v412
    %v1234 = vpop.f32.mrb[0].mxu0
    %v1235 = vadd.f32 0.0, %v1234
    %v1236 = vpop.f32.mrb[0].mxu0
    %v1237 = vadd.f32 0.0, %v1236
    %v1238 = vpop.f32.mrb[0].mxu0
    %v1239 = vpop.f32.mrb[0].mxu0
    %1240 = vdwg.mxu0
    %1241 = vmatprep.subr.bf16.mxu0 0
    %1242 = vmatpush1.bf16.msra.mxu0 %v900
    %1243 = vmatprep.subr.bf16.mxu0 0
    %1244 = vmatpush1.bf16.msra.mxu0 %v907
    %1245 = vmatprep.subr.bf16.mxu0 0
    %1246 = vmatpush1.bf16.msra.mxu0 %v914
    %1247 = vmatprep.subr.bf16.mxu0 0
    %1248 = vmatpush1.bf16.msra.mxu0 %v921
    %1249 = vmatprep.subr.bf16.mxu0 0
    %1250 = vmatpush1.bf16.msra.mxu0 %v928
    %1251 = vmatprep.subr.bf16.mxu0 0
    %1252 = vmatpush1.bf16.msra.mxu0 %v935
    %1253 = vmatprep.subr.bf16.mxu0 0
    %1254 = vmatpush1.bf16.msra.mxu0 %v942
    %1255 = vmatprep.subr.bf16.mxu0 0
    %1256 = vmatpush1.bf16.msra.mxu0 %v949
    %1257 = vmatprep.subr.bf16.mxu0 0
    %1258 = vmatpush1.bf16.msra.mxu0 %v956
    %1259 = vmatprep.subr.bf16.mxu0 0
    %1260 = vmatpush1.bf16.msra.mxu0 %v963
    %1261 = vmatprep.subr.bf16.mxu0 0
    %1262 = vmatpush1.bf16.msra.mxu0 %v970
    %1263 = vmatprep.subr.bf16.mxu0 0
    %1264 = vmatpush1.bf16.msra.mxu0 %v977
    %1265 = vmatprep.subr.bf16.mxu0 0
    %1266 = vmatpush1.bf16.msra.mxu0 %v984
    %1267 = vmatprep.subr.bf16.mxu0 0
    %1268 = vmatpush1.bf16.msra.mxu0 %v991
    %1269 = vmatprep.subr.bf16.mxu0 0
    %1270 = vmatpush1.bf16.msra.mxu0 %v998
    %1271 = vmatprep.subr.bf16.mxu0 0
    %1272 = vmatpush1.bf16.msra.mxu0 %v1005
    %1273 = vmatprep.mubr.bf16.mxu0 %v413
    %1274 = vmatmul.mubr.bf16.gmra.mrb[0].mxu0 %v412
    %v1275 = vpop.f32.mrb[0].mxu0
    %v1276 = vadd.f32 0.0, %v1275
    %v1277 = vpop.f32.mrb[0].mxu0
    %v1278 = vpop.f32.mrb[0].mxu0
    %v1279 = vpop.f32.mrb[0].mxu0
    %1280 = vdwg.mxu0
    %p1281 = scmp.eq.s32.totalorder 0, 0
    // Predicated region
    $region86: #{mtlnet_forward.1} parent=1 // pred_check
      %p1282 = pneg %p1281
    $region87: #{mtlnet_forward.1} parent=1 // pred_check_branch
      %1284 = sbr.rel (%p1282) target = $region89
    $region88: #{mtlnet_forward.1} parent=1 // pred_region
      %1285 = vst [vmem:[#allocation2] sm:$0xff] 0.0
      %1286 = vst [vmem:[#allocation2 + $0x8] sm:$0xff] 0.0
      %1287 = vst [vmem:[#allocation2 + $0x10] sm:$0xff] 0.0
      %1288 = vst [vmem:[#allocation2 + $0x18] sm:$0xff] 0.0
      %1289 = vst [vmem:[#allocation2 + $0x20] sm:$0xff] 0.0
      %1290 = vst [vmem:[#allocation2 + $0x28] sm:$0xff] 0.0
      %1291 = vst [vmem:[#allocation2 + $0x30] sm:$0xff] 0.0
    $region89: #{mtlnet_forward.1} parent=1 // pred_fallthru
      _
    %v1292 = vld [vmem:[#allocation2] sm:$0xff]
    %v1293 = vld [vmem:[#allocation2 + $0x8] sm:$0xff]
    %v1294 = vld [vmem:[#allocation2 + $0x10] sm:$0xff]
    %v1295 = vld [vmem:[#allocation2 + $0x18] sm:$0xff]
    %v1296 = vld [vmem:[#allocation2 + $0x20] sm:$0xff]
    %v1297 = vld [vmem:[#allocation2 + $0x28] sm:$0xff]
    %v1298 = vld [vmem:[#allocation2 + $0x30] sm:$0xff]
    %v1299 = vadd.f32 %v1292, %v1153
    %v1300 = vadd.f32 %v1293, %v1155
    %v1301 = vadd.f32 %v1294, %v1194
    %v1302 = vadd.f32 %v1295, %v1196
    %v1303 = vadd.f32 %v1296, %v1235
    %v1304 = vadd.f32 %v1297, %v1237
    %v1305 = vadd.f32 %v1298, %v1276
    %1306 = vst [vmem:[#allocation2] sm:$0xff] %v1299
    %1307 = vst [vmem:[#allocation2 + $0x8] sm:$0xff] %v1300
    %1308 = vst [vmem:[#allocation2 + $0x10] sm:$0xff] %v1301
    %1309 = vst [vmem:[#allocation2 + $0x18] sm:$0xff] %v1302
    %1310 = vst [vmem:[#allocation2 + $0x20] sm:$0xff] %v1303
    %1311 = vst [vmem:[#allocation2 + $0x28] sm:$0xff] %v1304
    %1312 = vst [vmem:[#allocation2 + $0x30] sm:$0xff] %v1305
    // Predicated region
    $region90: #{mtlnet_forward.1} parent=1 // pred_check
      %p1313 = pneg %p1281
    $region91: #{mtlnet_forward.1} parent=1 // pred_check_branch
      %1315 = sbr.rel (%p1313) target = $region93
    $region92: #{mtlnet_forward.1} parent=1 // pred_region
      %v1316 = vld [vmem:[#allocation2] sm:$0xff]
      %v1317 = vld [vmem:[#allocation2 + $0x8] sm:$0xff]
      %v1318 = vld [vmem:[#allocation2 + $0x10] sm:$0xff]
      %v1319 = vld [vmem:[#allocation2 + $0x18] sm:$0xff]
      %v1320 = vld [vmem:[#allocation2 + $0x20] sm:$0xff]
      %v1321 = vld [vmem:[#allocation2 + $0x28] sm:$0xff]
      %v1322 = vld [vmem:[#allocation2 + $0x30] sm:$0xff]
      %v1323 = vld [vmem:[#allocation5] sm:$0xff]
      %v1324 = vld [vmem:[#allocation5 + $0x8] sm:$0xff]
      %v1325 = vld [vmem:[#allocation5 + $0x10] sm:$0xff]
      %v1326 = vld [vmem:[#allocation5 + $0x18] sm:$0xff]
      %v1327 = vld [vmem:[#allocation5 + $0x20] sm:$0xff]
      %v1328 = vld [vmem:[#allocation5 + $0x28] sm:$0xff]
      %v1329 = vld [vmem:[#allocation5 + $0x30] sm:$0xff]
      %v1330 = vld [vmem:[#allocation5 + $0x38] sm:$0xff]
      %v1331 = vld [vmem:[#allocation5 + $0x40] sm:$0xff]
      %v1332 = vld [vmem:[#allocation5 + $0x48] sm:$0xff]
      %v1333 = vld [vmem:[#allocation5 + $0x50] sm:$0xff]
      %v1334 = vld [vmem:[#allocation5 + $0x58] sm:$0xff]
      %v1335 = vld [vmem:[#allocation5 + $0x60] sm:$0xff]
      %v1336 = vld [vmem:[#allocation5 + $0x68] sm:$0xff]
      %v1337 = vld [vmem:[#allocation5 + $0x70] sm:$0xff]
      %v1338 = vld [vmem:[#allocation5 + $0x78] sm:$0xff]
      %v1339 = vld [vmem:[#allocation5 + $0x80] sm:$0xff]
      %v1340 = vld [vmem:[#allocation5 + $0x88] sm:$0xff]
      %v1341 = vld [vmem:[#allocation5 + $0x90] sm:$0xff]
      %v1342 = vld [vmem:[#allocation5 + $0x98] sm:$0xff]
      %v1343 = vld [vmem:[#allocation5 + $0xa0] sm:$0xff]
      %v1344 = vld [vmem:[#allocation5 + $0xa8] sm:$0xff]
      %v1345 = vld [vmem:[#allocation5 + $0xb0] sm:$0xff]
      %v1346 = vld [vmem:[#allocation5 + $0xb8] sm:$0xff]
      %v1347 = vld [vmem:[#allocation5 + $0xc0] sm:$0xff]
      %v1348 = vld [vmem:[#allocation5 + $0xc8] sm:$0xff]
      %v1349 = vld [vmem:[#allocation5 + $0xd0] sm:$0xff]
      %v1350 = vld [vmem:[#allocation5 + $0xd8] sm:$0xff]
      %v1351 = vld [vmem:[#allocation5 + $0xe0] sm:$0xff]
      %v1352 = vld [vmem:[#allocation5 + $0xe8] sm:$0xff]
      %v1353 = vld [vmem:[#allocation5 + $0xf0] sm:$0xff]
      %v1354 = vld [vmem:[#allocation5 + $0xf8] sm:$0xff]
      %v1355 = vld [vmem:[#allocation5 + $0x100] sm:$0xff]
      %v1356 = vld [vmem:[#allocation5 + $0x108] sm:$0xff]
      %v1357 = vld [vmem:[#allocation5 + $0x110] sm:$0xff]
      %v1358 = vld [vmem:[#allocation5 + $0x118] sm:$0xff]
      %v1359 = vld [vmem:[#allocation5 + $0x120] sm:$0xff]
      %v1360 = vld [vmem:[#allocation5 + $0x128] sm:$0xff]
      %v1361 = vld [vmem:[#allocation5 + $0x130] sm:$0xff]
      %v1362 = vld [vmem:[#allocation5 + $0x138] sm:$0xff]
      %v1363 = vld [vmem:[#allocation5 + $0x140] sm:$0xff]
      %v1364 = vld [vmem:[#allocation5 + $0x148] sm:$0xff]
      %v1365 = vld [vmem:[#allocation5 + $0x150] sm:$0xff]
      %v1366 = vld [vmem:[#allocation5 + $0x158] sm:$0xff]
      %v1367 = vld [vmem:[#allocation5 + $0x160] sm:$0xff]
      %v1368 = vld [vmem:[#allocation5 + $0x168] sm:$0xff]
      %v1369 = vld [vmem:[#allocation5 + $0x170] sm:$0xff]
      %v1370 = vld [vmem:[#allocation5 + $0x178] sm:$0xff]
      %v1371 = vld [vmem:[#allocation5 + $0x180] sm:$0xff]
      %v1372 = vld [vmem:[#allocation5 + $0x188] sm:$0xff]
      %v1373 = vld [vmem:[#allocation5 + $0x190] sm:$0xff]
      %v1374 = vld [vmem:[#allocation5 + $0x198] sm:$0xff]
      %v1375 = vld [vmem:[#allocation5 + $0x1a0] sm:$0xff]
      %v1376 = vld [vmem:[#allocation5 + $0x1a8] sm:$0xff]
      %v1377 = vld [vmem:[#allocation5 + $0x1b0] sm:$0xff]
      %v1378 = vld [vmem:[#allocation5 + $0x1b8] sm:$0xff]
      %v1379 = vld [vmem:[#allocation5 + $0x1c0] sm:$0xff]
      %v1380 = vld [vmem:[#allocation5 + $0x1c8] sm:$0xff]
      %v1381 = vld [vmem:[#allocation5 + $0x1d0] sm:$0xff]
      %v1382 = vld [vmem:[#allocation5 + $0x1d8] sm:$0xff]
      %v1383 = vld [vmem:[#allocation5 + $0x1e0] sm:$0xff]
      %v1384 = vld [vmem:[#allocation5 + $0x1e8] sm:$0xff]
      %v1385 = vld [vmem:[#allocation5 + $0x1f0] sm:$0xff]
      %v1386 = vld [vmem:[#allocation5 + $0x1f8] sm:$0xff]
      %v1387 = vld [vmem:[#allocation5 + $0x200] sm:$0xff]
      %v1388 = vld [vmem:[#allocation5 + $0x208] sm:$0xff]
      %v1389 = vld [vmem:[#allocation5 + $0x210] sm:$0xff]
      %v1390 = vld [vmem:[#allocation5 + $0x218] sm:$0xff]
      %v1391 = vld [vmem:[#allocation5 + $0x220] sm:$0xff]
      %v1392 = vld [vmem:[#allocation5 + $0x228] sm:$0xff]
      %v1393 = vld [vmem:[#allocation5 + $0x230] sm:$0xff]
      %v1394 = vld [vmem:[#allocation5 + $0x238] sm:$0xff]
      %v1395 = vld [vmem:[#allocation5 + $0x240] sm:$0xff]
      %v1396 = vld [vmem:[#allocation5 + $0x248] sm:$0xff]
      %v1397 = vld [vmem:[#allocation5 + $0x250] sm:$0xff]
      %v1398 = vld [vmem:[#allocation5 + $0x258] sm:$0xff]
      %v1399 = vld [vmem:[#allocation5 + $0x260] sm:$0xff]
      %v1400 = vld [vmem:[#allocation5 + $0x268] sm:$0xff]
      %v1401 = vld [vmem:[#allocation5 + $0x270] sm:$0xff]
      %v1402 = vld [vmem:[#allocation5 + $0x278] sm:$0xff]
      %v1403 = vld [vmem:[#allocation5 + $0x280] sm:$0xff]
      %v1404 = vld [vmem:[#allocation5 + $0x288] sm:$0xff]
      %v1405 = vld [vmem:[#allocation5 + $0x290] sm:$0xff]
      %v1406 = vld [vmem:[#allocation5 + $0x298] sm:$0xff]
      %v1407 = vld [vmem:[#allocation5 + $0x2a0] sm:$0xff]
      %v1408 = vld [vmem:[#allocation5 + $0x2a8] sm:$0xff]
      %v1409 = vld [vmem:[#allocation5 + $0x2b0] sm:$0xff]
      %v1410 = vld [vmem:[#allocation5 + $0x2b8] sm:$0xff]
      %v1411 = vld [vmem:[#allocation5 + $0x2c0] sm:$0xff]
      %v1412 = vld [vmem:[#allocation5 + $0x2c8] sm:$0xff]
      %v1413 = vld [vmem:[#allocation5 + $0x2d0] sm:$0xff]
      %v1414 = vld [vmem:[#allocation5 + $0x2d8] sm:$0xff]
      %v1415 = vld [vmem:[#allocation5 + $0x2e0] sm:$0xff]
      %v1416 = vld [vmem:[#allocation5 + $0x2e8] sm:$0xff]
      %v1417 = vld [vmem:[#allocation5 + $0x2f0] sm:$0xff]
      %v1418 = vld [vmem:[#allocation5 + $0x2f8] sm:$0xff]
      %v1419 = vld [vmem:[#allocation5 + $0x300] sm:$0xff]
      %v1420 = vld [vmem:[#allocation5 + $0x308] sm:$0xff]
      %v1421 = vld [vmem:[#allocation5 + $0x310] sm:$0xff]
      %v1422 = vld [vmem:[#allocation5 + $0x318] sm:$0xff]
      %v1423 = vld [vmem:[#allocation5 + $0x320] sm:$0xff]
      %v1424 = vld [vmem:[#allocation5 + $0x328] sm:$0xff]
      %v1425 = vld [vmem:[#allocation5 + $0x330] sm:$0xff]
      %v1426 = vld [vmem:[#allocation5 + $0x338] sm:$0xff]
      %v1427 = vld [vmem:[#allocation5 + $0x340] sm:$0xff]
      %v1428 = vld [vmem:[#allocation5 + $0x348] sm:$0xff]
      %v1429 = vld [vmem:[#allocation5 + $0x350] sm:$0xff]
      %v1430 = vld [vmem:[#allocation5 + $0x358] sm:$0xff]
      %v1431 = vld [vmem:[#allocation5 + $0x360] sm:$0xff]
      %v1432 = vld [vmem:[#allocation5 + $0x368] sm:$0xff]
      %v1433 = vld [vmem:[#allocation5 + $0x370] sm:$0xff]
      %v1434 = vld [vmem:[#allocation5 + $0x378] sm:$0xff]
      %v1435 = vld [vmem:[#allocation5 + $0x380] sm:$0xff]
      %v1436 = vld [vmem:[#allocation5 + $0x388] sm:$0xff]
      %v1437 = vld [vmem:[#allocation5 + $0x390] sm:$0xff]
      %v1438 = vld [vmem:[#allocation5 + $0x398] sm:$0xff]
      %v1439 = vld [vmem:[#allocation5 + $0x3a0] sm:$0xff]
      %v1440 = vld [vmem:[#allocation5 + $0x3a8] sm:$0xff]
      %v1441 = vld [vmem:[#allocation5 + $0x3b0] sm:$0xff]
      %v1442 = vld [vmem:[#allocation5 + $0x3b8] sm:$0xff]
      %v1443 = vld [vmem:[#allocation5 + $0x3c0] sm:$0xff]
      %v1444 = vld [vmem:[#allocation5 + $0x3c8] sm:$0xff]
      %v1445 = vld [vmem:[#allocation5 + $0x3d0] sm:$0xff]
      %v1446 = vld [vmem:[#allocation5 + $0x3d8] sm:$0xff]
      %v1447 = vld [vmem:[#allocation5 + $0x3e0] sm:$0xff]
      %v1448 = vld [vmem:[#allocation5 + $0x3e8] sm:$0xff]
      %v1449 = vld [vmem:[#allocation5 + $0x3f0] sm:$0xff]
      %v1450 = vld [vmem:[#allocation5 + $0x3f8] sm:$0xff]
      %v1451 = vld [vmem:[#allocation5 + $0x400] sm:$0xff]
      %v1452 = vld [vmem:[#allocation5 + $0x408] sm:$0xff]
      %v1453 = vld [vmem:[#allocation5 + $0x410] sm:$0xff]
      %v1454 = vld [vmem:[#allocation5 + $0x418] sm:$0xff]
      %v1455 = vld [vmem:[#allocation5 + $0x420] sm:$0xff]
      %v1456 = vld [vmem:[#allocation5 + $0x428] sm:$0xff]
      %v1457 = vld [vmem:[#allocation5 + $0x430] sm:$0xff]
      %v1458 = vld [vmem:[#allocation5 + $0x438] sm:$0xff]
      %v1459 = vld [vmem:[#allocation5 + $0x440] sm:$0xff]
      %v1460 = vld [vmem:[#allocation5 + $0x448] sm:$0xff]
      %v1461 = vld [vmem:[#allocation5 + $0x450] sm:$0xff]
      %v1462 = vld [vmem:[#allocation5 + $0x458] sm:$0xff]
      %v1463 = vld [vmem:[#allocation5 + $0x460] sm:$0xff]
      %v1464 = vld [vmem:[#allocation5 + $0x468] sm:$0xff]
      %v1465 = vld [vmem:[#allocation5 + $0x470] sm:$0xff]
      %v1466 = vld [vmem:[#allocation5 + $0x478] sm:$0xff]
      %v1467 = vld [vmem:[#allocation5 + $0x480] sm:$0xff]
      %v1468 = vld [vmem:[#allocation5 + $0x488] sm:$0xff]
      %v1469 = vld [vmem:[#allocation5 + $0x490] sm:$0xff]
      %v1470 = vld [vmem:[#allocation5 + $0x498] sm:$0xff]
      %v1471 = vld [vmem:[#allocation5 + $0x4a0] sm:$0xff]
      %v1472 = vld [vmem:[#allocation5 + $0x4a8] sm:$0xff]
      %v1473 = vld [vmem:[#allocation5 + $0x4b0] sm:$0xff]
      %v1474 = vld [vmem:[#allocation5 + $0x4b8] sm:$0xff]
      %v1475 = vld [vmem:[#allocation5 + $0x4c0] sm:$0xff]
      %v1476 = vld [vmem:[#allocation5 + $0x4c8] sm:$0xff]
      %v1477 = vld [vmem:[#allocation5 + $0x4d0] sm:$0xff]
      %v1478 = vld [vmem:[#allocation5 + $0x4d8] sm:$0xff]
      %v1479 = vld [vmem:[#allocation5 + $0x4e0] sm:$0xff]
      %v1480 = vld [vmem:[#allocation5 + $0x4e8] sm:$0xff]
      %v1481 = vld [vmem:[#allocation5 + $0x4f0] sm:$0xff]
      %v1482 = vld [vmem:[#allocation5 + $0x4f8] sm:$0xff]
      %v1483 = vld [vmem:[#allocation5 + $0x500] sm:$0xff]
      %v1484 = vld [vmem:[#allocation5 + $0x508] sm:$0xff]
      %v1485 = vld [vmem:[#allocation5 + $0x510] sm:$0xff]
      %v1486 = vld [vmem:[#allocation5 + $0x518] sm:$0xff]
      %v1487 = vld [vmem:[#allocation5 + $0x520] sm:$0xff]
      %v1488 = vld [vmem:[#allocation5 + $0x528] sm:$0xff]
      %v1489 = vld [vmem:[#allocation5 + $0x530] sm:$0xff]
      %v1490 = vld [vmem:[#allocation5 + $0x538] sm:$0xff]
      %v1491 = vld [vmem:[#allocation5 + $0x540] sm:$0xff]
      %v1492 = vld [vmem:[#allocation5 + $0x548] sm:$0xff]
      %v1493 = vld [vmem:[#allocation5 + $0x550] sm:$0xff]
      %v1494 = vld [vmem:[#allocation5 + $0x558] sm:$0xff]
      %v1495 = vld [vmem:[#allocation5 + $0x560] sm:$0xff]
      %v1496 = vld [vmem:[#allocation5 + $0x568] sm:$0xff]
      %v1497 = vld [vmem:[#allocation5 + $0x570] sm:$0xff]
      %v1498 = vld [vmem:[#allocation5 + $0x578] sm:$0xff]
      %v1499 = vld [vmem:[#allocation5 + $0x580] sm:$0xff]
      %v1500 = vld [vmem:[#allocation5 + $0x588] sm:$0xff]
      %v1501 = vld [vmem:[#allocation5 + $0x590] sm:$0xff]
      %v1502 = vld [vmem:[#allocation5 + $0x598] sm:$0xff]
      %v1503 = vld [vmem:[#allocation5 + $0x5a0] sm:$0xff]
      %v1504 = vld [vmem:[#allocation5 + $0x5a8] sm:$0xff]
      %v1505 = vld [vmem:[#allocation5 + $0x5b0] sm:$0xff]
      %v1506 = vld [vmem:[#allocation5 + $0x5b8] sm:$0xff]
      %v1507 = vld [vmem:[#allocation5 + $0x5c0] sm:$0xff]
      %v1508 = vld [vmem:[#allocation5 + $0x5c8] sm:$0xff]
      %v1509 = vld [vmem:[#allocation5 + $0x5d0] sm:$0xff]
      %v1510 = vld [vmem:[#allocation5 + $0x5d8] sm:$0xff]
      %v1511 = vld [vmem:[#allocation5 + $0x5e0] sm:$0xff]
      %v1512 = vld [vmem:[#allocation5 + $0x5e8] sm:$0xff]
      %v1513 = vld [vmem:[#allocation5 + $0x5f0] sm:$0xff]
      %v1514 = vld [vmem:[#allocation5 + $0x5f8] sm:$0xff]
      %v1515 = vld [vmem:[#allocation5 + $0x600] sm:$0xff]
      %v1516 = vld [vmem:[#allocation5 + $0x608] sm:$0xff]
      %v1517 = vld [vmem:[#allocation5 + $0x610] sm:$0xff]
      %v1518 = vld [vmem:[#allocation5 + $0x618] sm:$0xff]
      %v1519 = vld [vmem:[#allocation5 + $0x620] sm:$0xff]
      %v1520 = vld [vmem:[#allocation5 + $0x628] sm:$0xff]
      %v1521 = vld [vmem:[#allocation5 + $0x630] sm:$0xff]
      %v1522 = vld [vmem:[#allocation5 + $0x638] sm:$0xff]
      %v1523 = vld [vmem:[#allocation5 + $0x640] sm:$0xff]
      %v1524 = vld [vmem:[#allocation5 + $0x648] sm:$0xff]
      %v1525 = vld [vmem:[#allocation5 + $0x650] sm:$0xff]
      %v1526 = vld [vmem:[#allocation5 + $0x658] sm:$0xff]
      %v1527 = vld [vmem:[#allocation5 + $0x660] sm:$0xff]
      %v1528 = vld [vmem:[#allocation5 + $0x668] sm:$0xff]
      %v1529 = vld [vmem:[#allocation5 + $0x670] sm:$0xff]
      %v1530 = vld [vmem:[#allocation5 + $0x678] sm:$0xff]
      %v1531 = vld [vmem:[#allocation5 + $0x680] sm:$0xff]
      %v1532 = vld [vmem:[#allocation5 + $0x688] sm:$0xff]
      %v1533 = vld [vmem:[#allocation5 + $0x690] sm:$0xff]
      %v1534 = vld [vmem:[#allocation5 + $0x698] sm:$0xff]
      %v1535 = vld [vmem:[#allocation5 + $0x6a0] sm:$0xff]
      %v1536 = vld [vmem:[#allocation5 + $0x6a8] sm:$0xff]
      %v1537 = vld [vmem:[#allocation5 + $0x6b0] sm:$0xff]
      %v1538 = vld [vmem:[#allocation5 + $0x6b8] sm:$0xff]
      %v1539 = vld [vmem:[#allocation5 + $0x6c0] sm:$0xff]
      %v1540 = vld [vmem:[#allocation5 + $0x6c8] sm:$0xff]
      %v1541 = vld [vmem:[#allocation5 + $0x6d0] sm:$0xff]
      %v1542 = vld [vmem:[#allocation5 + $0x6d8] sm:$0xff]
      %v1543 = vld [vmem:[#allocation5 + $0x6e0] sm:$0xff]
      %v1544 = vld [vmem:[#allocation5 + $0x6e8] sm:$0xff]
      %v1545 = vld [vmem:[#allocation5 + $0x6f0] sm:$0xff]
      %v1546 = vld [vmem:[#allocation5 + $0x6f8] sm:$0xff]
      %v1547 = vld [vmem:[#allocation5 + $0x700] sm:$0xff]
      %v1548 = vld [vmem:[#allocation5 + $0x708] sm:$0xff]
      %v1549 = vld [vmem:[#allocation5 + $0x710] sm:$0xff]
      %v1550 = vld [vmem:[#allocation5 + $0x718] sm:$0xff]
      %v1551 = vld [vmem:[#allocation5 + $0x720] sm:$0xff]
      %v1552 = vld [vmem:[#allocation5 + $0x728] sm:$0xff]
      %v1553 = vld [vmem:[#allocation5 + $0x730] sm:$0xff]
      %v1554 = vld [vmem:[#allocation5 + $0x738] sm:$0xff]
      %v1555 = vld [vmem:[#allocation5 + $0x740] sm:$0xff]
      %v1556 = vld [vmem:[#allocation5 + $0x748] sm:$0xff]
      %v1557 = vld [vmem:[#allocation5 + $0x750] sm:$0xff]
      %v1558 = vld [vmem:[#allocation5 + $0x758] sm:$0xff]
      %v1559 = vld [vmem:[#allocation5 + $0x760] sm:$0xff]
      %v1560 = vld [vmem:[#allocation5 + $0x768] sm:$0xff]
      %v1561 = vld [vmem:[#allocation5 + $0x770] sm:$0xff]
      %v1562 = vld [vmem:[#allocation5 + $0x778] sm:$0xff]
      %v1563 = vld [vmem:[#allocation5 + $0x780] sm:$0xff]
      %v1564 = vld [vmem:[#allocation5 + $0x788] sm:$0xff]
      %v1565 = vld [vmem:[#allocation5 + $0x790] sm:$0xff]
      %v1566 = vld [vmem:[#allocation5 + $0x798] sm:$0xff]
      %v1567 = vld [vmem:[#allocation5 + $0x7a0] sm:$0xff]
      %v1568 = vld [vmem:[#allocation5 + $0x7a8] sm:$0xff]
      %v1569 = vld [vmem:[#allocation5 + $0x7b0] sm:$0xff]
      %v1570 = vld [vmem:[#allocation5 + $0x7b8] sm:$0xff]
      %v1571 = vld [vmem:[#allocation5 + $0x7c0] sm:$0xff]
      %v1572 = vld [vmem:[#allocation5 + $0x7c8] sm:$0xff]
      %v1573 = vld [vmem:[#allocation5 + $0x7d0] sm:$0xff]
      %v1574 = vld [vmem:[#allocation5 + $0x7d8] sm:$0xff]
      %v1575 = vld [vmem:[#allocation5 + $0x7e0] sm:$0xff]
      %v1576 = vld [vmem:[#allocation5 + $0x7e8] sm:$0xff]
      %v1577 = vld [vmem:[#allocation5 + $0x7f0] sm:$0xff]
      %v1578 = vld [vmem:[#allocation5 + $0x7f8] sm:$0xff]
      %v1579 = vld [vmem:[#allocation5 + $0x800] sm:$0xff]
      %v1580 = vld [vmem:[#allocation5 + $0x808] sm:$0xff]
      %v1581 = vld [vmem:[#allocation5 + $0x810] sm:$0xff]
      %v1582 = vld [vmem:[#allocation5 + $0x818] sm:$0xff]
      %v1583 = vld [vmem:[#allocation5 + $0x820] sm:$0xff]
      %v1584 = vld [vmem:[#allocation5 + $0x828] sm:$0xff]
      %v1585 = vld [vmem:[#allocation5 + $0x830] sm:$0xff]
      %v1586 = vld [vmem:[#allocation5 + $0x838] sm:$0xff]
      %v1587 = vld [vmem:[#allocation5 + $0x840] sm:$0xff]
      %v1588 = vld [vmem:[#allocation5 + $0x848] sm:$0xff]
      %v1589 = vld [vmem:[#allocation5 + $0x850] sm:$0xff]
      %v1590 = vld [vmem:[#allocation5 + $0x858] sm:$0xff]
      %v1591 = vld [vmem:[#allocation5 + $0x860] sm:$0xff]
      %v1592 = vld [vmem:[#allocation5 + $0x868] sm:$0xff]
      %v1593 = vld [vmem:[#allocation5 + $0x870] sm:$0xff]
      %v1594 = vld [vmem:[#allocation5 + $0x878] sm:$0xff]
      %v1595 = vld [vmem:[#allocation5 + $0x880] sm:$0xff]
      %v1596 = vld [vmem:[#allocation5 + $0x888] sm:$0xff]
      %v1597 = vld [vmem:[#allocation5 + $0x890] sm:$0xff]
      %v1598 = vld [vmem:[#allocation5 + $0x898] sm:$0xff]
      %v1599 = vld [vmem:[#allocation5 + $0x8a0] sm:$0xff]
      %v1600 = vld [vmem:[#allocation5 + $0x8a8] sm:$0xff]
      %v1601 = vld [vmem:[#allocation5 + $0x8b0] sm:$0xff]
      %v1602 = vld [vmem:[#allocation5 + $0x8b8] sm:$0xff]
      %v1603 = vld [vmem:[#allocation5 + $0x8c0] sm:$0xff]
      %v1604 = vld [vmem:[#allocation5 + $0x8c8] sm:$0xff]
      %v1605 = vld [vmem:[#allocation5 + $0x8d0] sm:$0xff]
      %v1606 = vld [vmem:[#allocation5 + $0x8d8] sm:$0xff]
      %v1607 = vld [vmem:[#allocation5 + $0x8e0] sm:$0xff]
      %v1608 = vld [vmem:[#allocation5 + $0x8e8] sm:$0xff]
      %v1609 = vld [vmem:[#allocation5 + $0x8f0] sm:$0xff]
      %v1610 = vld [vmem:[#allocation5 + $0x8f8] sm:$0xff]
      %v1611 = vld [vmem:[#allocation5 + $0x900] sm:$0xff]
      %v1612 = vld [vmem:[#allocation5 + $0x908] sm:$0xff]
      %v1613 = vld [vmem:[#allocation5 + $0x910] sm:$0xff]
      %v1614 = vld [vmem:[#allocation5 + $0x918] sm:$0xff]
      %v1615 = vld [vmem:[#allocation5 + $0x920] sm:$0xff]
      %v1616 = vld [vmem:[#allocation5 + $0x928] sm:$0xff]
      %v1617 = vld [vmem:[#allocation5 + $0x930] sm:$0xff]
      %v1618 = vld [vmem:[#allocation5 + $0x938] sm:$0xff]
      %v1619 = vld [vmem:[#allocation5 + $0x940] sm:$0xff]
      %v1620 = vld [vmem:[#allocation5 + $0x948] sm:$0xff]
      %v1621 = vld [vmem:[#allocation5 + $0x950] sm:$0xff]
      %v1622 = vld [vmem:[#allocation5 + $0x958] sm:$0xff]
      %v1623 = vld [vmem:[#allocation5 + $0x960] sm:$0xff]
      %v1624 = vld [vmem:[#allocation5 + $0x968] sm:$0xff]
      %v1625 = vld [vmem:[#allocation5 + $0x970] sm:$0xff]
      %v1626 = vld [vmem:[#allocation5 + $0x978] sm:$0xff]
      %v1627 = vld [vmem:[#allocation5 + $0x980] sm:$0xff]
      %v1628 = vld [vmem:[#allocation5 + $0x988] sm:$0xff]
      %v1629 = vld [vmem:[#allocation5 + $0x990] sm:$0xff]
      %v1630 = vld [vmem:[#allocation5 + $0x998] sm:$0xff]
      %v1631 = vld [vmem:[#allocation5 + $0x9a0] sm:$0xff]
      %v1632 = vld [vmem:[#allocation5 + $0x9a8] sm:$0xff]
      %v1633 = vld [vmem:[#allocation5 + $0x9b0] sm:$0xff]
      %v1634 = vld [vmem:[#allocation5 + $0x9b8] sm:$0xff]
      %v1635 = vld [vmem:[#allocation5 + $0x9c0] sm:$0xff]
      %v1636 = vld [vmem:[#allocation5 + $0x9c8] sm:$0xff]
      %v1637 = vld [vmem:[#allocation5 + $0x9d0] sm:$0xff]
      %v1638 = vld [vmem:[#allocation5 + $0x9d8] sm:$0xff]
      %v1639 = vld [vmem:[#allocation5 + $0x9e0] sm:$0xff]
      %v1640 = vld [vmem:[#allocation5 + $0x9e8] sm:$0xff]
      %v1641 = vld [vmem:[#allocation5 + $0x9f0] sm:$0xff]
      %v1642 = vld [vmem:[#allocation5 + $0x9f8] sm:$0xff]
      %v1643 = vld [vmem:[#allocation5 + $0xa00] sm:$0xff]
      %v1644 = vld [vmem:[#allocation5 + $0xa08] sm:$0xff]
      %v1645 = vld [vmem:[#allocation5 + $0xa10] sm:$0xff]
      %v1646 = vld [vmem:[#allocation5 + $0xa18] sm:$0xff]
      %v1647 = vld [vmem:[#allocation5 + $0xa20] sm:$0xff]
      %v1648 = vld [vmem:[#allocation5 + $0xa28] sm:$0xff]
      %v1649 = vld [vmem:[#allocation5 + $0xa30] sm:$0xff]
      %v1650 = vld [vmem:[#allocation5 + $0xa38] sm:$0xff]
      %v1651 = vld [vmem:[#allocation5 + $0xa40] sm:$0xff]
      %v1652 = vld [vmem:[#allocation5 + $0xa48] sm:$0xff]
      %v1653 = vld [vmem:[#allocation5 + $0xa50] sm:$0xff]
      %v1654 = vld [vmem:[#allocation5 + $0xa58] sm:$0xff]
      %v1655 = vld [vmem:[#allocation5 + $0xa60] sm:$0xff]
      %v1656 = vld [vmem:[#allocation5 + $0xa68] sm:$0xff]
      %v1657 = vld [vmem:[#allocation5 + $0xa70] sm:$0xff]
      %v1658 = vld [vmem:[#allocation5 + $0xa78] sm:$0xff]
      %v1659 = vld [vmem:[#allocation5 + $0xa80] sm:$0xff]
      %v1660 = vld [vmem:[#allocation5 + $0xa88] sm:$0xff]
      %v1661 = vld [vmem:[#allocation5 + $0xa90] sm:$0xff]
      %v1662 = vld [vmem:[#allocation5 + $0xa98] sm:$0xff]
      %v1663 = vld [vmem:[#allocation5 + $0xaa0] sm:$0xff]
      %v1664 = vld [vmem:[#allocation5 + $0xaa8] sm:$0xff]
      %v1665 = vld [vmem:[#allocation5 + $0xab0] sm:$0xff]
      %v1666 = vld [vmem:[#allocation5 + $0xab8] sm:$0xff]
      %v1667 = vld [vmem:[#allocation5 + $0xac0] sm:$0xff]
      %v1668 = vld [vmem:[#allocation5 + $0xac8] sm:$0xff]
      %v1669 = vld [vmem:[#allocation5 + $0xad0] sm:$0xff]
      %v1670 = vld [vmem:[#allocation5 + $0xad8] sm:$0xff]
      %v1671 = vld [vmem:[#allocation5 + $0xae0] sm:$0xff]
      %v1672 = vld [vmem:[#allocation5 + $0xae8] sm:$0xff]
      %v1673 = vld [vmem:[#allocation5 + $0xaf0] sm:$0xff]
      %v1674 = vld [vmem:[#allocation5 + $0xaf8] sm:$0xff]
      %v1675 = vld [vmem:[#allocation5 + $0xb00] sm:$0xff]
      %v1676 = vld [vmem:[#allocation5 + $0xb08] sm:$0xff]
      %v1677 = vld [vmem:[#allocation5 + $0xb10] sm:$0xff]
      %v1678 = vld [vmem:[#allocation5 + $0xb18] sm:$0xff]
      %v1679 = vld [vmem:[#allocation5 + $0xb20] sm:$0xff]
      %v1680 = vld [vmem:[#allocation5 + $0xb28] sm:$0xff]
      %v1681 = vld [vmem:[#allocation5 + $0xb30] sm:$0xff]
      %v1682 = vld [vmem:[#allocation5 + $0xb38] sm:$0xff]
      %v1683 = vld [vmem:[#allocation5 + $0xb40] sm:$0xff]
      %v1684 = vld [vmem:[#allocation5 + $0xb48] sm:$0xff]
      %v1685 = vld [vmem:[#allocation5 + $0xb50] sm:$0xff]
      %v1686 = vld [vmem:[#allocation5 + $0xb58] sm:$0xff]
      %v1687 = vld [vmem:[#allocation5 + $0xb60] sm:$0xff]
      %v1688 = vld [vmem:[#allocation5 + $0xb68] sm:$0xff]
      %v1689 = vld [vmem:[#allocation5 + $0xb70] sm:$0xff]
      %v1690 = vld [vmem:[#allocation5 + $0xb78] sm:$0xff]
      %v1691 = vld [vmem:[#allocation5 + $0xb80] sm:$0xff]
      %v1692 = vld [vmem:[#allocation5 + $0xb88] sm:$0xff]
      %v1693 = vld [vmem:[#allocation5 + $0xb90] sm:$0xff]
      %v1694 = vld [vmem:[#allocation5 + $0xb98] sm:$0xff]
      %v1695 = vld [vmem:[#allocation5 + $0xba0] sm:$0xff]
      %v1696 = vld [vmem:[#allocation5 + $0xba8] sm:$0xff]
      %v1697 = vld [vmem:[#allocation5 + $0xbb0] sm:$0xff]
      %v1698 = vld [vmem:[#allocation5 + $0xbb8] sm:$0xff]
      %v1699 = vld [vmem:[#allocation5 + $0xbc0] sm:$0xff]
      %v1700 = vld [vmem:[#allocation5 + $0xbc8] sm:$0xff]
      %v1701 = vld [vmem:[#allocation5 + $0xbd0] sm:$0xff]
      %v1702 = vld [vmem:[#allocation5 + $0xbd8] sm:$0xff]
      %v1703 = vld [vmem:[#allocation5 + $0xbe0] sm:$0xff]
      %v1704 = vld [vmem:[#allocation5 + $0xbe8] sm:$0xff]
      %v1705 = vld [vmem:[#allocation5 + $0xbf0] sm:$0xff]
      %v1706 = vld [vmem:[#allocation5 + $0xbf8] sm:$0xff]
      %v1707 = vld [vmem:[#allocation5 + $0xc00] sm:$0xff]
      %v1708 = vld [vmem:[#allocation5 + $0xc08] sm:$0xff]
      %v1709 = vld [vmem:[#allocation5 + $0xc10] sm:$0xff]
      %v1710 = vld [vmem:[#allocation5 + $0xc18] sm:$0xff]
      %v1711 = vld [vmem:[#allocation5 + $0xc20] sm:$0xff]
      %v1712 = vld [vmem:[#allocation5 + $0xc28] sm:$0xff]
      %v1713 = vld [vmem:[#allocation5 + $0xc30] sm:$0xff]
      %v1714 = vld [vmem:[#allocation5 + $0xc38] sm:$0xff]
      %v1715 = vld [vmem:[#allocation5 + $0xc40] sm:$0xff]
      %v1716 = vld [vmem:[#allocation5 + $0xc48] sm:$0xff]
      %v1717 = vld [vmem:[#allocation5 + $0xc50] sm:$0xff]
      %v1718 = vld [vmem:[#allocation5 + $0xc58] sm:$0xff]
      %v1719 = vld [vmem:[#allocation5 + $0xc60] sm:$0xff]
      %v1720 = vld [vmem:[#allocation5 + $0xc68] sm:$0xff]
      %v1721 = vld [vmem:[#allocation5 + $0xc70] sm:$0xff]
      %v1722 = vld [vmem:[#allocation5 + $0xc78] sm:$0xff]
      %v1723 = vld [vmem:[#allocation5 + $0xc80] sm:$0xff]
      %v1724 = vld [vmem:[#allocation5 + $0xc88] sm:$0xff]
      %v1725 = vld [vmem:[#allocation5 + $0xc90] sm:$0xff]
      %v1726 = vld [vmem:[#allocation5 + $0xc98] sm:$0xff]
      %v1727 = vld [vmem:[#allocation5 + $0xca0] sm:$0xff]
      %v1728 = vld [vmem:[#allocation5 + $0xca8] sm:$0xff]
      %v1729 = vld [vmem:[#allocation5 + $0xcb0] sm:$0xff]
      %v1730 = vld [vmem:[#allocation5 + $0xcb8] sm:$0xff]
      %v1731 = vld [vmem:[#allocation5 + $0xcc0] sm:$0xff]
      %v1732 = vld [vmem:[#allocation5 + $0xcc8] sm:$0xff]
      %v1733 = vld [vmem:[#allocation5 + $0xcd0] sm:$0xff]
      %v1734 = vld [vmem:[#allocation5 + $0xcd8] sm:$0xff]
      %v1735 = vld [vmem:[#allocation5 + $0xce0] sm:$0xff]
      %v1736 = vld [vmem:[#allocation5 + $0xce8] sm:$0xff]
      %v1737 = vld [vmem:[#allocation5 + $0xcf0] sm:$0xff]
      %v1738 = vld [vmem:[#allocation5 + $0xcf8] sm:$0xff]
      %v1739 = vld [vmem:[#allocation5 + $0xd00] sm:$0xff]
      %v1740 = vld [vmem:[#allocation5 + $0xd08] sm:$0xff]
      %v1741 = vld [vmem:[#allocation5 + $0xd10] sm:$0xff]
      %v1742 = vld [vmem:[#allocation5 + $0xd18] sm:$0xff]
      %v1743 = vld [vmem:[#allocation5 + $0xd20] sm:$0xff]
      %v1744 = vld [vmem:[#allocation5 + $0xd28] sm:$0xff]
      %v1745 = vld [vmem:[#allocation5 + $0xd30] sm:$0xff]
      %v1746 = vld [vmem:[#allocation5 + $0xd38] sm:$0xff]
      %v1747 = vld [vmem:[#allocation5 + $0xd40] sm:$0xff]
      %v1748 = vld [vmem:[#allocation5 + $0xd48] sm:$0xff]
      %v1749 = vld [vmem:[#allocation5 + $0xd50] sm:$0xff]
      %v1750 = vld [vmem:[#allocation5 + $0xd58] sm:$0xff]
      %v1751 = vld [vmem:[#allocation5 + $0xd60] sm:$0xff]
      %v1752 = vld [vmem:[#allocation5 + $0xd68] sm:$0xff]
      %v1753 = vld [vmem:[#allocation5 + $0xd70] sm:$0xff]
      %v1754 = vld [vmem:[#allocation5 + $0xd78] sm:$0xff]
      %v1755 = vld [vmem:[#allocation5 + $0xd80] sm:$0xff]
      %v1756 = vld [vmem:[#allocation5 + $0xd88] sm:$0xff]
      %v1757 = vld [vmem:[#allocation5 + $0xd90] sm:$0xff]
      %v1758 = vld [vmem:[#allocation5 + $0xd98] sm:$0xff]
      %v1759 = vld [vmem:[#allocation5 + $0xda0] sm:$0xff]
      %v1760 = vld [vmem:[#allocation5 + $0xda8] sm:$0xff]
      %v1761 = vld [vmem:[#allocation5 + $0xdb0] sm:$0xff]
      %v1762 = vld [vmem:[#allocation5 + $0xdb8] sm:$0xff]
      %v1763 = vld [vmem:[#allocation5 + $0xdc0] sm:$0xff]
      %v1764 = vld [vmem:[#allocation5 + $0xdc8] sm:$0xff]
      %v1765 = vld [vmem:[#allocation5 + $0xdd0] sm:$0xff]
      %v1766 = vld [vmem:[#allocation5 + $0xdd8] sm:$0xff]
      %v1767 = vld [vmem:[#allocation5 + $0xde0] sm:$0xff]
      %v1768 = vld [vmem:[#allocation5 + $0xde8] sm:$0xff]
      %v1769 = vld [vmem:[#allocation5 + $0xdf0] sm:$0xff]
      %v1770 = vld [vmem:[#allocation5 + $0xdf8] sm:$0xff]
      %v1771 = vld [vmem:[#allocation7] sm:$0xf]
      %v1773 = vlaneseq
      %v1774 = vshrl.u32 %v1773, 7
      %v1775 = vsub.s32 0, %v1774
      %v1776 = vrot.slane %v1771, %v1775
      %v1777 = vlaneseq
      %v1778 = vshrl.u32 %v1777, 7
      %v1779 = vsub.s32 1, %v1778
      %v1780 = vrot.slane %v1771, %v1779
      %v1781 = vlaneseq
      %v1782 = vshrl.u32 %v1781, 7
      %v1783 = vsub.s32 2, %v1782
      %v1784 = vrot.slane %v1771, %v1783
      %v1785 = vlaneseq
      %v1786 = vshrl.u32 %v1785, 7
      %v1787 = vsub.s32 3, %v1786
      %v1788 = vrot.slane %v1771, %v1787
      %1793 = vmatprep.subr.mxu0 %v1324
      %1794 = vmatpush1.msra.mxu0 %v1323
      %1795 = vmatprep.subr.mxu0 %v1328
      %1796 = vmatpush1.msra.mxu0 %v1327
      %1797 = vmatprep.subr.mxu0 %v1332
      %1798 = vmatpush1.msra.mxu0 %v1331
      %1799 = vmatprep.subr.mxu0 %v1336
      %1800 = vmatpush1.msra.mxu0 %v1335
      %1801 = vmatprep.subr.mxu0 %v1340
      %1802 = vmatpush1.msra.mxu0 %v1339
      %1803 = vmatprep.subr.mxu0 %v1344
      %1804 = vmatpush1.msra.mxu0 %v1343
      %1805 = vmatprep.subr.mxu0 %v1348
      %1806 = vmatpush1.msra.mxu0 %v1347
      %1807 = vmatprep.subr.mxu0 %v1352
      %1808 = vmatpush1.msra.mxu0 %v1351
      %1809 = vmatprep.subr.mxu0 %v1356
      %1810 = vmatpush1.msra.mxu0 %v1355
      %1811 = vmatprep.subr.mxu0 %v1360
      %1812 = vmatpush1.msra.mxu0 %v1359
      %1813 = vmatprep.subr.mxu0 %v1364
      %1814 = vmatpush1.msra.mxu0 %v1363
      %1815 = vmatprep.subr.mxu0 %v1368
      %1816 = vmatpush1.msra.mxu0 %v1367
      %1817 = vmatprep.subr.mxu0 %v1372
      %1818 = vmatpush1.msra.mxu0 %v1371
      %1819 = vmatprep.subr.mxu0 %v1376
      %1820 = vmatpush1.msra.mxu0 %v1375
      %1821 = vmatprep.subr.mxu0 %v1380
      %1822 = vmatpush1.msra.mxu0 %v1379
      %1823 = vmatprep.subr.mxu0 %v1384
      %1824 = vmatpush1.msra.mxu0 %v1383
      %1825 = vmatprep.subr.mxu0 %v1388
      %1826 = vmatpush1.msra.mxu0 %v1387
      %1827 = vmatprep.subr.mxu0 %v1392
      %1828 = vmatpush1.msra.mxu0 %v1391
      %1829 = vmatprep.subr.mxu0 %v1396
      %1830 = vmatpush1.msra.mxu0 %v1395
      %1831 = vmatprep.subr.mxu0 %v1400
      %1832 = vmatpush1.msra.mxu0 %v1399
      %1833 = vmatprep.subr.mxu0 %v1404
      %1834 = vmatpush1.msra.mxu0 %v1403
      %1835 = vmatprep.subr.mxu0 %v1408
      %1836 = vmatpush1.msra.mxu0 %v1407
      %1837 = vmatprep.subr.mxu0 %v1412
      %1838 = vmatpush1.msra.mxu0 %v1411
      %1839 = vmatprep.subr.mxu0 %v1416
      %1840 = vmatpush1.msra.mxu0 %v1415
      %1841 = vmatprep.subr.mxu0 %v1420
      %1842 = vmatpush1.msra.mxu0 %v1419
      %1843 = vmatprep.subr.mxu0 %v1424
      %1844 = vmatpush1.msra.mxu0 %v1423
      %1845 = vmatprep.subr.mxu0 %v1428
      %1846 = vmatpush1.msra.mxu0 %v1427
      %1847 = vmatprep.subr.mxu0 %v1432
      %1848 = vmatpush1.msra.mxu0 %v1431
      %1849 = vmatprep.subr.mxu0 %v1436
      %1850 = vmatpush1.msra.mxu0 %v1435
      %1851 = vmatprep.subr.mxu0 %v1440
      %1852 = vmatpush1.msra.mxu0 %v1439
      %1853 = vmatprep.subr.mxu0 %v1444
      %1854 = vmatpush1.msra.mxu0 %v1443
      %1855 = vmatprep.subr.mxu0 %v1448
      %1856 = vmatpush1.msra.mxu0 %v1447
      %1857 = vmatprep.mubr.f32.mxu0 %v1317
      %1858 = vmatmul.mubr.f32.gmra.mrb[0].mxu0 %v1316
      %v1859 = vpop.f32.mrb[0].mxu0
      %v1860 = vadd.f32 %v1776, %v1859
      %v1861 = vpop.f32.mrb[0].mxu0
      %v1862 = vadd.f32 %v1780, %v1861
      %1863 = vdwg.mxu0
      %1864 = vmatprep.subr.mxu0 %v1452
      %1865 = vmatpush1.msra.mxu0 %v1451
      %1866 = vmatprep.subr.mxu0 %v1456
      %1867 = vmatpush1.msra.mxu0 %v1455
      %1868 = vmatprep.subr.mxu0 %v1460
      %1869 = vmatpush1.msra.mxu0 %v1459
      %1870 = vmatprep.subr.mxu0 %v1464
      %1871 = vmatpush1.msra.mxu0 %v1463
      %1872 = vmatprep.subr.mxu0 %v1468
      %1873 = vmatpush1.msra.mxu0 %v1467
      %1874 = vmatprep.subr.mxu0 %v1472
      %1875 = vmatpush1.msra.mxu0 %v1471
      %1876 = vmatprep.subr.mxu0 %v1476
      %1877 = vmatpush1.msra.mxu0 %v1475
      %1878 = vmatprep.subr.mxu0 %v1480
      %1879 = vmatpush1.msra.mxu0 %v1479
      %1880 = vmatprep.subr.mxu0 %v1484
      %1881 = vmatpush1.msra.mxu0 %v1483
      %1882 = vmatprep.subr.mxu0 %v1488
      %1883 = vmatpush1.msra.mxu0 %v1487
      %1884 = vmatprep.subr.mxu0 %v1492
      %1885 = vmatpush1.msra.mxu0 %v1491
      %1886 = vmatprep.subr.mxu0 %v1496
      %1887 = vmatpush1.msra.mxu0 %v1495
      %1888 = vmatprep.subr.mxu0 %v1500
      %1889 = vmatpush1.msra.mxu0 %v1499
      %1890 = vmatprep.subr.mxu0 %v1504
      %1891 = vmatpush1.msra.mxu0 %v1503
      %1892 = vmatprep.subr.mxu0 %v1508
      %1893 = vmatpush1.msra.mxu0 %v1507
      %1894 = vmatprep.subr.mxu0 %v1512
      %1895 = vmatpush1.msra.mxu0 %v1511
      %1896 = vmatprep.subr.mxu0 %v1516
      %1897 = vmatpush1.msra.mxu0 %v1515
      %1898 = vmatprep.subr.mxu0 %v1520
      %1899 = vmatpush1.msra.mxu0 %v1519
      %1900 = vmatprep.subr.mxu0 %v1524
      %1901 = vmatpush1.msra.mxu0 %v1523
      %1902 = vmatprep.subr.mxu0 %v1528
      %1903 = vmatpush1.msra.mxu0 %v1527
      %1904 = vmatprep.subr.mxu0 %v1532
      %1905 = vmatpush1.msra.mxu0 %v1531
      %1906 = vmatprep.subr.mxu0 %v1536
      %1907 = vmatpush1.msra.mxu0 %v1535
      %1908 = vmatprep.subr.mxu0 %v1540
      %1909 = vmatpush1.msra.mxu0 %v1539
      %1910 = vmatprep.subr.mxu0 %v1544
      %1911 = vmatpush1.msra.mxu0 %v1543
      %1912 = vmatprep.subr.mxu0 %v1548
      %1913 = vmatpush1.msra.mxu0 %v1547
      %1914 = vmatprep.subr.mxu0 %v1552
      %1915 = vmatpush1.msra.mxu0 %v1551
      %1916 = vmatprep.subr.mxu0 %v1556
      %1917 = vmatpush1.msra.mxu0 %v1555
      %1918 = vmatprep.subr.mxu0 %v1560
      %1919 = vmatpush1.msra.mxu0 %v1559
      %1920 = vmatprep.subr.mxu0 %v1564
      %1921 = vmatpush1.msra.mxu0 %v1563
      %1922 = vmatprep.subr.mxu0 %v1568
      %1923 = vmatpush1.msra.mxu0 %v1567
      %1924 = vmatprep.subr.mxu0 %v1572
      %1925 = vmatpush1.msra.mxu0 %v1571
      %1926 = vmatprep.subr.mxu0 %v1576
      %1927 = vmatpush1.msra.mxu0 %v1575
      %1928 = vmatprep.mubr.f32.mxu0 %v1319
      %1929 = vmatmul.mubr.f32.gmra.mrb[0].mxu0 %v1318
      %v1930 = vpop.f32.mrb[0].mxu0
      %v1931 = vadd.f32 %v1860, %v1930
      %v1932 = vpop.f32.mrb[0].mxu0
      %v1933 = vadd.f32 %v1862, %v1932
      %1934 = vdwg.mxu0
      %1935 = vmatprep.subr.mxu0 %v1580
      %1936 = vmatpush1.msra.mxu0 %v1579
      %1937 = vmatprep.subr.mxu0 %v1584
      %1938 = vmatpush1.msra.mxu0 %v1583
      %1939 = vmatprep.subr.mxu0 %v1588
      %1940 = vmatpush1.msra.mxu0 %v1587
      %1941 = vmatprep.subr.mxu0 %v1592
      %1942 = vmatpush1.msra.mxu0 %v1591
      %1943 = vmatprep.subr.mxu0 %v1596
      %1944 = vmatpush1.msra.mxu0 %v1595
      %1945 = vmatprep.subr.mxu0 %v1600
      %1946 = vmatpush1.msra.mxu0 %v1599
      %1947 = vmatprep.subr.mxu0 %v1604
      %1948 = vmatpush1.msra.mxu0 %v1603
      %1949 = vmatprep.subr.mxu0 %v1608
      %1950 = vmatpush1.msra.mxu0 %v1607
      %1951 = vmatprep.subr.mxu0 %v1612
      %1952 = vmatpush1.msra.mxu0 %v1611
      %1953 = vmatprep.subr.mxu0 %v1616
      %1954 = vmatpush1.msra.mxu0 %v1615
      %1955 = vmatprep.subr.mxu0 %v1620
      %1956 = vmatpush1.msra.mxu0 %v1619
      %1957 = vmatprep.subr.mxu0 %v1624
      %1958 = vmatpush1.msra.mxu0 %v1623
      %1959 = vmatprep.subr.mxu0 %v1628
      %1960 = vmatpush1.msra.mxu0 %v1627
      %1961 = vmatprep.subr.mxu0 %v1632
      %1962 = vmatpush1.msra.mxu0 %v1631
      %1963 = vmatprep.subr.mxu0 %v1636
      %1964 = vmatpush1.msra.mxu0 %v1635
      %1965 = vmatprep.subr.mxu0 %v1640
      %1966 = vmatpush1.msra.mxu0 %v1639
      %1967 = vmatprep.subr.mxu0 %v1644
      %1968 = vmatpush1.msra.mxu0 %v1643
      %1969 = vmatprep.subr.mxu0 %v1648
      %1970 = vmatpush1.msra.mxu0 %v1647
      %1971 = vmatprep.subr.mxu0 %v1652
      %1972 = vmatpush1.msra.mxu0 %v1651
      %1973 = vmatprep.subr.mxu0 %v1656
      %1974 = vmatpush1.msra.mxu0 %v1655
      %1975 = vmatprep.subr.mxu0 %v1660
      %1976 = vmatpush1.msra.mxu0 %v1659
      %1977 = vmatprep.subr.mxu0 %v1664
      %1978 = vmatpush1.msra.mxu0 %v1663
      %1979 = vmatprep.subr.mxu0 %v1668
      %1980 = vmatpush1.msra.mxu0 %v1667
      %1981 = vmatprep.subr.mxu0 %v1672
      %1982 = vmatpush1.msra.mxu0 %v1671
      %1983 = vmatprep.subr.mxu0 %v1676
      %1984 = vmatpush1.msra.mxu0 %v1675
      %1985 = vmatprep.subr.mxu0 %v1680
      %1986 = vmatpush1.msra.mxu0 %v1679
      %1987 = vmatprep.subr.mxu0 %v1684
      %1988 = vmatpush1.msra.mxu0 %v1683
      %1989 = vmatprep.subr.mxu0 %v1688
      %1990 = vmatpush1.msra.mxu0 %v1687
      %1991 = vmatprep.subr.mxu0 %v1692
      %1992 = vmatpush1.msra.mxu0 %v1691
      %1993 = vmatprep.subr.mxu0 %v1696
      %1994 = vmatpush1.msra.mxu0 %v1695
      %1995 = vmatprep.subr.mxu0 %v1700
      %1996 = vmatpush1.msra.mxu0 %v1699
      %1997 = vmatprep.subr.mxu0 %v1704
      %1998 = vmatpush1.msra.mxu0 %v1703
      %1999 = vmatprep.mubr.f32.mxu0 %v1321
      %2000 = vmatmul.mubr.f32.gmra.mrb[0].mxu0 %v1320
      %v2001 = vpop.f32.mrb[0].mxu0
      %v2002 = vadd.f32 %v1931, %v2001
      %v2003 = vpop.f32.mrb[0].mxu0
      %v2004 = vadd.f32 %v1933, %v2003
      %2005 = vdwg.mxu0
      %2006 = vmatprep.subr.mxu0 %v1708
      %2007 = vmatpush1.msra.mxu0 %v1707
      %2008 = vmatprep.subr.mxu0 %v1712
      %2009 = vmatpush1.msra.mxu0 %v1711
      %2010 = vmatprep.subr.mxu0 %v1716
      %2011 = vmatpush1.msra.mxu0 %v1715
      %2012 = vmatprep.subr.mxu0 %v1720
      %2013 = vmatpush1.msra.mxu0 %v1719
      %2014 = vmatprep.subr.mxu0 %v1724
      %2015 = vmatpush1.msra.mxu0 %v1723
      %2016 = vmatprep.subr.mxu0 %v1728
      %2017 = vmatpush1.msra.mxu0 %v1727
      %2018 = vmatprep.subr.mxu0 %v1732
      %2019 = vmatpush1.msra.mxu0 %v1731
      %2020 = vmatprep.subr.mxu0 %v1736
      %2021 = vmatpush1.msra.mxu0 %v1735
      %2022 = vmatprep.subr.mxu0 %v1740
      %2023 = vmatpush1.msra.mxu0 %v1739
      %2024 = vmatprep.subr.mxu0 %v1744
      %2025 = vmatpush1.msra.mxu0 %v1743
      %2026 = vmatprep.subr.mxu0 %v1748
      %2027 = vmatpush1.msra.mxu0 %v1747
      %2028 = vmatprep.subr.mxu0 %v1752
      %2029 = vmatpush1.msra.mxu0 %v1751
      %2030 = vmatprep.subr.mxu0 %v1756
      %2031 = vmatpush1.msra.mxu0 %v1755
      %2032 = vmatprep.subr.mxu0 %v1760
      %2033 = vmatpush1.msra.mxu0 %v1759
      %2034 = vmatprep.subr.mxu0 %v1764
      %2035 = vmatpush1.msra.mxu0 %v1763
      %2036 = vmatprep.subr.mxu0 %v1768
      %2037 = vmatpush1.msra.mxu0 %v1767
      %2038 = vmatprep.subr.mxu0 0.0
      %2039 = vmatpush1.msra.mxu0 0.0
      %2040 = vmatprep.subr.mxu0 0.0
      %2041 = vmatpush1.msra.mxu0 0.0
      %2042 = vmatprep.subr.mxu0 0.0
      %2043 = vmatpush1.msra.mxu0 0.0
      %2044 = vmatprep.subr.mxu0 0.0
      %2045 = vmatpush1.msra.mxu0 0.0
      %2046 = vmatprep.subr.mxu0 0.0
      %2047 = vmatpush1.msra.mxu0 0.0
      %2048 = vmatprep.subr.mxu0 0.0
      %2049 = vmatpush1.msra.mxu0 0.0
      %2050 = vmatprep.subr.mxu0 0.0
      %2051 = vmatpush1.msra.mxu0 0.0
      %2052 = vmatprep.subr.mxu0 0.0
      %2053 = vmatpush1.msra.mxu0 0.0
      %2054 = vmatprep.subr.mxu0 0.0
      %2055 = vmatpush1.msra.mxu0 0.0
      %2056 = vmatprep.subr.mxu0 0.0
      %2057 = vmatpush1.msra.mxu0 0.0
      %2058 = vmatprep.subr.mxu0 0.0
      %2059 = vmatpush1.msra.mxu0 0.0
      %2060 = vmatprep.subr.mxu0 0.0
      %2061 = vmatpush1.msra.mxu0 0.0
      %2062 = vmatprep.subr.mxu0 0.0
      %2063 = vmatpush1.msra.mxu0 0.0
      %2064 = vmatprep.subr.mxu0 0.0
      %2065 = vmatpush1.msra.mxu0 0.0
      %2066 = vmatprep.subr.mxu0 0.0
      %2067 = vmatpush1.msra.mxu0 0.0
      %2068 = vmatprep.subr.mxu0 0.0
      %2069 = vmatpush1.msra.mxu0 0.0
      %2070 = vmatprep.mubr.f32.mxu0 0.0
      %2071 = vmatmul.mubr.f32.gmra.mrb[0].mxu0 %v1322
      %v2072 = vpop.f32.mrb[0].mxu0
      %v2073 = vadd.f32 %v2002, %v2072
      %v2074 = vpop.f32.mrb[0].mxu0
      %v2075 = vadd.f32 %v2004, %v2074
      %2076 = vdwg.mxu0
      %2077 = vmatprep.subr.mxu0 %v1326
      %2078 = vmatpush1.msra.mxu0 %v1325
      %2079 = vmatprep.subr.mxu0 %v1330
      %2080 = vmatpush1.msra.mxu0 %v1329
      %2081 = vmatprep.subr.mxu0 %v1334
      %2082 = vmatpush1.msra.mxu0 %v1333
      %2083 = vmatprep.subr.mxu0 %v1338
      %2084 = vmatpush1.msra.mxu0 %v1337
      %2085 = vmatprep.subr.mxu0 %v1342
      %2086 = vmatpush1.msra.mxu0 %v1341
      %2087 = vmatprep.subr.mxu0 %v1346
      %2088 = vmatpush1.msra.mxu0 %v1345
      %2089 = vmatprep.subr.mxu0 %v1350
      %2090 = vmatpush1.msra.mxu0 %v1349
      %2091 = vmatprep.subr.mxu0 %v1354
      %2092 = vmatpush1.msra.mxu0 %v1353
      %2093 = vmatprep.subr.mxu0 %v1358
      %2094 = vmatpush1.msra.mxu0 %v1357
      %2095 = vmatprep.subr.mxu0 %v1362
      %2096 = vmatpush1.msra.mxu0 %v1361
      %2097 = vmatprep.subr.mxu0 %v1366
      %2098 = vmatpush1.msra.mxu0 %v1365
      %2099 = vmatprep.subr.mxu0 %v1370
      %2100 = vmatpush1.msra.mxu0 %v1369
      %2101 = vmatprep.subr.mxu0 %v1374
      %2102 = vmatpush1.msra.mxu0 %v1373
      %2103 = vmatprep.subr.mxu0 %v1378
      %2104 = vmatpush1.msra.mxu0 %v1377
      %2105 = vmatprep.subr.mxu0 %v1382
      %2106 = vmatpush1.msra.mxu0 %v1381
      %2107 = vmatprep.subr.mxu0 %v1386
      %2108 = vmatpush1.msra.mxu0 %v1385
      %2109 = vmatprep.subr.mxu0 %v1390
      %2110 = vmatpush1.msra.mxu0 %v1389
      %2111 = vmatprep.subr.mxu0 %v1394
      %2112 = vmatpush1.msra.mxu0 %v1393
      %2113 = vmatprep.subr.mxu0 %v1398
      %2114 = vmatpush1.msra.mxu0 %v1397
      %2115 = vmatprep.subr.mxu0 %v1402
      %2116 = vmatpush1.msra.mxu0 %v1401
      %2117 = vmatprep.subr.mxu0 %v1406
      %2118 = vmatpush1.msra.mxu0 %v1405
      %2119 = vmatprep.subr.mxu0 %v1410
      %2120 = vmatpush1.msra.mxu0 %v1409
      %2121 = vmatprep.subr.mxu0 %v1414
      %2122 = vmatpush1.msra.mxu0 %v1413
      %2123 = vmatprep.subr.mxu0 %v1418
      %2124 = vmatpush1.msra.mxu0 %v1417
      %2125 = vmatprep.subr.mxu0 %v1422
      %2126 = vmatpush1.msra.mxu0 %v1421
      %2127 = vmatprep.subr.mxu0 %v1426
      %2128 = vmatpush1.msra.mxu0 %v1425
      %2129 = vmatprep.subr.mxu0 %v1430
      %2130 = vmatpush1.msra.mxu0 %v1429
      %2131 = vmatprep.subr.mxu0 %v1434
      %2132 = vmatpush1.msra.mxu0 %v1433
      %2133 = vmatprep.subr.mxu0 %v1438
      %2134 = vmatpush1.msra.mxu0 %v1437
      %2135 = vmatprep.subr.mxu0 %v1442
      %2136 = vmatpush1.msra.mxu0 %v1441
      %2137 = vmatprep.subr.mxu0 %v1446
      %2138 = vmatpush1.msra.mxu0 %v1445
      %2139 = vmatprep.subr.mxu0 %v1450
      %2140 = vmatpush1.msra.mxu0 %v1449
      %2141 = vmatprep.mubr.f32.mxu0 %v1317
      %2142 = vmatmul.mubr.f32.gmra.mrb[0].mxu0 %v1316
      %v2143 = vpop.f32.mrb[0].mxu0
      %v2144 = vadd.f32 %v1784, %v2143
      %v2145 = vpop.f32.mrb[0].mxu0
      %v2146 = vadd.f32 %v1788, %v2145
      %2147 = vdwg.mxu0
      %2148 = vmatprep.subr.mxu0 %v1454
      %2149 = vmatpush1.msra.mxu0 %v1453
      %2150 = vmatprep.subr.mxu0 %v1458
      %2151 = vmatpush1.msra.mxu0 %v1457
      %2152 = vmatprep.subr.mxu0 %v1462
      %2153 = vmatpush1.msra.mxu0 %v1461
      %2154 = vmatprep.subr.mxu0 %v1466
      %2155 = vmatpush1.msra.mxu0 %v1465
      %2156 = vmatprep.subr.mxu0 %v1470
      %2157 = vmatpush1.msra.mxu0 %v1469
      %2158 = vmatprep.subr.mxu0 %v1474
      %2159 = vmatpush1.msra.mxu0 %v1473
      %2160 = vmatprep.subr.mxu0 %v1478
      %2161 = vmatpush1.msra.mxu0 %v1477
      %2162 = vmatprep.subr.mxu0 %v1482
      %2163 = vmatpush1.msra.mxu0 %v1481
      %2164 = vmatprep.subr.mxu0 %v1486
      %2165 = vmatpush1.msra.mxu0 %v1485
      %2166 = vmatprep.subr.mxu0 %v1490
      %2167 = vmatpush1.msra.mxu0 %v1489
      %2168 = vmatprep.subr.mxu0 %v1494
      %2169 = vmatpush1.msra.mxu0 %v1493
      %2170 = vmatprep.subr.mxu0 %v1498
      %2171 = vmatpush1.msra.mxu0 %v1497
      %2172 = vmatprep.subr.mxu0 %v1502
      %2173 = vmatpush1.msra.mxu0 %v1501
      %2174 = vmatprep.subr.mxu0 %v1506
      %2175 = vmatpush1.msra.mxu0 %v1505
      %2176 = vmatprep.subr.mxu0 %v1510
      %2177 = vmatpush1.msra.mxu0 %v1509
      %2178 = vmatprep.subr.mxu0 %v1514
      %2179 = vmatpush1.msra.mxu0 %v1513
      %2180 = vmatprep.subr.mxu0 %v1518
      %2181 = vmatpush1.msra.mxu0 %v1517
      %2182 = vmatprep.subr.mxu0 %v1522
      %2183 = vmatpush1.msra.mxu0 %v1521
      %2184 = vmatprep.subr.mxu0 %v1526
      %2185 = vmatpush1.msra.mxu0 %v1525
      %2186 = vmatprep.subr.mxu0 %v1530
      %2187 = vmatpush1.msra.mxu0 %v1529
      %2188 = vmatprep.subr.mxu0 %v1534
      %2189 = vmatpush1.msra.mxu0 %v1533
      %2190 = vmatprep.subr.mxu0 %v1538
      %2191 = vmatpush1.msra.mxu0 %v1537
      %2192 = vmatprep.subr.mxu0 %v1542
      %2193 = vmatpush1.msra.mxu0 %v1541
      %2194 = vmatprep.subr.mxu0 %v1546
      %2195 = vmatpush1.msra.mxu0 %v1545
      %2196 = vmatprep.subr.mxu0 %v1550
      %2197 = vmatpush1.msra.mxu0 %v1549
      %2198 = vmatprep.subr.mxu0 %v1554
      %2199 = vmatpush1.msra.mxu0 %v1553
      %2200 = vmatprep.subr.mxu0 %v1558
      %2201 = vmatpush1.msra.mxu0 %v1557
      %2202 = vmatprep.subr.mxu0 %v1562
      %2203 = vmatpush1.msra.mxu0 %v1561
      %2204 = vmatprep.subr.mxu0 %v1566
      %2205 = vmatpush1.msra.mxu0 %v1565
      %2206 = vmatprep.subr.mxu0 %v1570
      %2207 = vmatpush1.msra.mxu0 %v1569
      %2208 = vmatprep.subr.mxu0 %v1574
      %2209 = vmatpush1.msra.mxu0 %v1573
      %2210 = vmatprep.subr.mxu0 %v1578
      %2211 = vmatpush1.msra.mxu0 %v1577
      %2212 = vmatprep.mubr.f32.mxu0 %v1319
      %2213 = vmatmul.mubr.f32.gmra.mrb[0].mxu0 %v1318
      %v2214 = vpop.f32.mrb[0].mxu0
      %v2215 = vadd.f32 %v2144, %v2214
      %v2216 = vpop.f32.mrb[0].mxu0
      %v2217 = vadd.f32 %v2146, %v2216
      %2218 = vdwg.mxu0
      %2219 = vmatprep.subr.mxu0 %v1582
      %2220 = vmatpush1.msra.mxu0 %v1581
      %2221 = vmatprep.subr.mxu0 %v1586
      %2222 = vmatpush1.msra.mxu0 %v1585
      %2223 = vmatprep.subr.mxu0 %v1590
      %2224 = vmatpush1.msra.mxu0 %v1589
      %2225 = vmatprep.subr.mxu0 %v1594
      %2226 = vmatpush1.msra.mxu0 %v1593
      %2227 = vmatprep.subr.mxu0 %v1598
      %2228 = vmatpush1.msra.mxu0 %v1597
      %2229 = vmatprep.subr.mxu0 %v1602
      %2230 = vmatpush1.msra.mxu0 %v1601
      %2231 = vmatprep.subr.mxu0 %v1606
      %2232 = vmatpush1.msra.mxu0 %v1605
      %2233 = vmatprep.subr.mxu0 %v1610
      %2234 = vmatpush1.msra.mxu0 %v1609
      %2235 = vmatprep.subr.mxu0 %v1614
      %2236 = vmatpush1.msra.mxu0 %v1613
      %2237 = vmatprep.subr.mxu0 %v1618
      %2238 = vmatpush1.msra.mxu0 %v1617
      %2239 = vmatprep.subr.mxu0 %v1622
      %2240 = vmatpush1.msra.mxu0 %v1621
      %2241 = vmatprep.subr.mxu0 %v1626
      %2242 = vmatpush1.msra.mxu0 %v1625
      %2243 = vmatprep.subr.mxu0 %v1630
      %2244 = vmatpush1.msra.mxu0 %v1629
      %2245 = vmatprep.subr.mxu0 %v1634
      %2246 = vmatpush1.msra.mxu0 %v1633
      %2247 = vmatprep.subr.mxu0 %v1638
      %2248 = vmatpush1.msra.mxu0 %v1637
      %2249 = vmatprep.subr.mxu0 %v1642
      %2250 = vmatpush1.msra.mxu0 %v1641
      %2251 = vmatprep.subr.mxu0 %v1646
      %2252 = vmatpush1.msra.mxu0 %v1645
      %2253 = vmatprep.subr.mxu0 %v1650
      %2254 = vmatpush1.msra.mxu0 %v1649
      %2255 = vmatprep.subr.mxu0 %v1654
      %2256 = vmatpush1.msra.mxu0 %v1653
      %2257 = vmatprep.subr.mxu0 %v1658
      %2258 = vmatpush1.msra.mxu0 %v1657
      %2259 = vmatprep.subr.mxu0 %v1662
      %2260 = vmatpush1.msra.mxu0 %v1661
      %2261 = vmatprep.subr.mxu0 %v1666
      %2262 = vmatpush1.msra.mxu0 %v1665
      %2263 = vmatprep.subr.mxu0 %v1670
      %2264 = vmatpush1.msra.mxu0 %v1669
      %2265 = vmatprep.subr.mxu0 %v1674
      %2266 = vmatpush1.msra.mxu0 %v1673
      %2267 = vmatprep.subr.mxu0 %v1678
      %2268 = vmatpush1.msra.mxu0 %v1677
      %2269 = vmatprep.subr.mxu0 %v1682
      %2270 = vmatpush1.msra.mxu0 %v1681
      %2271 = vmatprep.subr.mxu0 %v1686
      %2272 = vmatpush1.msra.mxu0 %v1685
      %2273 = vmatprep.subr.mxu0 %v1690
      %2274 = vmatpush1.msra.mxu0 %v1689
      %2275 = vmatprep.subr.mxu0 %v1694
      %2276 = vmatpush1.msra.mxu0 %v1693
      %2277 = vmatprep.subr.mxu0 %v1698
      %2278 = vmatpush1.msra.mxu0 %v1697
      %2279 = vmatprep.subr.mxu0 %v1702
      %2280 = vmatpush1.msra.mxu0 %v1701
      %2281 = vmatprep.subr.mxu0 %v1706
      %2282 = vmatpush1.msra.mxu0 %v1705
      %2283 = vmatprep.mubr.f32.mxu0 %v1321
      %2284 = vmatmul.mubr.f32.gmra.mrb[0].mxu0 %v1320
      %v2285 = vpop.f32.mrb[0].mxu0
      %v2286 = vadd.f32 %v2215, %v2285
      %v2287 = vpop.f32.mrb[0].mxu0
      %v2288 = vadd.f32 %v2217, %v2287
      %2289 = vdwg.mxu0
      %2290 = vmatprep.subr.mxu0 %v1710
      %2291 = vmatpush1.msra.mxu0 %v1709
      %2292 = vmatprep.subr.mxu0 %v1714
      %2293 = vmatpush1.msra.mxu0 %v1713
      %2294 = vmatprep.subr.mxu0 %v1718
      %2295 = vmatpush1.msra.mxu0 %v1717
      %2296 = vmatprep.subr.mxu0 %v1722
      %2297 = vmatpush1.msra.mxu0 %v1721
      %2298 = vmatprep.subr.mxu0 %v1726
      %2299 = vmatpush1.msra.mxu0 %v1725
      %2300 = vmatprep.subr.mxu0 %v1730
      %2301 = vmatpush1.msra.mxu0 %v1729
      %2302 = vmatprep.subr.mxu0 %v1734
      %2303 = vmatpush1.msra.mxu0 %v1733
      %2304 = vmatprep.subr.mxu0 %v1738
      %2305 = vmatpush1.msra.mxu0 %v1737
      %2306 = vmatprep.subr.mxu0 %v1742
      %2307 = vmatpush1.msra.mxu0 %v1741
      %2308 = vmatprep.subr.mxu0 %v1746
      %2309 = vmatpush1.msra.mxu0 %v1745
      %2310 = vmatprep.subr.mxu0 %v1750
      %2311 = vmatpush1.msra.mxu0 %v1749
      %2312 = vmatprep.subr.mxu0 %v1754
      %2313 = vmatpush1.msra.mxu0 %v1753
      %2314 = vmatprep.subr.mxu0 %v1758
      %2315 = vmatpush1.msra.mxu0 %v1757
      %2316 = vmatprep.subr.mxu0 %v1762
      %2317 = vmatpush1.msra.mxu0 %v1761
      %2318 = vmatprep.subr.mxu0 %v1766
      %2319 = vmatpush1.msra.mxu0 %v1765
      %2320 = vmatprep.subr.mxu0 %v1770
      %2321 = vmatpush1.msra.mxu0 %v1769
      %2322 = vmatprep.subr.mxu0 0.0
      %2323 = vmatpush1.msra.mxu0 0.0
      %2324 = vmatprep.subr.mxu0 0.0
      %2325 = vmatpush1.msra.mxu0 0.0
      %2326 = vmatprep.subr.mxu0 0.0
      %2327 = vmatpush1.msra.mxu0 0.0
      %2328 = vmatprep.subr.mxu0 0.0
      %2329 = vmatpush1.msra.mxu0 0.0
      %2330 = vmatprep.subr.mxu0 0.0
      %2331 = vmatpush1.msra.mxu0 0.0
      %2332 = vmatprep.subr.mxu0 0.0
      %2333 = vmatpush1.msra.mxu0 0.0
      %2334 = vmatprep.subr.mxu0 0.0
      %2335 = vmatpush1.msra.mxu0 0.0
      %2336 = vmatprep.subr.mxu0 0.0
      %2337 = vmatpush1.msra.mxu0 0.0
      %2338 = vmatprep.subr.mxu0 0.0
      %2339 = vmatpush1.msra.mxu0 0.0
      %2340 = vmatprep.subr.mxu0 0.0
      %2341 = vmatpush1.msra.mxu0 0.0
      %2342 = vmatprep.subr.mxu0 0.0
      %2343 = vmatpush1.msra.mxu0 0.0
      %2344 = vmatprep.subr.mxu0 0.0
      %2345 = vmatpush1.msra.mxu0 0.0
      %2346 = vmatprep.subr.mxu0 0.0
      %2347 = vmatpush1.msra.mxu0 0.0
      %2348 = vmatprep.subr.mxu0 0.0
      %2349 = vmatpush1.msra.mxu0 0.0
      %2350 = vmatprep.subr.mxu0 0.0
      %2351 = vmatpush1.msra.mxu0 0.0
      %2352 = vmatprep.subr.mxu0 0.0
      %2353 = vmatpush1.msra.mxu0 0.0
      %2354 = vmatprep.mubr.f32.mxu0 0.0
      %2355 = vmatmul.mubr.f32.gmra.mrb[0].mxu0 %v1322
      %v2356 = vpop.f32.mrb[0].mxu0
      %v2357 = vadd.f32 %v2286, %v2356
      %v2358 = vpop.f32.mrb[0].mxu0
      %v2359 = vadd.f32 %v2288, %v2358
      %2360 = vdwg.mxu0
      %vm2361 = vcmp.ge.f32.partialorder %v2073, 0.0
      %vm2362 = vcmp.ge.f32.partialorder %v2075, 0.0
      %vm2363 = vcmp.ge.f32.partialorder %v2357, 0.0
      %vm2364 = vcmp.ge.f32.partialorder %v2359, 0.0
      %v2365 = vmul.f32 %v2073, 0.01
      %v2366 = vmul.f32 %v2075, 0.01
      %v2367 = vmul.f32 %v2357, 0.01
      %v2368 = vmul.f32 %v2359, 0.01
      %v2369 = vsel %vm2361, %v2073, %v2365
      %v2370 = vsel %vm2362, %v2075, %v2366
      %v2371 = vsel %vm2363, %v2357, %v2367
      %v2372 = vsel %vm2364, %v2359, %v2368
      %v2373 = vld [vmem:[#allocation8] sm:$0xff]
      %v2374 = vld [vmem:[#allocation8 + $0x8] sm:$0xff]
      %v2375 = vld [vmem:[#allocation8 + $0x10] sm:$0xff]
      %v2376 = vld [vmem:[#allocation8 + $0x18] sm:$0xff]
      %v2377 = vld [vmem:[#allocation8 + $0x20] sm:$0xff]
      %v2378 = vld [vmem:[#allocation8 + $0x28] sm:$0xff]
      %v2379 = vld [vmem:[#allocation8 + $0x30] sm:$0xff]
      %v2380 = vld [vmem:[#allocation8 + $0x38] sm:$0xff]
      %v2381 = vld [vmem:[#allocation8 + $0x40] sm:$0xff]
      %v2382 = vld [vmem:[#allocation8 + $0x48] sm:$0xff]
      %v2383 = vld [vmem:[#allocation8 + $0x50] sm:$0xff]
      %v2384 = vld [vmem:[#allocation8 + $0x58] sm:$0xff]
      %v2385 = vld [vmem:[#allocation8 + $0x60] sm:$0xff]
      %v2386 = vld [vmem:[#allocation8 + $0x68] sm:$0xff]
      %v2387 = vld [vmem:[#allocation8 + $0x70] sm:$0xff]
      %v2388 = vld [vmem:[#allocation8 + $0x78] sm:$0xff]
      %v2389 = vld [vmem:[#allocation8 + $0x80] sm:$0xff]
      %v2390 = vld [vmem:[#allocation8 + $0x88] sm:$0xff]
      %v2391 = vld [vmem:[#allocation8 + $0x90] sm:$0xff]
      %v2392 = vld [vmem:[#allocation8 + $0x98] sm:$0xff]
      %v2393 = vld [vmem:[#allocation8 + $0xa0] sm:$0xff]
      %v2394 = vld [vmem:[#allocation8 + $0xa8] sm:$0xff]
      %v2395 = vld [vmem:[#allocation8 + $0xb0] sm:$0xff]
      %v2396 = vld [vmem:[#allocation8 + $0xb8] sm:$0xff]
      %v2397 = vld [vmem:[#allocation8 + $0xc0] sm:$0xff]
      %v2398 = vld [vmem:[#allocation8 + $0xc8] sm:$0xff]
      %v2399 = vld [vmem:[#allocation8 + $0xd0] sm:$0xff]
      %v2400 = vld [vmem:[#allocation8 + $0xd8] sm:$0xff]
      %v2401 = vld [vmem:[#allocation8 + $0xe0] sm:$0xff]
      %v2402 = vld [vmem:[#allocation8 + $0xe8] sm:$0xff]
      %v2403 = vld [vmem:[#allocation8 + $0xf0] sm:$0xff]
      %v2404 = vld [vmem:[#allocation8 + $0xf8] sm:$0xff]
      %v2405 = vld [vmem:[#allocation8 + $0x100] sm:$0xff]
      %v2406 = vld [vmem:[#allocation8 + $0x108] sm:$0xff]
      %v2407 = vld [vmem:[#allocation8 + $0x110] sm:$0xff]
      %v2408 = vld [vmem:[#allocation8 + $0x118] sm:$0xff]
      %v2409 = vld [vmem:[#allocation8 + $0x120] sm:$0xff]
      %v2410 = vld [vmem:[#allocation8 + $0x128] sm:$0xff]
      %v2411 = vld [vmem:[#allocation8 + $0x130] sm:$0xff]
      %v2412 = vld [vmem:[#allocation8 + $0x138] sm:$0xff]
      %v2413 = vld [vmem:[#allocation8 + $0x140] sm:$0xff]
      %v2414 = vld [vmem:[#allocation8 + $0x148] sm:$0xff]
      %v2415 = vld [vmem:[#allocation8 + $0x150] sm:$0xff]
      %v2416 = vld [vmem:[#allocation8 + $0x158] sm:$0xff]
      %v2417 = vld [vmem:[#allocation8 + $0x160] sm:$0xff]
      %v2418 = vld [vmem:[#allocation8 + $0x168] sm:$0xff]
      %v2419 = vld [vmem:[#allocation8 + $0x170] sm:$0xff]
      %v2420 = vld [vmem:[#allocation8 + $0x178] sm:$0xff]
      %v2421 = vld [vmem:[#allocation8 + $0x180] sm:$0xff]
      %v2422 = vld [vmem:[#allocation8 + $0x188] sm:$0xff]
      %v2423 = vld [vmem:[#allocation8 + $0x190] sm:$0xff]
      %v2424 = vld [vmem:[#allocation8 + $0x198] sm:$0xff]
      %v2425 = vld [vmem:[#allocation8 + $0x1a0] sm:$0xff]
      %v2426 = vld [vmem:[#allocation8 + $0x1a8] sm:$0xff]
      %v2427 = vld [vmem:[#allocation8 + $0x1b0] sm:$0xff]
      %v2428 = vld [vmem:[#allocation8 + $0x1b8] sm:$0xff]
      %v2429 = vld [vmem:[#allocation8 + $0x1c0] sm:$0xff]
      %v2430 = vld [vmem:[#allocation8 + $0x1c8] sm:$0xff]
      %v2431 = vld [vmem:[#allocation8 + $0x1d0] sm:$0xff]
      %v2432 = vld [vmem:[#allocation8 + $0x1d8] sm:$0xff]
      %v2433 = vld [vmem:[#allocation8 + $0x1e0] sm:$0xff]
      %v2434 = vld [vmem:[#allocation8 + $0x1e8] sm:$0xff]
      %v2435 = vld [vmem:[#allocation8 + $0x1f0] sm:$0xff]
      %v2436 = vld [vmem:[#allocation8 + $0x1f8] sm:$0xff]
      %v2437 = vld [vmem:[#allocation8 + $0x200] sm:$0xff]
      %v2438 = vld [vmem:[#allocation8 + $0x208] sm:$0xff]
      %v2439 = vld [vmem:[#allocation8 + $0x210] sm:$0xff]
      %v2440 = vld [vmem:[#allocation8 + $0x218] sm:$0xff]
      %v2441 = vld [vmem:[#allocation8 + $0x220] sm:$0xff]
      %v2442 = vld [vmem:[#allocation8 + $0x228] sm:$0xff]
      %v2443 = vld [vmem:[#allocation8 + $0x230] sm:$0xff]
      %v2444 = vld [vmem:[#allocation8 + $0x238] sm:$0xff]
      %v2445 = vld [vmem:[#allocation8 + $0x240] sm:$0xff]
      %v2446 = vld [vmem:[#allocation8 + $0x248] sm:$0xff]
      %v2447 = vld [vmem:[#allocation8 + $0x250] sm:$0xff]
      %v2448 = vld [vmem:[#allocation8 + $0x258] sm:$0xff]
      %v2449 = vld [vmem:[#allocation8 + $0x260] sm:$0xff]
      %v2450 = vld [vmem:[#allocation8 + $0x268] sm:$0xff]
      %v2451 = vld [vmem:[#allocation8 + $0x270] sm:$0xff]
      %v2452 = vld [vmem:[#allocation8 + $0x278] sm:$0xff]
      %v2453 = vld [vmem:[#allocation8 + $0x280] sm:$0xff]
      %v2454 = vld [vmem:[#allocation8 + $0x288] sm:$0xff]
      %v2455 = vld [vmem:[#allocation8 + $0x290] sm:$0xff]
      %v2456 = vld [vmem:[#allocation8 + $0x298] sm:$0xff]
      %v2457 = vld [vmem:[#allocation8 + $0x2a0] sm:$0xff]
      %v2458 = vld [vmem:[#allocation8 + $0x2a8] sm:$0xff]
      %v2459 = vld [vmem:[#allocation8 + $0x2b0] sm:$0xff]
      %v2460 = vld [vmem:[#allocation8 + $0x2b8] sm:$0xff]
      %v2461 = vld [vmem:[#allocation8 + $0x2c0] sm:$0xff]
      %v2462 = vld [vmem:[#allocation8 + $0x2c8] sm:$0xff]
      %v2463 = vld [vmem:[#allocation8 + $0x2d0] sm:$0xff]
      %v2464 = vld [vmem:[#allocation8 + $0x2d8] sm:$0xff]
      %v2465 = vld [vmem:[#allocation8 + $0x2e0] sm:$0xff]
      %v2466 = vld [vmem:[#allocation8 + $0x2e8] sm:$0xff]
      %v2467 = vld [vmem:[#allocation8 + $0x2f0] sm:$0xff]
      %v2468 = vld [vmem:[#allocation8 + $0x2f8] sm:$0xff]
      %v2469 = vld [vmem:[#allocation8 + $0x300] sm:$0xff]
      %v2470 = vld [vmem:[#allocation8 + $0x308] sm:$0xff]
      %v2471 = vld [vmem:[#allocation8 + $0x310] sm:$0xff]
      %v2472 = vld [vmem:[#allocation8 + $0x318] sm:$0xff]
      %v2473 = vld [vmem:[#allocation8 + $0x320] sm:$0xff]
      %v2474 = vld [vmem:[#allocation8 + $0x328] sm:$0xff]
      %v2475 = vld [vmem:[#allocation8 + $0x330] sm:$0xff]
      %v2476 = vld [vmem:[#allocation8 + $0x338] sm:$0xff]
      %v2477 = vld [vmem:[#allocation8 + $0x340] sm:$0xff]
      %v2478 = vld [vmem:[#allocation8 + $0x348] sm:$0xff]
      %v2479 = vld [vmem:[#allocation8 + $0x350] sm:$0xff]
      %v2480 = vld [vmem:[#allocation8 + $0x358] sm:$0xff]
      %v2481 = vld [vmem:[#allocation8 + $0x360] sm:$0xff]
      %v2482 = vld [vmem:[#allocation8 + $0x368] sm:$0xff]
      %v2483 = vld [vmem:[#allocation8 + $0x370] sm:$0xff]
      %v2484 = vld [vmem:[#allocation8 + $0x378] sm:$0xff]
      %v2485 = vld [vmem:[#allocation8 + $0x380] sm:$0xff]
      %v2486 = vld [vmem:[#allocation8 + $0x388] sm:$0xff]
      %v2487 = vld [vmem:[#allocation8 + $0x390] sm:$0xff]
      %v2488 = vld [vmem:[#allocation8 + $0x398] sm:$0xff]
      %v2489 = vld [vmem:[#allocation8 + $0x3a0] sm:$0xff]
      %v2490 = vld [vmem:[#allocation8 + $0x3a8] sm:$0xff]
      %v2491 = vld [vmem:[#allocation8 + $0x3b0] sm:$0xff]
      %v2492 = vld [vmem:[#allocation8 + $0x3b8] sm:$0xff]
      %v2493 = vld [vmem:[#allocation8 + $0x3c0] sm:$0xff]
      %v2494 = vld [vmem:[#allocation8 + $0x3c8] sm:$0xff]
      %v2495 = vld [vmem:[#allocation8 + $0x3d0] sm:$0xff]
      %v2496 = vld [vmem:[#allocation8 + $0x3d8] sm:$0xff]
      %v2497 = vld [vmem:[#allocation8 + $0x3e0] sm:$0xff]
      %v2498 = vld [vmem:[#allocation8 + $0x3e8] sm:$0xff]
      %v2499 = vld [vmem:[#allocation8 + $0x3f0] sm:$0xff]
      %v2500 = vld [vmem:[#allocation8 + $0x3f8] sm:$0xff]
      %v2501 = vld [vmem:[#allocation8 + $0x400] sm:$0xff]
      %v2502 = vld [vmem:[#allocation8 + $0x408] sm:$0xff]
      %v2503 = vld [vmem:[#allocation8 + $0x410] sm:$0xff]
      %v2504 = vld [vmem:[#allocation8 + $0x418] sm:$0xff]
      %v2505 = vld [vmem:[#allocation8 + $0x420] sm:$0xff]
      %v2506 = vld [vmem:[#allocation8 + $0x428] sm:$0xff]
      %v2507 = vld [vmem:[#allocation8 + $0x430] sm:$0xff]
      %v2508 = vld [vmem:[#allocation8 + $0x438] sm:$0xff]
      %v2509 = vld [vmem:[#allocation8 + $0x440] sm:$0xff]
      %v2510 = vld [vmem:[#allocation8 + $0x448] sm:$0xff]
      %v2511 = vld [vmem:[#allocation8 + $0x450] sm:$0xff]
      %v2512 = vld [vmem:[#allocation8 + $0x458] sm:$0xff]
      %v2513 = vld [vmem:[#allocation8 + $0x460] sm:$0xff]
      %v2514 = vld [vmem:[#allocation8 + $0x468] sm:$0xff]
      %v2515 = vld [vmem:[#allocation8 + $0x470] sm:$0xff]
      %v2516 = vld [vmem:[#allocation8 + $0x478] sm:$0xff]
      %v2517 = vld [vmem:[#allocation8 + $0x480] sm:$0xff]
      %v2518 = vld [vmem:[#allocation8 + $0x488] sm:$0xff]
      %v2519 = vld [vmem:[#allocation8 + $0x490] sm:$0xff]
      %v2520 = vld [vmem:[#allocation8 + $0x498] sm:$0xff]
      %v2521 = vld [vmem:[#allocation8 + $0x4a0] sm:$0xff]
      %v2522 = vld [vmem:[#allocation8 + $0x4a8] sm:$0xff]
      %v2523 = vld [vmem:[#allocation8 + $0x4b0] sm:$0xff]
      %v2524 = vld [vmem:[#allocation8 + $0x4b8] sm:$0xff]
      %v2525 = vld [vmem:[#allocation8 + $0x4c0] sm:$0xff]
      %v2526 = vld [vmem:[#allocation8 + $0x4c8] sm:$0xff]
      %v2527 = vld [vmem:[#allocation8 + $0x4d0] sm:$0xff]
      %v2528 = vld [vmem:[#allocation8 + $0x4d8] sm:$0xff]
      %v2529 = vld [vmem:[#allocation8 + $0x4e0] sm:$0xff]
      %v2530 = vld [vmem:[#allocation8 + $0x4e8] sm:$0xff]
      %v2531 = vld [vmem:[#allocation8 + $0x4f0] sm:$0xff]
      %v2532 = vld [vmem:[#allocation8 + $0x4f8] sm:$0xff]
      %v2533 = vld [vmem:[#allocation8 + $0x500] sm:$0xff]
      %v2534 = vld [vmem:[#allocation8 + $0x508] sm:$0xff]
      %v2535 = vld [vmem:[#allocation8 + $0x510] sm:$0xff]
      %v2536 = vld [vmem:[#allocation8 + $0x518] sm:$0xff]
      %v2537 = vld [vmem:[#allocation8 + $0x520] sm:$0xff]
      %v2538 = vld [vmem:[#allocation8 + $0x528] sm:$0xff]
      %v2539 = vld [vmem:[#allocation8 + $0x530] sm:$0xff]
      %v2540 = vld [vmem:[#allocation8 + $0x538] sm:$0xff]
      %v2541 = vld [vmem:[#allocation8 + $0x540] sm:$0xff]
      %v2542 = vld [vmem:[#allocation8 + $0x548] sm:$0xff]
      %v2543 = vld [vmem:[#allocation8 + $0x550] sm:$0xff]
      %v2544 = vld [vmem:[#allocation8 + $0x558] sm:$0xff]
      %v2545 = vld [vmem:[#allocation8 + $0x560] sm:$0xff]
      %v2546 = vld [vmem:[#allocation8 + $0x568] sm:$0xff]
      %v2547 = vld [vmem:[#allocation8 + $0x570] sm:$0xff]
      %v2548 = vld [vmem:[#allocation8 + $0x578] sm:$0xff]
      %v2549 = vld [vmem:[#allocation8 + $0x580] sm:$0xff]
      %v2550 = vld [vmem:[#allocation8 + $0x588] sm:$0xff]
      %v2551 = vld [vmem:[#allocation8 + $0x590] sm:$0xff]
      %v2552 = vld [vmem:[#allocation8 + $0x598] sm:$0xff]
      %v2553 = vld [vmem:[#allocation8 + $0x5a0] sm:$0xff]
      %v2554 = vld [vmem:[#allocation8 + $0x5a8] sm:$0xff]
      %v2555 = vld [vmem:[#allocation8 + $0x5b0] sm:$0xff]
      %v2556 = vld [vmem:[#allocation8 + $0x5b8] sm:$0xff]
      %v2557 = vld [vmem:[#allocation8 + $0x5c0] sm:$0xff]
      %v2558 = vld [vmem:[#allocation8 + $0x5c8] sm:$0xff]
      %v2559 = vld [vmem:[#allocation8 + $0x5d0] sm:$0xff]
      %v2560 = vld [vmem:[#allocation8 + $0x5d8] sm:$0xff]
      %v2561 = vld [vmem:[#allocation8 + $0x5e0] sm:$0xff]
      %v2562 = vld [vmem:[#allocation8 + $0x5e8] sm:$0xff]
      %v2563 = vld [vmem:[#allocation8 + $0x5f0] sm:$0xff]
      %v2564 = vld [vmem:[#allocation8 + $0x5f8] sm:$0xff]
      %v2565 = vld [vmem:[#allocation8 + $0x600] sm:$0xff]
      %v2566 = vld [vmem:[#allocation8 + $0x608] sm:$0xff]
      %v2567 = vld [vmem:[#allocation8 + $0x610] sm:$0xff]
      %v2568 = vld [vmem:[#allocation8 + $0x618] sm:$0xff]
      %v2569 = vld [vmem:[#allocation8 + $0x620] sm:$0xff]
      %v2570 = vld [vmem:[#allocation8 + $0x628] sm:$0xff]
      %v2571 = vld [vmem:[#allocation8 + $0x630] sm:$0xff]
      %v2572 = vld [vmem:[#allocation8 + $0x638] sm:$0xff]
      %v2573 = vld [vmem:[#allocation8 + $0x640] sm:$0xff]
      %v2574 = vld [vmem:[#allocation8 + $0x648] sm:$0xff]
      %v2575 = vld [vmem:[#allocation8 + $0x650] sm:$0xff]
      %v2576 = vld [vmem:[#allocation8 + $0x658] sm:$0xff]
      %v2577 = vld [vmem:[#allocation8 + $0x660] sm:$0xff]
      %v2578 = vld [vmem:[#allocation8 + $0x668] sm:$0xff]
      %v2579 = vld [vmem:[#allocation8 + $0x670] sm:$0xff]
      %v2580 = vld [vmem:[#allocation8 + $0x678] sm:$0xff]
      %v2581 = vld [vmem:[#allocation8 + $0x680] sm:$0xff]
      %v2582 = vld [vmem:[#allocation8 + $0x688] sm:$0xff]
      %v2583 = vld [vmem:[#allocation8 + $0x690] sm:$0xff]
      %v2584 = vld [vmem:[#allocation8 + $0x698] sm:$0xff]
      %v2585 = vld [vmem:[#allocation8 + $0x6a0] sm:$0xff]
      %v2586 = vld [vmem:[#allocation8 + $0x6a8] sm:$0xff]
      %v2587 = vld [vmem:[#allocation8 + $0x6b0] sm:$0xff]
      %v2588 = vld [vmem:[#allocation8 + $0x6b8] sm:$0xff]
      %v2589 = vld [vmem:[#allocation8 + $0x6c0] sm:$0xff]
      %v2590 = vld [vmem:[#allocation8 + $0x6c8] sm:$0xff]
      %v2591 = vld [vmem:[#allocation8 + $0x6d0] sm:$0xff]
      %v2592 = vld [vmem:[#allocation8 + $0x6d8] sm:$0xff]
      %v2593 = vld [vmem:[#allocation8 + $0x6e0] sm:$0xff]
      %v2594 = vld [vmem:[#allocation8 + $0x6e8] sm:$0xff]
      %v2595 = vld [vmem:[#allocation8 + $0x6f0] sm:$0xff]
      %v2596 = vld [vmem:[#allocation8 + $0x6f8] sm:$0xff]
      %v2597 = vld [vmem:[#allocation8 + $0x700] sm:$0xff]
      %v2598 = vld [vmem:[#allocation8 + $0x708] sm:$0xff]
      %v2599 = vld [vmem:[#allocation8 + $0x710] sm:$0xff]
      %v2600 = vld [vmem:[#allocation8 + $0x718] sm:$0xff]
      %v2601 = vld [vmem:[#allocation8 + $0x720] sm:$0xff]
      %v2602 = vld [vmem:[#allocation8 + $0x728] sm:$0xff]
      %v2603 = vld [vmem:[#allocation8 + $0x730] sm:$0xff]
      %v2604 = vld [vmem:[#allocation8 + $0x738] sm:$0xff]
      %v2605 = vld [vmem:[#allocation8 + $0x740] sm:$0xff]
      %v2606 = vld [vmem:[#allocation8 + $0x748] sm:$0xff]
      %v2607 = vld [vmem:[#allocation8 + $0x750] sm:$0xff]
      %v2608 = vld [vmem:[#allocation8 + $0x758] sm:$0xff]
      %v2609 = vld [vmem:[#allocation8 + $0x760] sm:$0xff]
      %v2610 = vld [vmem:[#allocation8 + $0x768] sm:$0xff]
      %v2611 = vld [vmem:[#allocation8 + $0x770] sm:$0xff]
      %v2612 = vld [vmem:[#allocation8 + $0x778] sm:$0xff]
      %v2613 = vld [vmem:[#allocation8 + $0x780] sm:$0xff]
      %v2614 = vld [vmem:[#allocation8 + $0x788] sm:$0xff]
      %v2615 = vld [vmem:[#allocation8 + $0x790] sm:$0xff]
      %v2616 = vld [vmem:[#allocation8 + $0x798] sm:$0xff]
      %v2617 = vld [vmem:[#allocation8 + $0x7a0] sm:$0xff]
      %v2618 = vld [vmem:[#allocation8 + $0x7a8] sm:$0xff]
      %v2619 = vld [vmem:[#allocation8 + $0x7b0] sm:$0xff]
      %v2620 = vld [vmem:[#allocation8 + $0x7b8] sm:$0xff]
      %v2621 = vld [vmem:[#allocation8 + $0x7c0] sm:$0xff]
      %v2622 = vld [vmem:[#allocation8 + $0x7c8] sm:$0xff]
      %v2623 = vld [vmem:[#allocation8 + $0x7d0] sm:$0xff]
      %v2624 = vld [vmem:[#allocation8 + $0x7d8] sm:$0xff]
      %v2625 = vld [vmem:[#allocation8 + $0x7e0] sm:$0xff]
      %v2626 = vld [vmem:[#allocation8 + $0x7e8] sm:$0xff]
      %v2627 = vld [vmem:[#allocation8 + $0x7f0] sm:$0xff]
      %v2628 = vld [vmem:[#allocation8 + $0x7f8] sm:$0xff]
      %v2629 = vld [vmem:[#allocation10] sm:$0xf]
      %v2631 = vlaneseq
      %v2632 = vshrl.u32 %v2631, 7
      %v2633 = vsub.s32 0, %v2632
      %v2634 = vrot.slane %v2629, %v2633
      %v2635 = vlaneseq
      %v2636 = vshrl.u32 %v2635, 7
      %v2637 = vsub.s32 1, %v2636
      %v2638 = vrot.slane %v2629, %v2637
      %v2639 = vlaneseq
      %v2640 = vshrl.u32 %v2639, 7
      %v2641 = vsub.s32 2, %v2640
      %v2642 = vrot.slane %v2629, %v2641
      %v2643 = vlaneseq
      %v2644 = vshrl.u32 %v2643, 7
      %v2645 = vsub.s32 3, %v2644
      %v2646 = vrot.slane %v2629, %v2645
      %2651 = vmatprep.subr.mxu0 %v2374
      %2652 = vmatpush1.msra.mxu0 %v2373
      %2653 = vmatprep.subr.mxu0 %v2378
      %2654 = vmatpush1.msra.mxu0 %v2377
      %2655 = vmatprep.subr.mxu0 %v2382
      %2656 = vmatpush1.msra.mxu0 %v2381
      %2657 = vmatprep.subr.mxu0 %v2386
      %2658 = vmatpush1.msra.mxu0 %v2385
      %2659 = vmatprep.subr.mxu0 %v2390
      %2660 = vmatpush1.msra.mxu0 %v2389
      %2661 = vmatprep.subr.mxu0 %v2394
      %2662 = vmatpush1.msra.mxu0 %v2393
      %2663 = vmatprep.subr.mxu0 %v2398
      %2664 = vmatpush1.msra.mxu0 %v2397
      %2665 = vmatprep.subr.mxu0 %v2402
      %2666 = vmatpush1.msra.mxu0 %v2401
      %2667 = vmatprep.subr.mxu0 %v2406
      %2668 = vmatpush1.msra.mxu0 %v2405
      %2669 = vmatprep.subr.mxu0 %v2410
      %2670 = vmatpush1.msra.mxu0 %v2409
      %2671 = vmatprep.subr.mxu0 %v2414
      %2672 = vmatpush1.msra.mxu0 %v2413
      %2673 = vmatprep.subr.mxu0 %v2418
      %2674 = vmatpush1.msra.mxu0 %v2417
      %2675 = vmatprep.subr.mxu0 %v2422
      %2676 = vmatpush1.msra.mxu0 %v2421
      %2677 = vmatprep.subr.mxu0 %v2426
      %2678 = vmatpush1.msra.mxu0 %v2425
      %2679 = vmatprep.subr.mxu0 %v2430
      %2680 = vmatpush1.msra.mxu0 %v2429
      %2681 = vmatprep.subr.mxu0 %v2434
      %2682 = vmatpush1.msra.mxu0 %v2433
      %2683 = vmatprep.subr.mxu0 %v2438
      %2684 = vmatpush1.msra.mxu0 %v2437
      %2685 = vmatprep.subr.mxu0 %v2442
      %2686 = vmatpush1.msra.mxu0 %v2441
      %2687 = vmatprep.subr.mxu0 %v2446
      %2688 = vmatpush1.msra.mxu0 %v2445
      %2689 = vmatprep.subr.mxu0 %v2450
      %2690 = vmatpush1.msra.mxu0 %v2449
      %2691 = vmatprep.subr.mxu0 %v2454
      %2692 = vmatpush1.msra.mxu0 %v2453
      %2693 = vmatprep.subr.mxu0 %v2458
      %2694 = vmatpush1.msra.mxu0 %v2457
      %2695 = vmatprep.subr.mxu0 %v2462
      %2696 = vmatpush1.msra.mxu0 %v2461
      %2697 = vmatprep.subr.mxu0 %v2466
      %2698 = vmatpush1.msra.mxu0 %v2465
      %2699 = vmatprep.subr.mxu0 %v2470
      %2700 = vmatpush1.msra.mxu0 %v2469
      %2701 = vmatprep.subr.mxu0 %v2474
      %2702 = vmatpush1.msra.mxu0 %v2473
      %2703 = vmatprep.subr.mxu0 %v2478
      %2704 = vmatpush1.msra.mxu0 %v2477
      %2705 = vmatprep.subr.mxu0 %v2482
      %2706 = vmatpush1.msra.mxu0 %v2481
      %2707 = vmatprep.subr.mxu0 %v2486
      %2708 = vmatpush1.msra.mxu0 %v2485
      %2709 = vmatprep.subr.mxu0 %v2490
      %2710 = vmatpush1.msra.mxu0 %v2489
      %2711 = vmatprep.subr.mxu0 %v2494
      %2712 = vmatpush1.msra.mxu0 %v2493
      %2713 = vmatprep.subr.mxu0 %v2498
      %2714 = vmatpush1.msra.mxu0 %v2497
      %2715 = vmatprep.mubr.f32.mxu0 %v2370
      %2716 = vmatmul.mubr.f32.gmra.mrb[0].mxu0 %v2369
      %v2717 = vpop.f32.mrb[0].mxu0
      %v2718 = vadd.f32 %v2634, %v2717
      %v2719 = vpop.f32.mrb[0].mxu0
      %v2720 = vadd.f32 %v2638, %v2719
      %2721 = vdwg.mxu0
      %2722 = vmatprep.subr.mxu0 %v2502
      %2723 = vmatpush1.msra.mxu0 %v2501
      %2724 = vmatprep.subr.mxu0 %v2506
      %2725 = vmatpush1.msra.mxu0 %v2505
      %2726 = vmatprep.subr.mxu0 %v2510
      %2727 = vmatpush1.msra.mxu0 %v2509
      %2728 = vmatprep.subr.mxu0 %v2514
      %2729 = vmatpush1.msra.mxu0 %v2513
      %2730 = vmatprep.subr.mxu0 %v2518
      %2731 = vmatpush1.msra.mxu0 %v2517
      %2732 = vmatprep.subr.mxu0 %v2522
      %2733 = vmatpush1.msra.mxu0 %v2521
      %2734 = vmatprep.subr.mxu0 %v2526
      %2735 = vmatpush1.msra.mxu0 %v2525
      %2736 = vmatprep.subr.mxu0 %v2530
      %2737 = vmatpush1.msra.mxu0 %v2529
      %2738 = vmatprep.subr.mxu0 %v2534
      %2739 = vmatpush1.msra.mxu0 %v2533
      %2740 = vmatprep.subr.mxu0 %v2538
      %2741 = vmatpush1.msra.mxu0 %v2537
      %2742 = vmatprep.subr.mxu0 %v2542
      %2743 = vmatpush1.msra.mxu0 %v2541
      %2744 = vmatprep.subr.mxu0 %v2546
      %2745 = vmatpush1.msra.mxu0 %v2545
      %2746 = vmatprep.subr.mxu0 %v2550
      %2747 = vmatpush1.msra.mxu0 %v2549
      %2748 = vmatprep.subr.mxu0 %v2554
      %2749 = vmatpush1.msra.mxu0 %v2553
      %2750 = vmatprep.subr.mxu0 %v2558
      %2751 = vmatpush1.msra.mxu0 %v2557
      %2752 = vmatprep.subr.mxu0 %v2562
      %2753 = vmatpush1.msra.mxu0 %v2561
      %2754 = vmatprep.subr.mxu0 %v2566
      %2755 = vmatpush1.msra.mxu0 %v2565
      %2756 = vmatprep.subr.mxu0 %v2570
      %2757 = vmatpush1.msra.mxu0 %v2569
      %2758 = vmatprep.subr.mxu0 %v2574
      %2759 = vmatpush1.msra.mxu0 %v2573
      %2760 = vmatprep.subr.mxu0 %v2578
      %2761 = vmatpush1.msra.mxu0 %v2577
      %2762 = vmatprep.subr.mxu0 %v2582
      %2763 = vmatpush1.msra.mxu0 %v2581
      %2764 = vmatprep.subr.mxu0 %v2586
      %2765 = vmatpush1.msra.mxu0 %v2585
      %2766 = vmatprep.subr.mxu0 %v2590
      %2767 = vmatpush1.msra.mxu0 %v2589
      %2768 = vmatprep.subr.mxu0 %v2594
      %2769 = vmatpush1.msra.mxu0 %v2593
      %2770 = vmatprep.subr.mxu0 %v2598
      %2771 = vmatpush1.msra.mxu0 %v2597
      %2772 = vmatprep.subr.mxu0 %v2602
      %2773 = vmatpush1.msra.mxu0 %v2601
      %2774 = vmatprep.subr.mxu0 %v2606
      %2775 = vmatpush1.msra.mxu0 %v2605
      %2776 = vmatprep.subr.mxu0 %v2610
      %2777 = vmatpush1.msra.mxu0 %v2609
      %2778 = vmatprep.subr.mxu0 %v2614
      %2779 = vmatpush1.msra.mxu0 %v2613
      %2780 = vmatprep.subr.mxu0 %v2618
      %2781 = vmatpush1.msra.mxu0 %v2617
      %2782 = vmatprep.subr.mxu0 %v2622
      %2783 = vmatpush1.msra.mxu0 %v2621
      %2784 = vmatprep.subr.mxu0 %v2626
      %2785 = vmatpush1.msra.mxu0 %v2625
      %2786 = vmatprep.mubr.f32.mxu0 %v2372
      %2787 = vmatmul.mubr.f32.gmra.mrb[0].mxu0 %v2371
      %v2788 = vpop.f32.mrb[0].mxu0
      %v2789 = vadd.f32 %v2718, %v2788
      %v2790 = vpop.f32.mrb[0].mxu0
      %v2791 = vadd.f32 %v2720, %v2790
      %2792 = vdwg.mxu0
      %2793 = vmatprep.subr.mxu0 %v2376
      %2794 = vmatpush1.msra.mxu0 %v2375
      %2795 = vmatprep.subr.mxu0 %v2380
      %2796 = vmatpush1.msra.mxu0 %v2379
      %2797 = vmatprep.subr.mxu0 %v2384
      %2798 = vmatpush1.msra.mxu0 %v2383
      %2799 = vmatprep.subr.mxu0 %v2388
      %2800 = vmatpush1.msra.mxu0 %v2387
      %2801 = vmatprep.subr.mxu0 %v2392
      %2802 = vmatpush1.msra.mxu0 %v2391
      %2803 = vmatprep.subr.mxu0 %v2396
      %2804 = vmatpush1.msra.mxu0 %v2395
      %2805 = vmatprep.subr.mxu0 %v2400
      %2806 = vmatpush1.msra.mxu0 %v2399
      %2807 = vmatprep.subr.mxu0 %v2404
      %2808 = vmatpush1.msra.mxu0 %v2403
      %2809 = vmatprep.subr.mxu0 %v2408
      %2810 = vmatpush1.msra.mxu0 %v2407
      %2811 = vmatprep.subr.mxu0 %v2412
      %2812 = vmatpush1.msra.mxu0 %v2411
      %2813 = vmatprep.subr.mxu0 %v2416
      %2814 = vmatpush1.msra.mxu0 %v2415
      %2815 = vmatprep.subr.mxu0 %v2420
      %2816 = vmatpush1.msra.mxu0 %v2419
      %2817 = vmatprep.subr.mxu0 %v2424
      %2818 = vmatpush1.msra.mxu0 %v2423
      %2819 = vmatprep.subr.mxu0 %v2428
      %2820 = vmatpush1.msra.mxu0 %v2427
      %2821 = vmatprep.subr.mxu0 %v2432
      %2822 = vmatpush1.msra.mxu0 %v2431
      %2823 = vmatprep.subr.mxu0 %v2436
      %2824 = vmatpush1.msra.mxu0 %v2435
      %2825 = vmatprep.subr.mxu0 %v2440
      %2826 = vmatpush1.msra.mxu0 %v2439
      %2827 = vmatprep.subr.mxu0 %v2444
      %2828 = vmatpush1.msra.mxu0 %v2443
      %2829 = vmatprep.subr.mxu0 %v2448
      %2830 = vmatpush1.msra.mxu0 %v2447
      %2831 = vmatprep.subr.mxu0 %v2452
      %2832 = vmatpush1.msra.mxu0 %v2451
      %2833 = vmatprep.subr.mxu0 %v2456
      %2834 = vmatpush1.msra.mxu0 %v2455
      %2835 = vmatprep.subr.mxu0 %v2460
      %2836 = vmatpush1.msra.mxu0 %v2459
      %2837 = vmatprep.subr.mxu0 %v2464
      %2838 = vmatpush1.msra.mxu0 %v2463
      %2839 = vmatprep.subr.mxu0 %v2468
      %2840 = vmatpush1.msra.mxu0 %v2467
      %2841 = vmatprep.subr.mxu0 %v2472
      %2842 = vmatpush1.msra.mxu0 %v2471
      %2843 = vmatprep.subr.mxu0 %v2476
      %2844 = vmatpush1.msra.mxu0 %v2475
      %2845 = vmatprep.subr.mxu0 %v2480
      %2846 = vmatpush1.msra.mxu0 %v2479
      %2847 = vmatprep.subr.mxu0 %v2484
      %2848 = vmatpush1.msra.mxu0 %v2483
      %2849 = vmatprep.subr.mxu0 %v2488
      %2850 = vmatpush1.msra.mxu0 %v2487
      %2851 = vmatprep.subr.mxu0 %v2492
      %2852 = vmatpush1.msra.mxu0 %v2491
      %2853 = vmatprep.subr.mxu0 %v2496
      %2854 = vmatpush1.msra.mxu0 %v2495
      %2855 = vmatprep.subr.mxu0 %v2500
      %2856 = vmatpush1.msra.mxu0 %v2499
      %2857 = vmatprep.mubr.f32.mxu0 %v2370
      %2858 = vmatmul.mubr.f32.gmra.mrb[0].mxu0 %v2369
      %v2859 = vpop.f32.mrb[0].mxu0
      %v2860 = vadd.f32 %v2642, %v2859
      %v2861 = vpop.f32.mrb[0].mxu0
      %v2862 = vadd.f32 %v2646, %v2861
      %2863 = vdwg.mxu0
      %2864 = vmatprep.subr.mxu0 %v2504
      %2865 = vmatpush1.msra.mxu0 %v2503
      %2866 = vmatprep.subr.mxu0 %v2508
      %2867 = vmatpush1.msra.mxu0 %v2507
      %2868 = vmatprep.subr.mxu0 %v2512
      %2869 = vmatpush1.msra.mxu0 %v2511
      %2870 = vmatprep.subr.mxu0 %v2516
      %2871 = vmatpush1.msra.mxu0 %v2515
      %2872 = vmatprep.subr.mxu0 %v2520
      %2873 = vmatpush1.msra.mxu0 %v2519
      %2874 = vmatprep.subr.mxu0 %v2524
      %2875 = vmatpush1.msra.mxu0 %v2523
      %2876 = vmatprep.subr.mxu0 %v2528
      %2877 = vmatpush1.msra.mxu0 %v2527
      %2878 = vmatprep.subr.mxu0 %v2532
      %2879 = vmatpush1.msra.mxu0 %v2531
      %2880 = vmatprep.subr.mxu0 %v2536
      %2881 = vmatpush1.msra.mxu0 %v2535
      %2882 = vmatprep.subr.mxu0 %v2540
      %2883 = vmatpush1.msra.mxu0 %v2539
      %2884 = vmatprep.subr.mxu0 %v2544
      %2885 = vmatpush1.msra.mxu0 %v2543
      %2886 = vmatprep.subr.mxu0 %v2548
      %2887 = vmatpush1.msra.mxu0 %v2547
      %2888 = vmatprep.subr.mxu0 %v2552
      %2889 = vmatpush1.msra.mxu0 %v2551
      %2890 = vmatprep.subr.mxu0 %v2556
      %2891 = vmatpush1.msra.mxu0 %v2555
      %2892 = vmatprep.subr.mxu0 %v2560
      %2893 = vmatpush1.msra.mxu0 %v2559
      %2894 = vmatprep.subr.mxu0 %v2564
      %2895 = vmatpush1.msra.mxu0 %v2563
      %2896 = vmatprep.subr.mxu0 %v2568
      %2897 = vmatpush1.msra.mxu0 %v2567
      %2898 = vmatprep.subr.mxu0 %v2572
      %2899 = vmatpush1.msra.mxu0 %v2571
      %2900 = vmatprep.subr.mxu0 %v2576
      %2901 = vmatpush1.msra.mxu0 %v2575
      %2902 = vmatprep.subr.mxu0 %v2580
      %2903 = vmatpush1.msra.mxu0 %v2579
      %2904 = vmatprep.subr.mxu0 %v2584
      %2905 = vmatpush1.msra.mxu0 %v2583
      %2906 = vmatprep.subr.mxu0 %v2588
      %2907 = vmatpush1.msra.mxu0 %v2587
      %2908 = vmatprep.subr.mxu0 %v2592
      %2909 = vmatpush1.msra.mxu0 %v2591
      %2910 = vmatprep.subr.mxu0 %v2596
      %2911 = vmatpush1.msra.mxu0 %v2595
      %2912 = vmatprep.subr.mxu0 %v2600
      %2913 = vmatpush1.msra.mxu0 %v2599
      %2914 = vmatprep.subr.mxu0 %v2604
      %2915 = vmatpush1.msra.mxu0 %v2603
      %2916 = vmatprep.subr.mxu0 %v2608
      %2917 = vmatpush1.msra.mxu0 %v2607
      %2918 = vmatprep.subr.mxu0 %v2612
      %2919 = vmatpush1.msra.mxu0 %v2611
      %2920 = vmatprep.subr.mxu0 %v2616
      %2921 = vmatpush1.msra.mxu0 %v2615
      %2922 = vmatprep.subr.mxu0 %v2620
      %2923 = vmatpush1.msra.mxu0 %v2619
      %2924 = vmatprep.subr.mxu0 %v2624
      %2925 = vmatpush1.msra.mxu0 %v2623
      %2926 = vmatprep.subr.mxu0 %v2628
      %2927 = vmatpush1.msra.mxu0 %v2627
      %2928 = vmatprep.mubr.f32.mxu0 %v2372
      %2929 = vmatmul.mubr.f32.gmra.mrb[0].mxu0 %v2371
      %v2930 = vpop.f32.mrb[0].mxu0
      %v2931 = vadd.f32 %v2860, %v2930
      %v2932 = vpop.f32.mrb[0].mxu0
      %v2933 = vadd.f32 %v2862, %v2932
      %2934 = vdwg.mxu0
      %vm2935 = vcmp.ge.f32.partialorder %v2789, 0.0
      %vm2936 = vcmp.ge.f32.partialorder %v2791, 0.0
      %vm2937 = vcmp.ge.f32.partialorder %v2931, 0.0
      %vm2938 = vcmp.ge.f32.partialorder %v2933, 0.0
      %v2939 = vmul.f32 %v2789, 0.01
      %v2940 = vmul.f32 %v2791, 0.01
      %v2941 = vmul.f32 %v2931, 0.01
      %v2942 = vmul.f32 %v2933, 0.01
      %v2943 = vsel %vm2935, %v2789, %v2939
      %v2944 = vsel %vm2936, %v2791, %v2940
      %v2945 = vsel %vm2937, %v2931, %v2941
      %v2946 = vsel %vm2938, %v2933, %v2942
      %v2947 = vld [vmem:[#allocation11] sm:$0xff]
      %v2948 = vld [vmem:[#allocation11 + $0x8] sm:$0xff]
      %v2949 = vld [vmem:[#allocation11 + $0x10] sm:$0xff]
      %v2950 = vld [vmem:[#allocation11 + $0x18] sm:$0xff]
      %v2951 = vld [vmem:[#allocation11 + $0x20] sm:$0xff]
      %v2952 = vld [vmem:[#allocation11 + $0x28] sm:$0xff]
      %v2953 = vld [vmem:[#allocation11 + $0x30] sm:$0xff]
      %v2954 = vld [vmem:[#allocation11 + $0x38] sm:$0xff]
      %v2955 = vld [vmem:[#allocation11 + $0x40] sm:$0xff]
      %v2956 = vld [vmem:[#allocation11 + $0x48] sm:$0xff]
      %v2957 = vld [vmem:[#allocation11 + $0x50] sm:$0xff]
      %v2958 = vld [vmem:[#allocation11 + $0x58] sm:$0xff]
      %v2959 = vld [vmem:[#allocation11 + $0x60] sm:$0xff]
      %v2960 = vld [vmem:[#allocation11 + $0x68] sm:$0xff]
      %v2961 = vld [vmem:[#allocation11 + $0x70] sm:$0xff]
      %v2962 = vld [vmem:[#allocation11 + $0x78] sm:$0xff]
      %v2963 = vld [vmem:[#allocation11 + $0x80] sm:$0xff]
      %v2964 = vld [vmem:[#allocation11 + $0x88] sm:$0xff]
      %v2965 = vld [vmem:[#allocation11 + $0x90] sm:$0xff]
      %v2966 = vld [vmem:[#allocation11 + $0x98] sm:$0xff]
      %v2967 = vld [vmem:[#allocation11 + $0xa0] sm:$0xff]
      %v2968 = vld [vmem:[#allocation11 + $0xa8] sm:$0xff]
      %v2969 = vld [vmem:[#allocation11 + $0xb0] sm:$0xff]
      %v2970 = vld [vmem:[#allocation11 + $0xb8] sm:$0xff]
      %v2971 = vld [vmem:[#allocation11 + $0xc0] sm:$0xff]
      %v2972 = vld [vmem:[#allocation11 + $0xc8] sm:$0xff]
      %v2973 = vld [vmem:[#allocation11 + $0xd0] sm:$0xff]
      %v2974 = vld [vmem:[#allocation11 + $0xd8] sm:$0xff]
      %v2975 = vld [vmem:[#allocation11 + $0xe0] sm:$0xff]
      %v2976 = vld [vmem:[#allocation11 + $0xe8] sm:$0xff]
      %v2977 = vld [vmem:[#allocation11 + $0xf0] sm:$0xff]
      %v2978 = vld [vmem:[#allocation11 + $0xf8] sm:$0xff]
      %v2979 = vld [vmem:[#allocation11 + $0x100] sm:$0xff]
      %v2980 = vld [vmem:[#allocation11 + $0x108] sm:$0xff]
      %v2981 = vld [vmem:[#allocation11 + $0x110] sm:$0xff]
      %v2982 = vld [vmem:[#allocation11 + $0x118] sm:$0xff]
      %v2983 = vld [vmem:[#allocation11 + $0x120] sm:$0xff]
      %v2984 = vld [vmem:[#allocation11 + $0x128] sm:$0xff]
      %v2985 = vld [vmem:[#allocation11 + $0x130] sm:$0xff]
      %v2986 = vld [vmem:[#allocation11 + $0x138] sm:$0xff]
      %v2987 = vld [vmem:[#allocation11 + $0x140] sm:$0xff]
      %v2988 = vld [vmem:[#allocation11 + $0x148] sm:$0xff]
      %v2989 = vld [vmem:[#allocation11 + $0x150] sm:$0xff]
      %v2990 = vld [vmem:[#allocation11 + $0x158] sm:$0xff]
      %v2991 = vld [vmem:[#allocation11 + $0x160] sm:$0xff]
      %v2992 = vld [vmem:[#allocation11 + $0x168] sm:$0xff]
      %v2993 = vld [vmem:[#allocation11 + $0x170] sm:$0xff]
      %v2994 = vld [vmem:[#allocation11 + $0x178] sm:$0xff]
      %v2995 = vld [vmem:[#allocation11 + $0x180] sm:$0xff]
      %v2996 = vld [vmem:[#allocation11 + $0x188] sm:$0xff]
      %v2997 = vld [vmem:[#allocation11 + $0x190] sm:$0xff]
      %v2998 = vld [vmem:[#allocation11 + $0x198] sm:$0xff]
      %v2999 = vld [vmem:[#allocation11 + $0x1a0] sm:$0xff]
      %v3000 = vld [vmem:[#allocation11 + $0x1a8] sm:$0xff]
      %v3001 = vld [vmem:[#allocation11 + $0x1b0] sm:$0xff]
      %v3002 = vld [vmem:[#allocation11 + $0x1b8] sm:$0xff]
      %v3003 = vld [vmem:[#allocation11 + $0x1c0] sm:$0xff]
      %v3004 = vld [vmem:[#allocation11 + $0x1c8] sm:$0xff]
      %v3005 = vld [vmem:[#allocation11 + $0x1d0] sm:$0xff]
      %v3006 = vld [vmem:[#allocation11 + $0x1d8] sm:$0xff]
      %v3007 = vld [vmem:[#allocation11 + $0x1e0] sm:$0xff]
      %v3008 = vld [vmem:[#allocation11 + $0x1e8] sm:$0xff]
      %v3009 = vld [vmem:[#allocation11 + $0x1f0] sm:$0xff]
      %v3010 = vld [vmem:[#allocation11 + $0x1f8] sm:$0xff]
      %v3011 = vld [vmem:[#allocation11 + $0x200] sm:$0xff]
      %v3012 = vld [vmem:[#allocation11 + $0x208] sm:$0xff]
      %v3013 = vld [vmem:[#allocation11 + $0x210] sm:$0xff]
      %v3014 = vld [vmem:[#allocation11 + $0x218] sm:$0xff]
      %v3015 = vld [vmem:[#allocation11 + $0x220] sm:$0xff]
      %v3016 = vld [vmem:[#allocation11 + $0x228] sm:$0xff]
      %v3017 = vld [vmem:[#allocation11 + $0x230] sm:$0xff]
      %v3018 = vld [vmem:[#allocation11 + $0x238] sm:$0xff]
      %v3019 = vld [vmem:[#allocation11 + $0x240] sm:$0xff]
      %v3020 = vld [vmem:[#allocation11 + $0x248] sm:$0xff]
      %v3021 = vld [vmem:[#allocation11 + $0x250] sm:$0xff]
      %v3022 = vld [vmem:[#allocation11 + $0x258] sm:$0xff]
      %v3023 = vld [vmem:[#allocation11 + $0x260] sm:$0xff]
      %v3024 = vld [vmem:[#allocation11 + $0x268] sm:$0xff]
      %v3025 = vld [vmem:[#allocation11 + $0x270] sm:$0xff]
      %v3026 = vld [vmem:[#allocation11 + $0x278] sm:$0xff]
      %v3027 = vld [vmem:[#allocation11 + $0x280] sm:$0xff]
      %v3028 = vld [vmem:[#allocation11 + $0x288] sm:$0xff]
      %v3029 = vld [vmem:[#allocation11 + $0x290] sm:$0xff]
      %v3030 = vld [vmem:[#allocation11 + $0x298] sm:$0xff]
      %v3031 = vld [vmem:[#allocation11 + $0x2a0] sm:$0xff]
      %v3032 = vld [vmem:[#allocation11 + $0x2a8] sm:$0xff]
      %v3033 = vld [vmem:[#allocation11 + $0x2b0] sm:$0xff]
      %v3034 = vld [vmem:[#allocation11 + $0x2b8] sm:$0xff]
      %v3035 = vld [vmem:[#allocation11 + $0x2c0] sm:$0xff]
      %v3036 = vld [vmem:[#allocation11 + $0x2c8] sm:$0xff]
      %v3037 = vld [vmem:[#allocation11 + $0x2d0] sm:$0xff]
      %v3038 = vld [vmem:[#allocation11 + $0x2d8] sm:$0xff]
      %v3039 = vld [vmem:[#allocation11 + $0x2e0] sm:$0xff]
      %v3040 = vld [vmem:[#allocation11 + $0x2e8] sm:$0xff]
      %v3041 = vld [vmem:[#allocation11 + $0x2f0] sm:$0xff]
      %v3042 = vld [vmem:[#allocation11 + $0x2f8] sm:$0xff]
      %v3043 = vld [vmem:[#allocation11 + $0x300] sm:$0xff]
      %v3044 = vld [vmem:[#allocation11 + $0x308] sm:$0xff]
      %v3045 = vld [vmem:[#allocation11 + $0x310] sm:$0xff]
      %v3046 = vld [vmem:[#allocation11 + $0x318] sm:$0xff]
      %v3047 = vld [vmem:[#allocation11 + $0x320] sm:$0xff]
      %v3048 = vld [vmem:[#allocation11 + $0x328] sm:$0xff]
      %v3049 = vld [vmem:[#allocation11 + $0x330] sm:$0xff]
      %v3050 = vld [vmem:[#allocation11 + $0x338] sm:$0xff]
      %v3051 = vld [vmem:[#allocation11 + $0x340] sm:$0xff]
      %v3052 = vld [vmem:[#allocation11 + $0x348] sm:$0xff]
      %v3053 = vld [vmem:[#allocation11 + $0x350] sm:$0xff]
      %v3054 = vld [vmem:[#allocation11 + $0x358] sm:$0xff]
      %v3055 = vld [vmem:[#allocation11 + $0x360] sm:$0xff]
      %v3056 = vld [vmem:[#allocation11 + $0x368] sm:$0xff]
      %v3057 = vld [vmem:[#allocation11 + $0x370] sm:$0xff]
      %v3058 = vld [vmem:[#allocation11 + $0x378] sm:$0xff]
      %v3059 = vld [vmem:[#allocation11 + $0x380] sm:$0xff]
      %v3060 = vld [vmem:[#allocation11 + $0x388] sm:$0xff]
      %v3061 = vld [vmem:[#allocation11 + $0x390] sm:$0xff]
      %v3062 = vld [vmem:[#allocation11 + $0x398] sm:$0xff]
      %v3063 = vld [vmem:[#allocation11 + $0x3a0] sm:$0xff]
      %v3064 = vld [vmem:[#allocation11 + $0x3a8] sm:$0xff]
      %v3065 = vld [vmem:[#allocation11 + $0x3b0] sm:$0xff]
      %v3066 = vld [vmem:[#allocation11 + $0x3b8] sm:$0xff]
      %v3067 = vld [vmem:[#allocation11 + $0x3c0] sm:$0xff]
      %v3068 = vld [vmem:[#allocation11 + $0x3c8] sm:$0xff]
      %v3069 = vld [vmem:[#allocation11 + $0x3d0] sm:$0xff]
      %v3070 = vld [vmem:[#allocation11 + $0x3d8] sm:$0xff]
      %v3071 = vld [vmem:[#allocation11 + $0x3e0] sm:$0xff]
      %v3072 = vld [vmem:[#allocation11 + $0x3e8] sm:$0xff]
      %v3073 = vld [vmem:[#allocation11 + $0x3f0] sm:$0xff]
      %v3074 = vld [vmem:[#allocation11 + $0x3f8] sm:$0xff]
      %v3075 = vld [vmem:[#allocation13] sm:$0x3]
      %v3077 = vlaneseq
      %v3078 = vshrl.u32 %v3077, 7
      %v3079 = vsub.s32 0, %v3078
      %v3080 = vrot.slane %v3075, %v3079
      %v3081 = vlaneseq
      %v3082 = vshrl.u32 %v3081, 7
      %v3083 = vsub.s32 1, %v3082
      %v3084 = vrot.slane %v3075, %v3083
      %3087 = vmatprep.subr.mxu0 %v2948
      %3088 = vmatpush1.msra.mxu0 %v2947
      %3089 = vmatprep.subr.mxu0 %v2950
      %3090 = vmatpush1.msra.mxu0 %v2949
      %3091 = vmatprep.subr.mxu0 %v2952
      %3092 = vmatpush1.msra.mxu0 %v2951
      %3093 = vmatprep.subr.mxu0 %v2954
      %3094 = vmatpush1.msra.mxu0 %v2953
      %3095 = vmatprep.subr.mxu0 %v2956
      %3096 = vmatpush1.msra.mxu0 %v2955
      %3097 = vmatprep.subr.mxu0 %v2958
      %3098 = vmatpush1.msra.mxu0 %v2957
      %3099 = vmatprep.subr.mxu0 %v2960
      %3100 = vmatpush1.msra.mxu0 %v2959
      %3101 = vmatprep.subr.mxu0 %v2962
      %3102 = vmatpush1.msra.mxu0 %v2961
      %3103 = vmatprep.subr.mxu0 %v2964
      %3104 = vmatpush1.msra.mxu0 %v2963
      %3105 = vmatprep.subr.mxu0 %v2966
      %3106 = vmatpush1.msra.mxu0 %v2965
      %3107 = vmatprep.subr.mxu0 %v2968
      %3108 = vmatpush1.msra.mxu0 %v2967
      %3109 = vmatprep.subr.mxu0 %v2970
      %3110 = vmatpush1.msra.mxu0 %v2969
      %3111 = vmatprep.subr.mxu0 %v2972
      %3112 = vmatpush1.msra.mxu0 %v2971
      %3113 = vmatprep.subr.mxu0 %v2974
      %3114 = vmatpush1.msra.mxu0 %v2973
      %3115 = vmatprep.subr.mxu0 %v2976
      %3116 = vmatpush1.msra.mxu0 %v2975
      %3117 = vmatprep.subr.mxu0 %v2978
      %3118 = vmatpush1.msra.mxu0 %v2977
      %3119 = vmatprep.subr.mxu0 %v2980
      %3120 = vmatpush1.msra.mxu0 %v2979
      %3121 = vmatprep.subr.mxu0 %v2982
      %3122 = vmatpush1.msra.mxu0 %v2981
      %3123 = vmatprep.subr.mxu0 %v2984
      %3124 = vmatpush1.msra.mxu0 %v2983
      %3125 = vmatprep.subr.mxu0 %v2986
      %3126 = vmatpush1.msra.mxu0 %v2985
      %3127 = vmatprep.subr.mxu0 %v2988
      %3128 = vmatpush1.msra.mxu0 %v2987
      %3129 = vmatprep.subr.mxu0 %v2990
      %3130 = vmatpush1.msra.mxu0 %v2989
      %3131 = vmatprep.subr.mxu0 %v2992
      %3132 = vmatpush1.msra.mxu0 %v2991
      %3133 = vmatprep.subr.mxu0 %v2994
      %3134 = vmatpush1.msra.mxu0 %v2993
      %3135 = vmatprep.subr.mxu0 %v2996
      %3136 = vmatpush1.msra.mxu0 %v2995
      %3137 = vmatprep.subr.mxu0 %v2998
      %3138 = vmatpush1.msra.mxu0 %v2997
      %3139 = vmatprep.subr.mxu0 %v3000
      %3140 = vmatpush1.msra.mxu0 %v2999
      %3141 = vmatprep.subr.mxu0 %v3002
      %3142 = vmatpush1.msra.mxu0 %v3001
      %3143 = vmatprep.subr.mxu0 %v3004
      %3144 = vmatpush1.msra.mxu0 %v3003
      %3145 = vmatprep.subr.mxu0 %v3006
      %3146 = vmatpush1.msra.mxu0 %v3005
      %3147 = vmatprep.subr.mxu0 %v3008
      %3148 = vmatpush1.msra.mxu0 %v3007
      %3149 = vmatprep.subr.mxu0 %v3010
      %3150 = vmatpush1.msra.mxu0 %v3009
      %3151 = vmatprep.mubr.f32.mxu0 %v2944
      %3152 = vmatmul.mubr.f32.gmra.mrb[0].mxu0 %v2943
      %v3153 = vpop.f32.mrb[0].mxu0
      %v3154 = vadd.f32 %v3080, %v3153
      %v3155 = vpop.f32.mrb[0].mxu0
      %v3156 = vadd.f32 %v3084, %v3155
      %3157 = vdwg.mxu0
      %3158 = vmatprep.subr.mxu0 %v3012
      %3159 = vmatpush1.msra.mxu0 %v3011
      %3160 = vmatprep.subr.mxu0 %v3014
      %3161 = vmatpush1.msra.mxu0 %v3013
      %3162 = vmatprep.subr.mxu0 %v3016
      %3163 = vmatpush1.msra.mxu0 %v3015
      %3164 = vmatprep.subr.mxu0 %v3018
      %3165 = vmatpush1.msra.mxu0 %v3017
      %3166 = vmatprep.subr.mxu0 %v3020
      %3167 = vmatpush1.msra.mxu0 %v3019
      %3168 = vmatprep.subr.mxu0 %v3022
      %3169 = vmatpush1.msra.mxu0 %v3021
      %3170 = vmatprep.subr.mxu0 %v3024
      %3171 = vmatpush1.msra.mxu0 %v3023
      %3172 = vmatprep.subr.mxu0 %v3026
      %3173 = vmatpush1.msra.mxu0 %v3025
      %3174 = vmatprep.subr.mxu0 %v3028
      %3175 = vmatpush1.msra.mxu0 %v3027
      %3176 = vmatprep.subr.mxu0 %v3030
      %3177 = vmatpush1.msra.mxu0 %v3029
      %3178 = vmatprep.subr.mxu0 %v3032
      %3179 = vmatpush1.msra.mxu0 %v3031
      %3180 = vmatprep.subr.mxu0 %v3034
      %3181 = vmatpush1.msra.mxu0 %v3033
      %3182 = vmatprep.subr.mxu0 %v3036
      %3183 = vmatpush1.msra.mxu0 %v3035
      %3184 = vmatprep.subr.mxu0 %v3038
      %3185 = vmatpush1.msra.mxu0 %v3037
      %3186 = vmatprep.subr.mxu0 %v3040
      %3187 = vmatpush1.msra.mxu0 %v3039
      %3188 = vmatprep.subr.mxu0 %v3042
      %3189 = vmatpush1.msra.mxu0 %v3041
      %3190 = vmatprep.subr.mxu0 %v3044
      %3191 = vmatpush1.msra.mxu0 %v3043
      %3192 = vmatprep.subr.mxu0 %v3046
      %3193 = vmatpush1.msra.mxu0 %v3045
      %3194 = vmatprep.subr.mxu0 %v3048
      %3195 = vmatpush1.msra.mxu0 %v3047
      %3196 = vmatprep.subr.mxu0 %v3050
      %3197 = vmatpush1.msra.mxu0 %v3049
      %3198 = vmatprep.subr.mxu0 %v3052
      %3199 = vmatpush1.msra.mxu0 %v3051
      %3200 = vmatprep.subr.mxu0 %v3054
      %3201 = vmatpush1.msra.mxu0 %v3053
      %3202 = vmatprep.subr.mxu0 %v3056
      %3203 = vmatpush1.msra.mxu0 %v3055
      %3204 = vmatprep.subr.mxu0 %v3058
      %3205 = vmatpush1.msra.mxu0 %v3057
      %3206 = vmatprep.subr.mxu0 %v3060
      %3207 = vmatpush1.msra.mxu0 %v3059
      %3208 = vmatprep.subr.mxu0 %v3062
      %3209 = vmatpush1.msra.mxu0 %v3061
      %3210 = vmatprep.subr.mxu0 %v3064
      %3211 = vmatpush1.msra.mxu0 %v3063
      %3212 = vmatprep.subr.mxu0 %v3066
      %3213 = vmatpush1.msra.mxu0 %v3065
      %3214 = vmatprep.subr.mxu0 %v3068
      %3215 = vmatpush1.msra.mxu0 %v3067
      %3216 = vmatprep.subr.mxu0 %v3070
      %3217 = vmatpush1.msra.mxu0 %v3069
      %3218 = vmatprep.subr.mxu0 %v3072
      %3219 = vmatpush1.msra.mxu0 %v3071
      %3220 = vmatprep.subr.mxu0 %v3074
      %3221 = vmatpush1.msra.mxu0 %v3073
      %3222 = vmatprep.mubr.f32.mxu0 %v2946
      %3223 = vmatmul.mubr.f32.gmra.mrb[0].mxu0 %v2945
      %v3224 = vpop.f32.mrb[0].mxu0
      %v3225 = vadd.f32 %v3154, %v3224
      %v3226 = vpop.f32.mrb[0].mxu0
      %v3227 = vadd.f32 %v3156, %v3226
      %3228 = vdwg.mxu0
      %vm3229 = vcmp.ge.f32.partialorder %v3225, 0.0
      %vm3230 = vcmp.ge.f32.partialorder %v3227, 0.0
      %v3231 = vmul.f32 %v3225, 0.01
      %v3232 = vmul.f32 %v3227, 0.01
      %v3233 = vsel %vm3229, %v3225, %v3231
      %v3234 = vsel %vm3230, %v3227, %v3232
      %v3235 = vld [vmem:[#allocation14] sm:$0xff]
      %v3236 = vld [vmem:[#allocation14 + $0x8] sm:$0xff]
      %v3237 = vld [vmem:[#allocation14 + $0x10] sm:$0xff]
      %v3238 = vld [vmem:[#allocation14 + $0x18] sm:$0xff]
      %v3239 = vld [vmem:[#allocation14 + $0x20] sm:$0xff]
      %v3240 = vld [vmem:[#allocation14 + $0x28] sm:$0xff]
      %v3241 = vld [vmem:[#allocation14 + $0x30] sm:$0xff]
      %v3242 = vld [vmem:[#allocation14 + $0x38] sm:$0xff]
      %v3243 = vld [vmem:[#allocation14 + $0x40] sm:$0xff]
      %v3244 = vld [vmem:[#allocation14 + $0x48] sm:$0xff]
      %v3245 = vld [vmem:[#allocation14 + $0x50] sm:$0xff]
      %v3246 = vld [vmem:[#allocation14 + $0x58] sm:$0xff]
      %v3247 = vld [vmem:[#allocation14 + $0x60] sm:$0xff]
      %v3248 = vld [vmem:[#allocation14 + $0x68] sm:$0xff]
      %v3249 = vld [vmem:[#allocation14 + $0x70] sm:$0xff]
      %v3250 = vld [vmem:[#allocation14 + $0x78] sm:$0xff]
      %v3251 = vld [vmem:[#allocation14 + $0x80] sm:$0xff]
      %v3252 = vld [vmem:[#allocation14 + $0x88] sm:$0xff]
      %v3253 = vld [vmem:[#allocation14 + $0x90] sm:$0xff]
      %v3254 = vld [vmem:[#allocation14 + $0x98] sm:$0xff]
      %v3255 = vld [vmem:[#allocation14 + $0xa0] sm:$0xff]
      %v3256 = vld [vmem:[#allocation14 + $0xa8] sm:$0xff]
      %v3257 = vld [vmem:[#allocation14 + $0xb0] sm:$0xff]
      %v3258 = vld [vmem:[#allocation14 + $0xb8] sm:$0xff]
      %v3259 = vld [vmem:[#allocation14 + $0xc0] sm:$0xff]
      %v3260 = vld [vmem:[#allocation14 + $0xc8] sm:$0xff]
      %v3261 = vld [vmem:[#allocation14 + $0xd0] sm:$0xff]
      %v3262 = vld [vmem:[#allocation14 + $0xd8] sm:$0xff]
      %v3263 = vld [vmem:[#allocation14 + $0xe0] sm:$0xff]
      %v3264 = vld [vmem:[#allocation14 + $0xe8] sm:$0xff]
      %v3265 = vld [vmem:[#allocation14 + $0xf0] sm:$0xff]
      %v3266 = vld [vmem:[#allocation14 + $0xf8] sm:$0xff]
      %v3267 = vld [vmem:[#allocation16] sm:$0x1]
      %v3269 = vlaneseq
      %v3270 = vshrl.u32 %v3269, 7
      %v3271 = vsub.s32 0, %v3270
      %v3272 = vrot.slane %v3267, %v3271
      %3274 = vmatprep.subr.mxu0 0.0
      %3275 = vmatpush1.msra.mxu0 %v3235
      %3276 = vmatprep.subr.mxu0 0.0
      %3277 = vmatpush1.msra.mxu0 %v3236
      %3278 = vmatprep.subr.mxu0 0.0
      %3279 = vmatpush1.msra.mxu0 %v3237
      %3280 = vmatprep.subr.mxu0 0.0
      %3281 = vmatpush1.msra.mxu0 %v3238
      %3282 = vmatprep.subr.mxu0 0.0
      %3283 = vmatpush1.msra.mxu0 %v3239
      %3284 = vmatprep.subr.mxu0 0.0
      %3285 = vmatpush1.msra.mxu0 %v3240
      %3286 = vmatprep.subr.mxu0 0.0
      %3287 = vmatpush1.msra.mxu0 %v3241
      %3288 = vmatprep.subr.mxu0 0.0
      %3289 = vmatpush1.msra.mxu0 %v3242
      %3290 = vmatprep.subr.mxu0 0.0
      %3291 = vmatpush1.msra.mxu0 %v3243
      %3292 = vmatprep.subr.mxu0 0.0
      %3293 = vmatpush1.msra.mxu0 %v3244
      %3294 = vmatprep.subr.mxu0 0.0
      %3295 = vmatpush1.msra.mxu0 %v3245
      %3296 = vmatprep.subr.mxu0 0.0
      %3297 = vmatpush1.msra.mxu0 %v3246
      %3298 = vmatprep.subr.mxu0 0.0
      %3299 = vmatpush1.msra.mxu0 %v3247
      %3300 = vmatprep.subr.mxu0 0.0
      %3301 = vmatpush1.msra.mxu0 %v3248
      %3302 = vmatprep.subr.mxu0 0.0
      %3303 = vmatpush1.msra.mxu0 %v3249
      %3304 = vmatprep.subr.mxu0 0.0
      %3305 = vmatpush1.msra.mxu0 %v3250
      %3306 = vmatprep.subr.mxu0 0.0
      %3307 = vmatpush1.msra.mxu0 %v3251
      %3308 = vmatprep.subr.mxu0 0.0
      %3309 = vmatpush1.msra.mxu0 %v3252
      %3310 = vmatprep.subr.mxu0 0.0
      %3311 = vmatpush1.msra.mxu0 %v3253
      %3312 = vmatprep.subr.mxu0 0.0
      %3313 = vmatpush1.msra.mxu0 %v3254
      %3314 = vmatprep.subr.mxu0 0.0
      %3315 = vmatpush1.msra.mxu0 %v3255
      %3316 = vmatprep.subr.mxu0 0.0
      %3317 = vmatpush1.msra.mxu0 %v3256
      %3318 = vmatprep.subr.mxu0 0.0
      %3319 = vmatpush1.msra.mxu0 %v3257
      %3320 = vmatprep.subr.mxu0 0.0
      %3321 = vmatpush1.msra.mxu0 %v3258
      %3322 = vmatprep.subr.mxu0 0.0
      %3323 = vmatpush1.msra.mxu0 %v3259
      %3324 = vmatprep.subr.mxu0 0.0
      %3325 = vmatpush1.msra.mxu0 %v3260
      %3326 = vmatprep.subr.mxu0 0.0
      %3327 = vmatpush1.msra.mxu0 %v3261
      %3328 = vmatprep.subr.mxu0 0.0
      %3329 = vmatpush1.msra.mxu0 %v3262
      %3330 = vmatprep.subr.mxu0 0.0
      %3331 = vmatpush1.msra.mxu0 %v3263
      %3332 = vmatprep.subr.mxu0 0.0
      %3333 = vmatpush1.msra.mxu0 %v3264
      %3334 = vmatprep.subr.mxu0 0.0
      %3335 = vmatpush1.msra.mxu0 %v3265
      %3336 = vmatprep.subr.mxu0 0.0
      %3337 = vmatpush1.msra.mxu0 %v3266
      %3338 = vmatprep.mubr.f32.mxu0 %v3234
      %3339 = vmatmul.mubr.f32.gmra.mrb[0].mxu0 %v3233
      %v3340 = vpop.f32.mrb[0].mxu0
      %v3341 = vadd.f32 %v3272, %v3340
      %v3342 = vpop.f32.mrb[0].mxu0
      %3343 = vdwg.mxu0
      %3344 = vst [vmem:[%s13] sm:$0xff] %v3341
    $region93: #{mtlnet_forward.1} parent=1 // pred_fallthru
      _
    // Predicated region
    $region94: #{mtlnet_forward.1} parent=1 // pred_check
      _
    $region95: #{mtlnet_forward.1} parent=1 // pred_check_branch
      %3346 = sbr.rel (0) target = $region97
    $region96: #{mtlnet_forward.1} parent=1 // pred_region
      _
    $region97: #{mtlnet_forward.1} parent=1 // pred_fallthru
      _
    // Predicated region
    $region98: #{mtlnet_forward.1} parent=1 // pred_check
      _
    $region99: #{mtlnet_forward.1} parent=1 // pred_check_branch
      %3348 = sbr.rel (0) target = $region101
    $region100: #{mtlnet_forward.1} parent=1 // pred_region
      _
    $region101: #{mtlnet_forward.1} parent=1 // pred_fallthru
      _
    // Predicated region
    $region102: #{mtlnet_forward.1} parent=1 // pred_check
      _
    $region103: #{mtlnet_forward.1} parent=1 // pred_check_branch
      %3350 = sbr.rel (0) target = $region105
    $region104: #{mtlnet_forward.1} parent=1 // pred_region
      _
    $region105: #{mtlnet_forward.1} parent=1 // pred_fallthru
      _
    // Predicated region
    $region106: #{mtlnet_forward.1} parent=1 // pred_check
      _
    $region107: #{mtlnet_forward.1} parent=1 // pred_check_branch
      %3352 = sbr.rel (0) target = $region109
    $region108: #{mtlnet_forward.1} parent=1 // pred_region
      _
    $region109: #{mtlnet_forward.1} parent=1 // pred_fallthru
      _
    %3353 = vsyncpa [#allocation4], 1
    %3354 = vsyncpa [#allocation6], 1
    %3355 = vsyncpa [#allocation9], 1
    %3356 = vsyncpa [#allocation12], 1
    %3357 = vsyncpa [#allocation15], 1

</llo_original>
